<compile_context>
chip_gen: v7x
topology: tpu7x:2x2x1
jax: 0.10.0
libtpu: 0.0.40
codegen_flags: <defaults>
</compile_context>

<pallas_src>
import functools

import jax
import jax.numpy as jnp
from jax.experimental import pallas as pl
from jax.experimental.pallas import tpu as pltpu


def _round_up(n, m):
    return (n + m - 1) // m * m


def dqn_kernel(x_ref, w1_ref, b1_ref, w2_ref, b2_ref, w3_ref, b3_ref, w4_ref,
               o_ref):
    # --- x.log2().nan_to_num()  (torch defaults: nan->0, +inf->max, -inf->0) ---
    y = jnp.log2(x_ref[...])                                       # f32, EUP
    y = jnp.where(jnp.isnan(y) | jnp.isneginf(y), 0.0, y)          # nan/-inf -> 0
    y = jnp.where(jnp.isposinf(y), jnp.finfo(jnp.float32).max, y)  # +inf -> max

    # --- MLP hot path: bf16 MXU inputs, f32 accumulation, VPU ReLUs ---
    h = jnp.dot(y.astype(jnp.bfloat16), w1_ref[...],
                preferred_element_type=jnp.float32) + b1_ref[...]
    h = jnp.maximum(h, 0.0).astype(jnp.bfloat16)
    h = jnp.dot(h, w2_ref[...], preferred_element_type=jnp.float32) + b2_ref[...]
    h = jnp.maximum(h, 0.0).astype(jnp.bfloat16)
    h = jnp.dot(h, w3_ref[...], preferred_element_type=jnp.float32) + b3_ref[...]
    h = jnp.maximum(h, 0.0).astype(jnp.bfloat16)
    # w4 is lane-padded to 128 columns -> full-lane, unmasked output store.
    o_ref[...] = jnp.dot(h, w4_ref[...], preferred_element_type=jnp.float32)


@functools.partial(jax.jit, static_argnames=("out_neurons",))
def simple_dqn_forward(x, params, *, out_neurons):
    """x: (B, C, H, W) float32; params: f32 (w1,b1,w2,b2,w3,b3,w4)."""
    B = x.shape[0]
    x2 = x.reshape(B, -1).astype(jnp.float32)        # torch flatten(1) equivalent
    in_features = x2.shape[1]
    w1, b1, w2, b2, w3, b3, w4 = params

    # bf16 weight streaming; biases stay f32; pad final layer to 128 lanes.
    out_pad = _round_up(max(out_neurons, 1), 128)
    w1b, w2b, w3b = (w.astype(jnp.bfloat16) for w in (w1, w2, w3))
    w4p = jnp.zeros((w4.shape[0], out_pad), jnp.bfloat16)
    w4p = w4p.at[:, :out_neurons].set(w4.astype(jnp.bfloat16))
    b1r = b1.reshape(1, -1).astype(jnp.float32)
    b2r = b2.reshape(1, -1).astype(jnp.float32)
    b3r = b3.reshape(1, -1).astype(jnp.float32)

    # Batch tiling: TM rows per grid step (sublane-aligned); pad B up to TM.
    tm = min(128, _round_up(max(B, 1), 8))
    b_pad = _round_up(B, tm)
    if b_pad != B:
        x2 = jnp.concatenate(
            [x2, jnp.ones((b_pad - B, in_features), jnp.float32)], axis=0)

    resident = lambda i: (0, 0)   # weights/biases: fetched once, stay in VMEM

    out_padded = pl.pallas_call(
        dqn_kernel,
        out_shape=jax.ShapeDtypeStruct((b_pad, out_pad), jnp.float32),
        grid=(b_pad // tm,),
        in_specs=[
            pl.BlockSpec((tm, in_features), lambda i: (i, 0)),   # x tile
            pl.BlockSpec(w1b.shape, resident),
            pl.BlockSpec(b1r.shape, resident),
            pl.BlockSpec(w2b.shape, resident),
            pl.BlockSpec(b2r.shape, resident),
            pl.BlockSpec(w3b.shape, resident),
            pl.BlockSpec(b3r.shape, resident),
            pl.BlockSpec(w4p.shape, resident),
        ],
        out_specs=pl.BlockSpec((tm, out_pad), lambda i: (i, 0)),
        compiler_params=pltpu.CompilerParams(
            dimension_semantics=("parallel",),
            vmem_limit_bytes=32 * 1024 * 1024,
        ),
    )(x2, w1b, b1r, w2b, b2r, w3b, b3r, w4p)

    return out_padded[:B, :out_neurons]


def init_params(key, input_neurons, output_neurons):
    """Deterministic f32 init mirroring nn.Linear's uniform(-1/sqrt(fan_in))."""
    dims = [input_neurons, 1024, 512, 256, output_neurons]
    keys = jax.random.split(key, 7)

    def u(k, shape, fan_in):
        bound = 1.0 / (fan_in ** 0.5)
        return jax.random.uniform(k, shape, jnp.float32, -bound, bound)

    w1 = u(keys[0], (dims[0], dims[1]), dims[0])
    b1 = u(keys[1], (1, dims[1]), dims[0])
    w2 = u(keys[2], (dims[1], dims[2]), dims[1])
    b2 = u(keys[3], (1, dims[2]), dims[1])
    w3 = u(keys[4], (dims[2], dims[3]), dims[2])
    b3 = u(keys[5], (1, dims[3]), dims[2])
    w4 = u(keys[6], (dims[3], dims[4]), dims[3])   # last layer: bias=False
    return (w1, b1, w2, b2, w3, b3, w4)


if __name__ == "__main__":
    key = jax.random.PRNGKey(0)
    k_x, k_p = jax.random.split(key)

    B, C, H, W = 2, 4, 16, 16                 # input_neurons = 4*16*16 = 1024
    output_neurons = 8

    # Inputs in [0, 2): includes values < 1 (negative log2) and exercises the
    # nan_to_num paths via the two poked values below.
    x = jax.random.uniform(k_x, (B, C, H, W), jnp.float32, 0.0, 2.0)
    x = x.at[0, 0, 0, 0].set(0.0)             # log2(0)  = -inf -> 0
    x = x.at[1, 0, 0, 1].set(-1.0)            # log2(<0) =  nan -> 0

    params = init_params(k_p, C * H * W, output_neurons)

    out = simple_dqn_forward(x, params, out_neurons=output_neurons)
    jax.block_until_ready(out)

    # --- Pure-JAX reference mirroring the kernel's bf16/f32 mixed precision ---
    w1, b1, w2, b2, w3, b3, w4 = params
    y = jnp.log2(x.reshape(B, -1))
    y = jnp.where(jnp.isnan(y) | jnp.isneginf(y), 0.0, y)
    y = jnp.where(jnp.isposinf(y), jnp.finfo(jnp.float32).max, y)

    def mm(a, w):
        return jnp.dot(a.astype(jnp.bfloat16), w.astype(jnp.bfloat16),
                       preferred_element_type=jnp.float32)

    ref = jnp.maximum(mm(y, w1) + b1, 0.0)
    ref = jnp.maximum(mm(ref, w2) + b2, 0.0)
    ref = jnp.maximum(mm(ref, w3) + b3, 0.0)
    ref = mm(ref, w4)
    assert jnp.allclose(out, ref, atol=2e-2, rtol=2e-2), "mismatch vs bf16 reference"

    # --- Sanity check against the exact f32 PyTorch semantics (looser tol) ---
    ref32 = jnp.maximum(y @ w1 + b1, 0.0)
    ref32 = jnp.maximum(ref32 @ w2 + b2, 0.0)
    ref32 = jnp.maximum(ref32 @ w3 + b3, 0.0)
    ref32 = ref32 @ w4
    assert jnp.allclose(out, ref32, atol=1e-1, rtol=1e-1), "drifted from f32 semantics"

    print("KERNEL_OK")
</pallas_src>

<mosaic_0001>
module attributes {stable_mosaic.version = 11 : i64} {
  func.func @dqn_kernel(%arg0: i32, %arg1: memref<8x1024xf32, #tpu.memory_space<vmem>>, %arg2: memref<1024x1024xbf16, #tpu.memory_space<vmem>>, %arg3: memref<1x1024xf32, #tpu.memory_space<vmem>>, %arg4: memref<1024x512xbf16, #tpu.memory_space<vmem>>, %arg5: memref<1x512xf32, #tpu.memory_space<vmem>>, %arg6: memref<512x256xbf16, #tpu.memory_space<vmem>>, %arg7: memref<1x256xf32, #tpu.memory_space<vmem>>, %arg8: memref<256x128xbf16, #tpu.memory_space<vmem>>, %arg9: memref<8x128xf32, #tpu.memory_space<vmem>>) attributes {dimension_semantics = [#tpu.dimension_semantics<parallel>], iteration_bounds = array<i64: 1>, scalar_prefetch = 0 : i64, scratch_operands = 0 : i64, tpu.core_type = #tpu.core_type<tc>, window_params = [{transform_indices = @transform_0, window_bounds = array<i64: 8, 1024>}, {pipeline_mode = #tpu.pipeline_mode<synchronous>, transform_indices = @transform_1, window_bounds = array<i64: 1024, 1024>}, {pipeline_mode = #tpu.pipeline_mode<synchronous>, transform_indices = @transform_2, window_bounds = array<i64: 1, 1024>}, {pipeline_mode = #tpu.pipeline_mode<synchronous>, transform_indices = @transform_3, window_bounds = array<i64: 1024, 512>}, {pipeline_mode = #tpu.pipeline_mode<synchronous>, transform_indices = @transform_4, window_bounds = array<i64: 1, 512>}, {pipeline_mode = #tpu.pipeline_mode<synchronous>, transform_indices = @transform_5, window_bounds = array<i64: 512, 256>}, {pipeline_mode = #tpu.pipeline_mode<synchronous>, transform_indices = @transform_6, window_bounds = array<i64: 1, 256>}, {pipeline_mode = #tpu.pipeline_mode<synchronous>, transform_indices = @transform_7, window_bounds = array<i64: 256, 128>}, {transform_indices = @transform_8, window_bounds = array<i64: 8, 128>}]} {
    %c0 = arith.constant 0 : index
    %c0_0 = arith.constant 0 : index
    %0 = vector.load %arg1[%c0, %c0_0] : memref<8x1024xf32, #tpu.memory_space<vmem>>, vector<8x1024xf32>
    %1 = math.log %0 : vector<8x1024xf32>
    %cst = arith.constant 2.000000e+00 : f32
    %2 = math.log %cst : f32
    %3 = vector.broadcast %2 : f32 to vector<8x1024xf32>
    %4 = arith.divf %1, %3 : vector<8x1024xf32>
    %5 = arith.cmpf one, %4, %4 : vector<8x1024xf32>
    %cst_1 = arith.constant 0xFF800000 : f32
    %6 = vector.broadcast %cst_1 : f32 to vector<8x1024xf32>
    %7 = arith.cmpf oeq, %4, %6 : vector<8x1024xf32>
    %8 = arith.ori %5, %7 : vector<8x1024xi1>
    %cst_2 = arith.constant 0.000000e+00 : f32
    %9 = vector.broadcast %cst_2 : f32 to vector<8x1024xf32>
    %10 = arith.select %8, %9, %4 : vector<8x1024xi1>, vector<8x1024xf32>
    %cst_3 = arith.constant 0x7F800000 : f32
    %11 = vector.broadcast %cst_3 : f32 to vector<8x1024xf32>
    %12 = arith.cmpf oeq, %10, %11 : vector<8x1024xf32>
    %cst_4 = arith.constant 3.40282347E+38 : f32
    %13 = vector.broadcast %cst_4 : f32 to vector<8x1024xf32>
    %14 = arith.select %12, %13, %10 : vector<8x1024xi1>, vector<8x1024xf32>
    %15 = arith.truncf %14 : vector<8x1024xf32> to vector<8x1024xbf16>
    %c0_5 = arith.constant 0 : index
    %c0_6 = arith.constant 0 : index
    %16 = vector.load %arg2[%c0_5, %c0_6] : memref<1024x1024xbf16, #tpu.memory_space<vmem>>, vector<1024x1024xbf16>
    %cst_7 = arith.constant dense<0.000000e+00> : vector<8x1024xf32>
    %17 = tpu.matmul %15, %16, %cst_7 {dimension_numbers = #tpu.dot_dimension_numbers<[1], [0], [0], [1], [0, 0, 1, 1], [], []>} : vector<8x1024xbf16>, vector<1024x1024xbf16>, vector<8x1024xf32> -> vector<8x1024xf32>
    %c0_8 = arith.constant 0 : index
    %c0_9 = arith.constant 0 : index
    %18 = vector.load %arg3[%c0_8, %c0_9] : memref<1x1024xf32, #tpu.memory_space<vmem>>, vector<1x1024xf32>
    %19 = vector.broadcast %18 : vector<1x1024xf32> to vector<8x1024xf32>
    %20 = arith.addf %17, %19 : vector<8x1024xf32>
    %cst_10 = arith.constant 0.000000e+00 : f32
    %21 = vector.broadcast %cst_10 : f32 to vector<8x1024xf32>
    %22 = arith.maximumf %20, %21 : vector<8x1024xf32>
    %23 = arith.truncf %22 : vector<8x1024xf32> to vector<8x1024xbf16>
    %c0_11 = arith.constant 0 : index
    %c0_12 = arith.constant 0 : index
    %24 = vector.load %arg4[%c0_11, %c0_12] : memref<1024x512xbf16, #tpu.memory_space<vmem>>, vector<1024x512xbf16>
    %cst_13 = arith.constant dense<0.000000e+00> : vector<8x512xf32>
    %25 = tpu.matmul %23, %24, %cst_13 {dimension_numbers = #tpu.dot_dimension_numbers<[1], [0], [0], [1], [0, 0, 1, 1], [], []>} : vector<8x1024xbf16>, vector<1024x512xbf16>, vector<8x512xf32> -> vector<8x512xf32>
    %c0_14 = arith.constant 0 : index
    %c0_15 = arith.constant 0 : index
    %26 = vector.load %arg5[%c0_14, %c0_15] : memref<1x512xf32, #tpu.memory_space<vmem>>, vector<1x512xf32>
    %27 = vector.broadcast %26 : vector<1x512xf32> to vector<8x512xf32>
    %28 = arith.addf %25, %27 : vector<8x512xf32>
    %cst_16 = arith.constant 0.000000e+00 : f32
    %29 = vector.broadcast %cst_16 : f32 to vector<8x512xf32>
    %30 = arith.maximumf %28, %29 : vector<8x512xf32>
    %31 = arith.truncf %30 : vector<8x512xf32> to vector<8x512xbf16>
    %c0_17 = arith.constant 0 : index
    %c0_18 = arith.constant 0 : index
    %32 = vector.load %arg6[%c0_17, %c0_18] : memref<512x256xbf16, #tpu.memory_space<vmem>>, vector<512x256xbf16>
    %cst_19 = arith.constant dense<0.000000e+00> : vector<8x256xf32>
    %33 = tpu.matmul %31, %32, %cst_19 {dimension_numbers = #tpu.dot_dimension_numbers<[1], [0], [0], [1], [0, 0, 1, 1], [], []>} : vector<8x512xbf16>, vector<512x256xbf16>, vector<8x256xf32> -> vector<8x256xf32>
    %c0_20 = arith.constant 0 : index
    %c0_21 = arith.constant 0 : index
    %34 = vector.load %arg7[%c0_20, %c0_21] : memref<1x256xf32, #tpu.memory_space<vmem>>, vector<1x256xf32>
    %35 = vector.broadcast %34 : vector<1x256xf32> to vector<8x256xf32>
    %36 = arith.addf %33, %35 : vector<8x256xf32>
    %cst_22 = arith.constant 0.000000e+00 : f32
    %37 = vector.broadcast %cst_22 : f32 to vector<8x256xf32>
    %38 = arith.maximumf %36, %37 : vector<8x256xf32>
    %39 = arith.truncf %38 : vector<8x256xf32> to vector<8x256xbf16>
    %c0_23 = arith.constant 0 : index
    %c0_24 = arith.constant 0 : index
    %40 = vector.load %arg8[%c0_23, %c0_24] : memref<256x128xbf16, #tpu.memory_space<vmem>>, vector<256x128xbf16>
    %cst_25 = arith.constant dense<0.000000e+00> : vector<8x128xf32>
    %41 = tpu.matmul %39, %40, %cst_25 {dimension_numbers = #tpu.dot_dimension_numbers<[1], [0], [0], [1], [0, 0, 1, 1], [], []>} : vector<8x256xbf16>, vector<256x128xbf16>, vector<8x128xf32> -> vector<8x128xf32>
    %c0_26 = arith.constant 0 : index
    %c0_27 = arith.constant 0 : index
    %42 = vector.load %arg9[%c0_26, %c0_27] : memref<8x128xf32, #tpu.memory_space<vmem>>, vector<8x128xf32>
    tpu.vector_store %arg9[%c0_26, %c0_27], %41 {strides = array<i32>} : memref<8x128xf32, #tpu.memory_space<vmem>>, vector<8x128xf32>,
    return
  }
  func.func @transform_0(%arg0: i32) -> (i32, i32) {
    %c0_i32 = arith.constant 0 : i32
    %c0_i32_0 = arith.constant 0 : i32
    return %arg0, %c0_i32 : i32, i32
  }
  func.func @transform_1(%arg0: i32) -> (i32, i32) {
    %c0_i32 = arith.constant 0 : i32
    %c0_i32_0 = arith.constant 0 : i32
    %c0_i32_1 = arith.constant 0 : i32
    return %c0_i32, %c0_i32_0 : i32, i32
  }
  func.func @transform_2(%arg0: i32) -> (i32, i32) {
    %c0_i32 = arith.constant 0 : i32
    %c0_i32_0 = arith.constant 0 : i32
    %c0_i32_1 = arith.constant 0 : i32
    return %c0_i32, %c0_i32_0 : i32, i32
  }
  func.func @transform_3(%arg0: i32) -> (i32, i32) {
    %c0_i32 = arith.constant 0 : i32
    %c0_i32_0 = arith.constant 0 : i32
    %c0_i32_1 = arith.constant 0 : i32
    return %c0_i32, %c0_i32_0 : i32, i32
  }
  func.func @transform_4(%arg0: i32) -> (i32, i32) {
    %c0_i32 = arith.constant 0 : i32
    %c0_i32_0 = arith.constant 0 : i32
    %c0_i32_1 = arith.constant 0 : i32
    return %c0_i32, %c0_i32_0 : i32, i32
  }
  func.func @transform_5(%arg0: i32) -> (i32, i32) {
    %c0_i32 = arith.constant 0 : i32
    %c0_i32_0 = arith.constant 0 : i32
    %c0_i32_1 = arith.constant 0 : i32
    return %c0_i32, %c0_i32_0 : i32, i32
  }
  func.func @transform_6(%arg0: i32) -> (i32, i32) {
    %c0_i32 = arith.constant 0 : i32
    %c0_i32_0 = arith.constant 0 : i32
    %c0_i32_1 = arith.constant 0 : i32
    return %c0_i32, %c0_i32_0 : i32, i32
  }
  func.func @transform_7(%arg0: i32) -> (i32, i32) {
    %c0_i32 = arith.constant 0 : i32
    %c0_i32_0 = arith.constant 0 : i32
    %c0_i32_1 = arith.constant 0 : i32
    return %c0_i32, %c0_i32_0 : i32, i32
  }
  func.func @transform_8(%arg0: i32) -> (i32, i32) {
    %c0_i32 = arith.constant 0 : i32
    %c0_i32_0 = arith.constant 0 : i32
    return %arg0, %c0_i32 : i32, i32
  }
}

</mosaic_0001>

<llo_original>
// kernel: simple_dqn_forward.1
$region0: #{simple_dqn_forward.1}
  #allocation0 [shape = 'u32[]', space=smem, size = 0x4, offset = 0x4, fixed_abs, tag = 'smem constant byte address 0x4 - core index']
  #allocation1 [shape = 'u32[144,128]{1,0:T(1,128)}', space=vmem, size = 0x12000, scoped, tag = 'internal scratch']
  %s0 = inlined_call_operand.vmem [shape: f32[8,1024], index: 0, kind: input, shape index: {}]
  %s1 = inlined_call_operand.vmem [shape: bf16[1024,1024], index: 1, kind: input, shape index: {}]
  %s2 = inlined_call_operand.vmem [shape: f32[1,1024], index: 2, kind: input, shape index: {}]
  %s3 = inlined_call_operand.vmem [shape: bf16[1024,512], index: 3, kind: input, shape index: {}]
  %s4 = inlined_call_operand.vmem [shape: f32[1,512], index: 4, kind: input, shape index: {}]
  %s5 = inlined_call_operand.vmem [shape: bf16[512,256], index: 5, kind: input, shape index: {}]
  %s6 = inlined_call_operand.vmem [shape: f32[1,256], index: 6, kind: input, shape index: {}]
  %s7 = inlined_call_operand.vmem [shape: bf16[256,128], index: 7, kind: input, shape index: {}]
  %s8 = inlined_call_operand.vmem [shape: f32[8,128], index: 8, kind: output, shape index: {}]
  %s9 = sld [smem:[#allocation0]]
  $region42: #{simple_dqn_forward.1} parent=0
    _
  %s11 = ssub.s32 1, %s9
  %s12 = scalar_select 0, %s11, %s9
  // Predicated region
  $region2: #{simple_dqn_forward.1} parent=0 // pred_check
    _
  $region3: #{simple_dqn_forward.1} parent=0 // pred_check_branch
    %14 = sbr.rel (0) target = $region5
  $region4: #{simple_dqn_forward.1} parent=0 // pred_region
    _
  $region5: #{simple_dqn_forward.1} parent=0 // pred_fallthru
    _
  // Predicated region
  $region6: #{simple_dqn_forward.1} parent=0 // pred_check
    _
  $region7: #{simple_dqn_forward.1} parent=0 // pred_check_branch
    %16 = sbr.rel (0) target = $region9
  $region8: #{simple_dqn_forward.1} parent=0 // pred_region
    _
  $region9: #{simple_dqn_forward.1} parent=0 // pred_fallthru
    _
  // Predicated region
  $region10: #{simple_dqn_forward.1} parent=0 // pred_check
    _
  $region11: #{simple_dqn_forward.1} parent=0 // pred_check_branch
    %18 = sbr.rel (0) target = $region13
  $region12: #{simple_dqn_forward.1} parent=0 // pred_region
    _
  $region13: #{simple_dqn_forward.1} parent=0 // pred_fallthru
    _
  // Predicated region
  $region14: #{simple_dqn_forward.1} parent=0 // pred_check
    _
  $region15: #{simple_dqn_forward.1} parent=0 // pred_check_branch
    %20 = sbr.rel (0) target = $region17
  $region16: #{simple_dqn_forward.1} parent=0 // pred_region
    _
  $region17: #{simple_dqn_forward.1} parent=0 // pred_fallthru
    _
  // Predicated region
  $region18: #{simple_dqn_forward.1} parent=0 // pred_check
    _
  $region19: #{simple_dqn_forward.1} parent=0 // pred_check_branch
    %22 = sbr.rel (0) target = $region21
  $region20: #{simple_dqn_forward.1} parent=0 // pred_region
    _
  $region21: #{simple_dqn_forward.1} parent=0 // pred_fallthru
    _
  // Predicated region
  $region22: #{simple_dqn_forward.1} parent=0 // pred_check
    _
  $region23: #{simple_dqn_forward.1} parent=0 // pred_check_branch
    %24 = sbr.rel (0) target = $region25
  $region24: #{simple_dqn_forward.1} parent=0 // pred_region
    _
  $region25: #{simple_dqn_forward.1} parent=0 // pred_fallthru
    _
  // Predicated region
  $region26: #{simple_dqn_forward.1} parent=0 // pred_check
    _
  $region27: #{simple_dqn_forward.1} parent=0 // pred_check_branch
    %26 = sbr.rel (0) target = $region29
  $region28: #{simple_dqn_forward.1} parent=0 // pred_region
    _
  $region29: #{simple_dqn_forward.1} parent=0 // pred_fallthru
    _
  // Predicated region
  $region30: #{simple_dqn_forward.1} parent=0 // pred_check
    _
  $region31: #{simple_dqn_forward.1} parent=0 // pred_check_branch
    %28 = sbr.rel (0) target = $region33
  $region32: #{simple_dqn_forward.1} parent=0 // pred_region
    _
  $region33: #{simple_dqn_forward.1} parent=0 // pred_fallthru
    _
  %v30 = vld [vmem:[%s0] sm:$0xff]
  %v31 = vld [vmem:[%s0 + $0x8] sm:$0xff]
  %v32 = vld [vmem:[%s0 + $0x10] sm:$0xff]
  %v33 = vld [vmem:[%s0 + $0x18] sm:$0xff]
  %v34 = vld [vmem:[%s0 + $0x20] sm:$0xff]
  %v35 = vld [vmem:[%s0 + $0x28] sm:$0xff]
  %v36 = vld [vmem:[%s0 + $0x30] sm:$0xff]
  %v37 = vld [vmem:[%s0 + $0x38] sm:$0xff]
  %v38 = vlog2.pop %v30
  %v39 = vmul.f32 %v38, 0.6931472
  %v40 = vlog2.pop %v31
  %v41 = vmul.f32 %v40, 0.6931472
  %v42 = vlog2.pop %v32
  %v43 = vmul.f32 %v42, 0.6931472
  %v44 = vlog2.pop %v33
  %v45 = vmul.f32 %v44, 0.6931472
  %v46 = vlog2.pop %v34
  %v47 = vmul.f32 %v46, 0.6931472
  %v48 = vlog2.pop %v35
  %v49 = vmul.f32 %v48, 0.6931472
  %v50 = vlog2.pop %v36
  %v51 = vmul.f32 %v50, 0.6931472
  %v52 = vlog2.pop %v37
  %v53 = vmul.f32 %v52, 0.6931472
  %v54 = vrcp.pop 0.6931472
  %v55 = vmul.f32 %v39, %v54
  %v56 = vmul.f32 %v41, %v54
  %v57 = vmul.f32 %v43, %v54
  %v58 = vmul.f32 %v45, %v54
  %v59 = vmul.f32 %v47, %v54
  %v60 = vmul.f32 %v49, %v54
  %v61 = vmul.f32 %v51, %v54
  %v62 = vmul.f32 %v53, %v54
  %vm63 = vcmp.ne.f32.partialorder %v55, %v55
  %vm64 = vcmp.ne.f32.partialorder %v56, %v56
  %vm65 = vcmp.ne.f32.partialorder %v57, %v57
  %vm66 = vcmp.ne.f32.partialorder %v58, %v58
  %vm67 = vcmp.ne.f32.partialorder %v59, %v59
  %vm68 = vcmp.ne.f32.partialorder %v60, %v60
  %vm69 = vcmp.ne.f32.partialorder %v61, %v61
  %vm70 = vcmp.ne.f32.partialorder %v62, %v62
  %vm71 = vcmp.eq.f32.partialorder %v55, -inf
  %vm72 = vcmp.eq.f32.partialorder %v56, -inf
  %vm73 = vcmp.eq.f32.partialorder %v57, -inf
  %vm74 = vcmp.eq.f32.partialorder %v58, -inf
  %vm75 = vcmp.eq.f32.partialorder %v59, -inf
  %vm76 = vcmp.eq.f32.partialorder %v60, -inf
  %vm77 = vcmp.eq.f32.partialorder %v61, -inf
  %vm78 = vcmp.eq.f32.partialorder %v62, -inf
  %vm79 = vmor %vm63, %vm71
  %vm80 = vmor %vm64, %vm72
  %vm81 = vmor %vm65, %vm73
  %vm82 = vmor %vm66, %vm74
  %vm83 = vmor %vm67, %vm75
  %vm84 = vmor %vm68, %vm76
  %vm85 = vmor %vm69, %vm77
  %vm86 = vmor %vm70, %vm78
  %v87 = vsel %vm79, 0.0, %v55
  %v88 = vsel %vm80, 0.0, %v56
  %v89 = vsel %vm81, 0.0, %v57
  %v90 = vsel %vm82, 0.0, %v58
  %v91 = vsel %vm83, 0.0, %v59
  %v92 = vsel %vm84, 0.0, %v60
  %v93 = vsel %vm85, 0.0, %v61
  %v94 = vsel %vm86, 0.0, %v62
  %vm95 = vcmp.eq.f32.partialorder %v87, inf
  %vm96 = vcmp.eq.f32.partialorder %v88, inf
  %vm97 = vcmp.eq.f32.partialorder %v89, inf
  %vm98 = vcmp.eq.f32.partialorder %v90, inf
  %vm99 = vcmp.eq.f32.partialorder %v91, inf
  %vm100 = vcmp.eq.f32.partialorder %v92, inf
  %vm101 = vcmp.eq.f32.partialorder %v93, inf
  %vm102 = vcmp.eq.f32.partialorder %v94, inf
  %v103 = vsel %vm95, 3.4028235e+38, %v87
  %v104 = vsel %vm96, 3.4028235e+38, %v88
  %v105 = vsel %vm97, 3.4028235e+38, %v89
  %v106 = vsel %vm98, 3.4028235e+38, %v90
  %v107 = vsel %vm99, 3.4028235e+38, %v91
  %v108 = vsel %vm100, 3.4028235e+38, %v92
  %v109 = vsel %vm101, 3.4028235e+38, %v93
  %v110 = vsel %vm102, 3.4028235e+38, %v94
  %v111 = vpack.c.bf16 %v103, %v103
  %v112 = vpack.c.bf16 %v104, %v104
  %v113 = vpack.c.bf16 %v105, %v105
  %v114 = vpack.c.bf16 %v106, %v106
  %v115 = vpack.c.bf16 %v107, %v107
  %v116 = vpack.c.bf16 %v108, %v108
  %v117 = vpack.c.bf16 %v109, %v109
  %v118 = vpack.c.bf16 %v110, %v110
  %v119 = vld [vmem:[%s1] sm:$0xff]
  %v120 = vld [vmem:[%s1 + $0x8] sm:$0xff]
  %v121 = vld [vmem:[%s1 + $0x10] sm:$0xff]
  %v122 = vld [vmem:[%s1 + $0x18] sm:$0xff]
  %v123 = vld [vmem:[%s1 + $0x20] sm:$0xff]
  %v124 = vld [vmem:[%s1 + $0x28] sm:$0xff]
  %v125 = vld [vmem:[%s1 + $0x30] sm:$0xff]
  %v126 = vld [vmem:[%s1 + $0x38] sm:$0xff]
  %v127 = vld [vmem:[%s1 + $0x40] sm:$0xff]
  %v128 = vld [vmem:[%s1 + $0x48] sm:$0xff]
  %v129 = vld [vmem:[%s1 + $0x50] sm:$0xff]
  %v130 = vld [vmem:[%s1 + $0x58] sm:$0xff]
  %v131 = vld [vmem:[%s1 + $0x60] sm:$0xff]
  %v132 = vld [vmem:[%s1 + $0x68] sm:$0xff]
  %v133 = vld [vmem:[%s1 + $0x70] sm:$0xff]
  %v134 = vld [vmem:[%s1 + $0x78] sm:$0xff]
  %v135 = vld [vmem:[%s1 + $0x80] sm:$0xff]
  %v136 = vld [vmem:[%s1 + $0x88] sm:$0xff]
  %v137 = vld [vmem:[%s1 + $0x90] sm:$0xff]
  %v138 = vld [vmem:[%s1 + $0x98] sm:$0xff]
  %v139 = vld [vmem:[%s1 + $0xa0] sm:$0xff]
  %v140 = vld [vmem:[%s1 + $0xa8] sm:$0xff]
  %v141 = vld [vmem:[%s1 + $0xb0] sm:$0xff]
  %v142 = vld [vmem:[%s1 + $0xb8] sm:$0xff]
  %v143 = vld [vmem:[%s1 + $0xc0] sm:$0xff]
  %v144 = vld [vmem:[%s1 + $0xc8] sm:$0xff]
  %v145 = vld [vmem:[%s1 + $0xd0] sm:$0xff]
  %v146 = vld [vmem:[%s1 + $0xd8] sm:$0xff]
  %v147 = vld [vmem:[%s1 + $0xe0] sm:$0xff]
  %v148 = vld [vmem:[%s1 + $0xe8] sm:$0xff]
  %v149 = vld [vmem:[%s1 + $0xf0] sm:$0xff]
  %v150 = vld [vmem:[%s1 + $0xf8] sm:$0xff]
  %v151 = vld [vmem:[%s1 + $0x100] sm:$0xff]
  %v152 = vld [vmem:[%s1 + $0x108] sm:$0xff]
  %v153 = vld [vmem:[%s1 + $0x110] sm:$0xff]
  %v154 = vld [vmem:[%s1 + $0x118] sm:$0xff]
  %v155 = vld [vmem:[%s1 + $0x120] sm:$0xff]
  %v156 = vld [vmem:[%s1 + $0x128] sm:$0xff]
  %v157 = vld [vmem:[%s1 + $0x130] sm:$0xff]
  %v158 = vld [vmem:[%s1 + $0x138] sm:$0xff]
  %v159 = vld [vmem:[%s1 + $0x140] sm:$0xff]
  %v160 = vld [vmem:[%s1 + $0x148] sm:$0xff]
  %v161 = vld [vmem:[%s1 + $0x150] sm:$0xff]
  %v162 = vld [vmem:[%s1 + $0x158] sm:$0xff]
  %v163 = vld [vmem:[%s1 + $0x160] sm:$0xff]
  %v164 = vld [vmem:[%s1 + $0x168] sm:$0xff]
  %v165 = vld [vmem:[%s1 + $0x170] sm:$0xff]
  %v166 = vld [vmem:[%s1 + $0x178] sm:$0xff]
  %v167 = vld [vmem:[%s1 + $0x180] sm:$0xff]
  %v168 = vld [vmem:[%s1 + $0x188] sm:$0xff]
  %v169 = vld [vmem:[%s1 + $0x190] sm:$0xff]
  %v170 = vld [vmem:[%s1 + $0x198] sm:$0xff]
  %v171 = vld [vmem:[%s1 + $0x1a0] sm:$0xff]
  %v172 = vld [vmem:[%s1 + $0x1a8] sm:$0xff]
  %v173 = vld [vmem:[%s1 + $0x1b0] sm:$0xff]
  %v174 = vld [vmem:[%s1 + $0x1b8] sm:$0xff]
  %v175 = vld [vmem:[%s1 + $0x1c0] sm:$0xff]
  %v176 = vld [vmem:[%s1 + $0x1c8] sm:$0xff]
  %v177 = vld [vmem:[%s1 + $0x1d0] sm:$0xff]
  %v178 = vld [vmem:[%s1 + $0x1d8] sm:$0xff]
  %v179 = vld [vmem:[%s1 + $0x1e0] sm:$0xff]
  %v180 = vld [vmem:[%s1 + $0x1e8] sm:$0xff]
  %v181 = vld [vmem:[%s1 + $0x1f0] sm:$0xff]
  %v182 = vld [vmem:[%s1 + $0x1f8] sm:$0xff]
  %v183 = vld [vmem:[%s1 + $0x200] sm:$0xff]
  %v184 = vld [vmem:[%s1 + $0x208] sm:$0xff]
  %v185 = vld [vmem:[%s1 + $0x210] sm:$0xff]
  %v186 = vld [vmem:[%s1 + $0x218] sm:$0xff]
  %v187 = vld [vmem:[%s1 + $0x220] sm:$0xff]
  %v188 = vld [vmem:[%s1 + $0x228] sm:$0xff]
  %v189 = vld [vmem:[%s1 + $0x230] sm:$0xff]
  %v190 = vld [vmem:[%s1 + $0x238] sm:$0xff]
  %v191 = vld [vmem:[%s1 + $0x240] sm:$0xff]
  %v192 = vld [vmem:[%s1 + $0x248] sm:$0xff]
  %v193 = vld [vmem:[%s1 + $0x250] sm:$0xff]
  %v194 = vld [vmem:[%s1 + $0x258] sm:$0xff]
  %v195 = vld [vmem:[%s1 + $0x260] sm:$0xff]
  %v196 = vld [vmem:[%s1 + $0x268] sm:$0xff]
  %v197 = vld [vmem:[%s1 + $0x270] sm:$0xff]
  %v198 = vld [vmem:[%s1 + $0x278] sm:$0xff]
  %v199 = vld [vmem:[%s1 + $0x280] sm:$0xff]
  %v200 = vld [vmem:[%s1 + $0x288] sm:$0xff]
  %v201 = vld [vmem:[%s1 + $0x290] sm:$0xff]
  %v202 = vld [vmem:[%s1 + $0x298] sm:$0xff]
  %v203 = vld [vmem:[%s1 + $0x2a0] sm:$0xff]
  %v204 = vld [vmem:[%s1 + $0x2a8] sm:$0xff]
  %v205 = vld [vmem:[%s1 + $0x2b0] sm:$0xff]
  %v206 = vld [vmem:[%s1 + $0x2b8] sm:$0xff]
  %v207 = vld [vmem:[%s1 + $0x2c0] sm:$0xff]
  %v208 = vld [vmem:[%s1 + $0x2c8] sm:$0xff]
  %v209 = vld [vmem:[%s1 + $0x2d0] sm:$0xff]
  %v210 = vld [vmem:[%s1 + $0x2d8] sm:$0xff]
  %v211 = vld [vmem:[%s1 + $0x2e0] sm:$0xff]
  %v212 = vld [vmem:[%s1 + $0x2e8] sm:$0xff]
  %v213 = vld [vmem:[%s1 + $0x2f0] sm:$0xff]
  %v214 = vld [vmem:[%s1 + $0x2f8] sm:$0xff]
  %v215 = vld [vmem:[%s1 + $0x300] sm:$0xff]
  %v216 = vld [vmem:[%s1 + $0x308] sm:$0xff]
  %v217 = vld [vmem:[%s1 + $0x310] sm:$0xff]
  %v218 = vld [vmem:[%s1 + $0x318] sm:$0xff]
  %v219 = vld [vmem:[%s1 + $0x320] sm:$0xff]
  %v220 = vld [vmem:[%s1 + $0x328] sm:$0xff]
  %v221 = vld [vmem:[%s1 + $0x330] sm:$0xff]
  %v222 = vld [vmem:[%s1 + $0x338] sm:$0xff]
  %v223 = vld [vmem:[%s1 + $0x340] sm:$0xff]
  %v224 = vld [vmem:[%s1 + $0x348] sm:$0xff]
  %v225 = vld [vmem:[%s1 + $0x350] sm:$0xff]
  %v226 = vld [vmem:[%s1 + $0x358] sm:$0xff]
  %v227 = vld [vmem:[%s1 + $0x360] sm:$0xff]
  %v228 = vld [vmem:[%s1 + $0x368] sm:$0xff]
  %v229 = vld [vmem:[%s1 + $0x370] sm:$0xff]
  %v230 = vld [vmem:[%s1 + $0x378] sm:$0xff]
  %v231 = vld [vmem:[%s1 + $0x380] sm:$0xff]
  %v232 = vld [vmem:[%s1 + $0x388] sm:$0xff]
  %v233 = vld [vmem:[%s1 + $0x390] sm:$0xff]
  %v234 = vld [vmem:[%s1 + $0x398] sm:$0xff]
  %v235 = vld [vmem:[%s1 + $0x3a0] sm:$0xff]
  %v236 = vld [vmem:[%s1 + $0x3a8] sm:$0xff]
  %v237 = vld [vmem:[%s1 + $0x3b0] sm:$0xff]
  %v238 = vld [vmem:[%s1 + $0x3b8] sm:$0xff]
  %v239 = vld [vmem:[%s1 + $0x3c0] sm:$0xff]
  %v240 = vld [vmem:[%s1 + $0x3c8] sm:$0xff]
  %v241 = vld [vmem:[%s1 + $0x3d0] sm:$0xff]
  %v242 = vld [vmem:[%s1 + $0x3d8] sm:$0xff]
  %v243 = vld [vmem:[%s1 + $0x3e0] sm:$0xff]
  %v244 = vld [vmem:[%s1 + $0x3e8] sm:$0xff]
  %v245 = vld [vmem:[%s1 + $0x3f0] sm:$0xff]
  %v246 = vld [vmem:[%s1 + $0x3f8] sm:$0xff]
  %v247 = vld [vmem:[%s1 + $0x400] sm:$0xff]
  %v248 = vld [vmem:[%s1 + $0x408] sm:$0xff]
  %v249 = vld [vmem:[%s1 + $0x410] sm:$0xff]
  %v250 = vld [vmem:[%s1 + $0x418] sm:$0xff]
  %v251 = vld [vmem:[%s1 + $0x420] sm:$0xff]
  %v252 = vld [vmem:[%s1 + $0x428] sm:$0xff]
  %v253 = vld [vmem:[%s1 + $0x430] sm:$0xff]
  %v254 = vld [vmem:[%s1 + $0x438] sm:$0xff]
  %v255 = vld [vmem:[%s1 + $0x440] sm:$0xff]
  %v256 = vld [vmem:[%s1 + $0x448] sm:$0xff]
  %v257 = vld [vmem:[%s1 + $0x450] sm:$0xff]
  %v258 = vld [vmem:[%s1 + $0x458] sm:$0xff]
  %v259 = vld [vmem:[%s1 + $0x460] sm:$0xff]
  %v260 = vld [vmem:[%s1 + $0x468] sm:$0xff]
  %v261 = vld [vmem:[%s1 + $0x470] sm:$0xff]
  %v262 = vld [vmem:[%s1 + $0x478] sm:$0xff]
  %v263 = vld [vmem:[%s1 + $0x480] sm:$0xff]
  %v264 = vld [vmem:[%s1 + $0x488] sm:$0xff]
  %v265 = vld [vmem:[%s1 + $0x490] sm:$0xff]
  %v266 = vld [vmem:[%s1 + $0x498] sm:$0xff]
  %v267 = vld [vmem:[%s1 + $0x4a0] sm:$0xff]
  %v268 = vld [vmem:[%s1 + $0x4a8] sm:$0xff]
  %v269 = vld [vmem:[%s1 + $0x4b0] sm:$0xff]
  %v270 = vld [vmem:[%s1 + $0x4b8] sm:$0xff]
  %v271 = vld [vmem:[%s1 + $0x4c0] sm:$0xff]
  %v272 = vld [vmem:[%s1 + $0x4c8] sm:$0xff]
  %v273 = vld [vmem:[%s1 + $0x4d0] sm:$0xff]
  %v274 = vld [vmem:[%s1 + $0x4d8] sm:$0xff]
  %v275 = vld [vmem:[%s1 + $0x4e0] sm:$0xff]
  %v276 = vld [vmem:[%s1 + $0x4e8] sm:$0xff]
  %v277 = vld [vmem:[%s1 + $0x4f0] sm:$0xff]
  %v278 = vld [vmem:[%s1 + $0x4f8] sm:$0xff]
  %v279 = vld [vmem:[%s1 + $0x500] sm:$0xff]
  %v280 = vld [vmem:[%s1 + $0x508] sm:$0xff]
  %v281 = vld [vmem:[%s1 + $0x510] sm:$0xff]
  %v282 = vld [vmem:[%s1 + $0x518] sm:$0xff]
  %v283 = vld [vmem:[%s1 + $0x520] sm:$0xff]
  %v284 = vld [vmem:[%s1 + $0x528] sm:$0xff]
  %v285 = vld [vmem:[%s1 + $0x530] sm:$0xff]
  %v286 = vld [vmem:[%s1 + $0x538] sm:$0xff]
  %v287 = vld [vmem:[%s1 + $0x540] sm:$0xff]
  %v288 = vld [vmem:[%s1 + $0x548] sm:$0xff]
  %v289 = vld [vmem:[%s1 + $0x550] sm:$0xff]
  %v290 = vld [vmem:[%s1 + $0x558] sm:$0xff]
  %v291 = vld [vmem:[%s1 + $0x560] sm:$0xff]
  %v292 = vld [vmem:[%s1 + $0x568] sm:$0xff]
  %v293 = vld [vmem:[%s1 + $0x570] sm:$0xff]
  %v294 = vld [vmem:[%s1 + $0x578] sm:$0xff]
  %v295 = vld [vmem:[%s1 + $0x580] sm:$0xff]
  %v296 = vld [vmem:[%s1 + $0x588] sm:$0xff]
  %v297 = vld [vmem:[%s1 + $0x590] sm:$0xff]
  %v298 = vld [vmem:[%s1 + $0x598] sm:$0xff]
  %v299 = vld [vmem:[%s1 + $0x5a0] sm:$0xff]
  %v300 = vld [vmem:[%s1 + $0x5a8] sm:$0xff]
  %v301 = vld [vmem:[%s1 + $0x5b0] sm:$0xff]
  %v302 = vld [vmem:[%s1 + $0x5b8] sm:$0xff]
  %v303 = vld [vmem:[%s1 + $0x5c0] sm:$0xff]
  %v304 = vld [vmem:[%s1 + $0x5c8] sm:$0xff]
  %v305 = vld [vmem:[%s1 + $0x5d0] sm:$0xff]
  %v306 = vld [vmem:[%s1 + $0x5d8] sm:$0xff]
  %v307 = vld [vmem:[%s1 + $0x5e0] sm:$0xff]
  %v308 = vld [vmem:[%s1 + $0x5e8] sm:$0xff]
  %v309 = vld [vmem:[%s1 + $0x5f0] sm:$0xff]
  %v310 = vld [vmem:[%s1 + $0x5f8] sm:$0xff]
  %v311 = vld [vmem:[%s1 + $0x600] sm:$0xff]
  %v312 = vld [vmem:[%s1 + $0x608] sm:$0xff]
  %v313 = vld [vmem:[%s1 + $0x610] sm:$0xff]
  %v314 = vld [vmem:[%s1 + $0x618] sm:$0xff]
  %v315 = vld [vmem:[%s1 + $0x620] sm:$0xff]
  %v316 = vld [vmem:[%s1 + $0x628] sm:$0xff]
  %v317 = vld [vmem:[%s1 + $0x630] sm:$0xff]
  %v318 = vld [vmem:[%s1 + $0x638] sm:$0xff]
  %v319 = vld [vmem:[%s1 + $0x640] sm:$0xff]
  %v320 = vld [vmem:[%s1 + $0x648] sm:$0xff]
  %v321 = vld [vmem:[%s1 + $0x650] sm:$0xff]
  %v322 = vld [vmem:[%s1 + $0x658] sm:$0xff]
  %v323 = vld [vmem:[%s1 + $0x660] sm:$0xff]
  %v324 = vld [vmem:[%s1 + $0x668] sm:$0xff]
  %v325 = vld [vmem:[%s1 + $0x670] sm:$0xff]
  %v326 = vld [vmem:[%s1 + $0x678] sm:$0xff]
  %v327 = vld [vmem:[%s1 + $0x680] sm:$0xff]
  %v328 = vld [vmem:[%s1 + $0x688] sm:$0xff]
  %v329 = vld [vmem:[%s1 + $0x690] sm:$0xff]
  %v330 = vld [vmem:[%s1 + $0x698] sm:$0xff]
  %v331 = vld [vmem:[%s1 + $0x6a0] sm:$0xff]
  %v332 = vld [vmem:[%s1 + $0x6a8] sm:$0xff]
  %v333 = vld [vmem:[%s1 + $0x6b0] sm:$0xff]
  %v334 = vld [vmem:[%s1 + $0x6b8] sm:$0xff]
  %v335 = vld [vmem:[%s1 + $0x6c0] sm:$0xff]
  %v336 = vld [vmem:[%s1 + $0x6c8] sm:$0xff]
  %v337 = vld [vmem:[%s1 + $0x6d0] sm:$0xff]
  %v338 = vld [vmem:[%s1 + $0x6d8] sm:$0xff]
  %v339 = vld [vmem:[%s1 + $0x6e0] sm:$0xff]
  %v340 = vld [vmem:[%s1 + $0x6e8] sm:$0xff]
  %v341 = vld [vmem:[%s1 + $0x6f0] sm:$0xff]
  %v342 = vld [vmem:[%s1 + $0x6f8] sm:$0xff]
  %v343 = vld [vmem:[%s1 + $0x700] sm:$0xff]
  %v344 = vld [vmem:[%s1 + $0x708] sm:$0xff]
  %v345 = vld [vmem:[%s1 + $0x710] sm:$0xff]
  %v346 = vld [vmem:[%s1 + $0x718] sm:$0xff]
  %v347 = vld [vmem:[%s1 + $0x720] sm:$0xff]
  %v348 = vld [vmem:[%s1 + $0x728] sm:$0xff]
  %v349 = vld [vmem:[%s1 + $0x730] sm:$0xff]
  %v350 = vld [vmem:[%s1 + $0x738] sm:$0xff]
  %v351 = vld [vmem:[%s1 + $0x740] sm:$0xff]
  %v352 = vld [vmem:[%s1 + $0x748] sm:$0xff]
  %v353 = vld [vmem:[%s1 + $0x750] sm:$0xff]
  %v354 = vld [vmem:[%s1 + $0x758] sm:$0xff]
  %v355 = vld [vmem:[%s1 + $0x760] sm:$0xff]
  %v356 = vld [vmem:[%s1 + $0x768] sm:$0xff]
  %v357 = vld [vmem:[%s1 + $0x770] sm:$0xff]
  %v358 = vld [vmem:[%s1 + $0x778] sm:$0xff]
  %v359 = vld [vmem:[%s1 + $0x780] sm:$0xff]
  %v360 = vld [vmem:[%s1 + $0x788] sm:$0xff]
  %v361 = vld [vmem:[%s1 + $0x790] sm:$0xff]
  %v362 = vld [vmem:[%s1 + $0x798] sm:$0xff]
  %v363 = vld [vmem:[%s1 + $0x7a0] sm:$0xff]
  %v364 = vld [vmem:[%s1 + $0x7a8] sm:$0xff]
  %v365 = vld [vmem:[%s1 + $0x7b0] sm:$0xff]
  %v366 = vld [vmem:[%s1 + $0x7b8] sm:$0xff]
  %v367 = vld [vmem:[%s1 + $0x7c0] sm:$0xff]
  %v368 = vld [vmem:[%s1 + $0x7c8] sm:$0xff]
  %v369 = vld [vmem:[%s1 + $0x7d0] sm:$0xff]
  %v370 = vld [vmem:[%s1 + $0x7d8] sm:$0xff]
  %v371 = vld [vmem:[%s1 + $0x7e0] sm:$0xff]
  %v372 = vld [vmem:[%s1 + $0x7e8] sm:$0xff]
  %v373 = vld [vmem:[%s1 + $0x7f0] sm:$0xff]
  %v374 = vld [vmem:[%s1 + $0x7f8] sm:$0xff]
  %v375 = vld [vmem:[%s1 + $0x800] sm:$0xff]
  %v376 = vld [vmem:[%s1 + $0x808] sm:$0xff]
  %v377 = vld [vmem:[%s1 + $0x810] sm:$0xff]
  %v378 = vld [vmem:[%s1 + $0x818] sm:$0xff]
  %v379 = vld [vmem:[%s1 + $0x820] sm:$0xff]
  %v380 = vld [vmem:[%s1 + $0x828] sm:$0xff]
  %v381 = vld [vmem:[%s1 + $0x830] sm:$0xff]
  %v382 = vld [vmem:[%s1 + $0x838] sm:$0xff]
  %v383 = vld [vmem:[%s1 + $0x840] sm:$0xff]
  %v384 = vld [vmem:[%s1 + $0x848] sm:$0xff]
  %v385 = vld [vmem:[%s1 + $0x850] sm:$0xff]
  %v386 = vld [vmem:[%s1 + $0x858] sm:$0xff]
  %v387 = vld [vmem:[%s1 + $0x860] sm:$0xff]
  %v388 = vld [vmem:[%s1 + $0x868] sm:$0xff]
  %v389 = vld [vmem:[%s1 + $0x870] sm:$0xff]
  %v390 = vld [vmem:[%s1 + $0x878] sm:$0xff]
  %v391 = vld [vmem:[%s1 + $0x880] sm:$0xff]
  %v392 = vld [vmem:[%s1 + $0x888] sm:$0xff]
  %v393 = vld [vmem:[%s1 + $0x890] sm:$0xff]
  %v394 = vld [vmem:[%s1 + $0x898] sm:$0xff]
  %v395 = vld [vmem:[%s1 + $0x8a0] sm:$0xff]
  %v396 = vld [vmem:[%s1 + $0x8a8] sm:$0xff]
  %v397 = vld [vmem:[%s1 + $0x8b0] sm:$0xff]
  %v398 = vld [vmem:[%s1 + $0x8b8] sm:$0xff]
  %v399 = vld [vmem:[%s1 + $0x8c0] sm:$0xff]
  %v400 = vld [vmem:[%s1 + $0x8c8] sm:$0xff]
  %v401 = vld [vmem:[%s1 + $0x8d0] sm:$0xff]
  %v402 = vld [vmem:[%s1 + $0x8d8] sm:$0xff]
  %v403 = vld [vmem:[%s1 + $0x8e0] sm:$0xff]
  %v404 = vld [vmem:[%s1 + $0x8e8] sm:$0xff]
  %v405 = vld [vmem:[%s1 + $0x8f0] sm:$0xff]
  %v406 = vld [vmem:[%s1 + $0x8f8] sm:$0xff]
  %v407 = vld [vmem:[%s1 + $0x900] sm:$0xff]
  %v408 = vld [vmem:[%s1 + $0x908] sm:$0xff]
  %v409 = vld [vmem:[%s1 + $0x910] sm:$0xff]
  %v410 = vld [vmem:[%s1 + $0x918] sm:$0xff]
  %v411 = vld [vmem:[%s1 + $0x920] sm:$0xff]
  %v412 = vld [vmem:[%s1 + $0x928] sm:$0xff]
  %v413 = vld [vmem:[%s1 + $0x930] sm:$0xff]
  %v414 = vld [vmem:[%s1 + $0x938] sm:$0xff]
  %v415 = vld [vmem:[%s1 + $0x940] sm:$0xff]
  %v416 = vld [vmem:[%s1 + $0x948] sm:$0xff]
  %v417 = vld [vmem:[%s1 + $0x950] sm:$0xff]
  %v418 = vld [vmem:[%s1 + $0x958] sm:$0xff]
  %v419 = vld [vmem:[%s1 + $0x960] sm:$0xff]
  %v420 = vld [vmem:[%s1 + $0x968] sm:$0xff]
  %v421 = vld [vmem:[%s1 + $0x970] sm:$0xff]
  %v422 = vld [vmem:[%s1 + $0x978] sm:$0xff]
  %v423 = vld [vmem:[%s1 + $0x980] sm:$0xff]
  %v424 = vld [vmem:[%s1 + $0x988] sm:$0xff]
  %v425 = vld [vmem:[%s1 + $0x990] sm:$0xff]
  %v426 = vld [vmem:[%s1 + $0x998] sm:$0xff]
  %v427 = vld [vmem:[%s1 + $0x9a0] sm:$0xff]
  %v428 = vld [vmem:[%s1 + $0x9a8] sm:$0xff]
  %v429 = vld [vmem:[%s1 + $0x9b0] sm:$0xff]
  %v430 = vld [vmem:[%s1 + $0x9b8] sm:$0xff]
  %v431 = vld [vmem:[%s1 + $0x9c0] sm:$0xff]
  %v432 = vld [vmem:[%s1 + $0x9c8] sm:$0xff]
  %v433 = vld [vmem:[%s1 + $0x9d0] sm:$0xff]
  %v434 = vld [vmem:[%s1 + $0x9d8] sm:$0xff]
  %v435 = vld [vmem:[%s1 + $0x9e0] sm:$0xff]
  %v436 = vld [vmem:[%s1 + $0x9e8] sm:$0xff]
  %v437 = vld [vmem:[%s1 + $0x9f0] sm:$0xff]
  %v438 = vld [vmem:[%s1 + $0x9f8] sm:$0xff]
  %v439 = vld [vmem:[%s1 + $0xa00] sm:$0xff]
  %v440 = vld [vmem:[%s1 + $0xa08] sm:$0xff]
  %v441 = vld [vmem:[%s1 + $0xa10] sm:$0xff]
  %v442 = vld [vmem:[%s1 + $0xa18] sm:$0xff]
  %v443 = vld [vmem:[%s1 + $0xa20] sm:$0xff]
  %v444 = vld [vmem:[%s1 + $0xa28] sm:$0xff]
  %v445 = vld [vmem:[%s1 + $0xa30] sm:$0xff]
  %v446 = vld [vmem:[%s1 + $0xa38] sm:$0xff]
  %v447 = vld [vmem:[%s1 + $0xa40] sm:$0xff]
  %v448 = vld [vmem:[%s1 + $0xa48] sm:$0xff]
  %v449 = vld [vmem:[%s1 + $0xa50] sm:$0xff]
  %v450 = vld [vmem:[%s1 + $0xa58] sm:$0xff]
  %v451 = vld [vmem:[%s1 + $0xa60] sm:$0xff]
  %v452 = vld [vmem:[%s1 + $0xa68] sm:$0xff]
  %v453 = vld [vmem:[%s1 + $0xa70] sm:$0xff]
  %v454 = vld [vmem:[%s1 + $0xa78] sm:$0xff]
  %v455 = vld [vmem:[%s1 + $0xa80] sm:$0xff]
  %v456 = vld [vmem:[%s1 + $0xa88] sm:$0xff]
  %v457 = vld [vmem:[%s1 + $0xa90] sm:$0xff]
  %v458 = vld [vmem:[%s1 + $0xa98] sm:$0xff]
  %v459 = vld [vmem:[%s1 + $0xaa0] sm:$0xff]
  %v460 = vld [vmem:[%s1 + $0xaa8] sm:$0xff]
  %v461 = vld [vmem:[%s1 + $0xab0] sm:$0xff]
  %v462 = vld [vmem:[%s1 + $0xab8] sm:$0xff]
  %v463 = vld [vmem:[%s1 + $0xac0] sm:$0xff]
  %v464 = vld [vmem:[%s1 + $0xac8] sm:$0xff]
  %v465 = vld [vmem:[%s1 + $0xad0] sm:$0xff]
  %v466 = vld [vmem:[%s1 + $0xad8] sm:$0xff]
  %v467 = vld [vmem:[%s1 + $0xae0] sm:$0xff]
  %v468 = vld [vmem:[%s1 + $0xae8] sm:$0xff]
  %v469 = vld [vmem:[%s1 + $0xaf0] sm:$0xff]
  %v470 = vld [vmem:[%s1 + $0xaf8] sm:$0xff]
  %v471 = vld [vmem:[%s1 + $0xb00] sm:$0xff]
  %v472 = vld [vmem:[%s1 + $0xb08] sm:$0xff]
  %v473 = vld [vmem:[%s1 + $0xb10] sm:$0xff]
  %v474 = vld [vmem:[%s1 + $0xb18] sm:$0xff]
  %v475 = vld [vmem:[%s1 + $0xb20] sm:$0xff]
  %v476 = vld [vmem:[%s1 + $0xb28] sm:$0xff]
  %v477 = vld [vmem:[%s1 + $0xb30] sm:$0xff]
  %v478 = vld [vmem:[%s1 + $0xb38] sm:$0xff]
  %v479 = vld [vmem:[%s1 + $0xb40] sm:$0xff]
  %v480 = vld [vmem:[%s1 + $0xb48] sm:$0xff]
  %v481 = vld [vmem:[%s1 + $0xb50] sm:$0xff]
  %v482 = vld [vmem:[%s1 + $0xb58] sm:$0xff]
  %v483 = vld [vmem:[%s1 + $0xb60] sm:$0xff]
  %v484 = vld [vmem:[%s1 + $0xb68] sm:$0xff]
  %v485 = vld [vmem:[%s1 + $0xb70] sm:$0xff]
  %v486 = vld [vmem:[%s1 + $0xb78] sm:$0xff]
  %v487 = vld [vmem:[%s1 + $0xb80] sm:$0xff]
  %v488 = vld [vmem:[%s1 + $0xb88] sm:$0xff]
  %v489 = vld [vmem:[%s1 + $0xb90] sm:$0xff]
  %v490 = vld [vmem:[%s1 + $0xb98] sm:$0xff]
  %v491 = vld [vmem:[%s1 + $0xba0] sm:$0xff]
  %v492 = vld [vmem:[%s1 + $0xba8] sm:$0xff]
  %v493 = vld [vmem:[%s1 + $0xbb0] sm:$0xff]
  %v494 = vld [vmem:[%s1 + $0xbb8] sm:$0xff]
  %v495 = vld [vmem:[%s1 + $0xbc0] sm:$0xff]
  %v496 = vld [vmem:[%s1 + $0xbc8] sm:$0xff]
  %v497 = vld [vmem:[%s1 + $0xbd0] sm:$0xff]
  %v498 = vld [vmem:[%s1 + $0xbd8] sm:$0xff]
  %v499 = vld [vmem:[%s1 + $0xbe0] sm:$0xff]
  %v500 = vld [vmem:[%s1 + $0xbe8] sm:$0xff]
  %v501 = vld [vmem:[%s1 + $0xbf0] sm:$0xff]
  %v502 = vld [vmem:[%s1 + $0xbf8] sm:$0xff]
  %v503 = vld [vmem:[%s1 + $0xc00] sm:$0xff]
  %v504 = vld [vmem:[%s1 + $0xc08] sm:$0xff]
  %v505 = vld [vmem:[%s1 + $0xc10] sm:$0xff]
  %v506 = vld [vmem:[%s1 + $0xc18] sm:$0xff]
  %v507 = vld [vmem:[%s1 + $0xc20] sm:$0xff]
  %v508 = vld [vmem:[%s1 + $0xc28] sm:$0xff]
  %v509 = vld [vmem:[%s1 + $0xc30] sm:$0xff]
  %v510 = vld [vmem:[%s1 + $0xc38] sm:$0xff]
  %v511 = vld [vmem:[%s1 + $0xc40] sm:$0xff]
  %v512 = vld [vmem:[%s1 + $0xc48] sm:$0xff]
  %v513 = vld [vmem:[%s1 + $0xc50] sm:$0xff]
  %v514 = vld [vmem:[%s1 + $0xc58] sm:$0xff]
  %v515 = vld [vmem:[%s1 + $0xc60] sm:$0xff]
  %v516 = vld [vmem:[%s1 + $0xc68] sm:$0xff]
  %v517 = vld [vmem:[%s1 + $0xc70] sm:$0xff]
  %v518 = vld [vmem:[%s1 + $0xc78] sm:$0xff]
  %v519 = vld [vmem:[%s1 + $0xc80] sm:$0xff]
  %v520 = vld [vmem:[%s1 + $0xc88] sm:$0xff]
  %v521 = vld [vmem:[%s1 + $0xc90] sm:$0xff]
  %v522 = vld [vmem:[%s1 + $0xc98] sm:$0xff]
  %v523 = vld [vmem:[%s1 + $0xca0] sm:$0xff]
  %v524 = vld [vmem:[%s1 + $0xca8] sm:$0xff]
  %v525 = vld [vmem:[%s1 + $0xcb0] sm:$0xff]
  %v526 = vld [vmem:[%s1 + $0xcb8] sm:$0xff]
  %v527 = vld [vmem:[%s1 + $0xcc0] sm:$0xff]
  %v528 = vld [vmem:[%s1 + $0xcc8] sm:$0xff]
  %v529 = vld [vmem:[%s1 + $0xcd0] sm:$0xff]
  %v530 = vld [vmem:[%s1 + $0xcd8] sm:$0xff]
  %v531 = vld [vmem:[%s1 + $0xce0] sm:$0xff]
  %v532 = vld [vmem:[%s1 + $0xce8] sm:$0xff]
  %v533 = vld [vmem:[%s1 + $0xcf0] sm:$0xff]
  %v534 = vld [vmem:[%s1 + $0xcf8] sm:$0xff]
  %v535 = vld [vmem:[%s1 + $0xd00] sm:$0xff]
  %v536 = vld [vmem:[%s1 + $0xd08] sm:$0xff]
  %v537 = vld [vmem:[%s1 + $0xd10] sm:$0xff]
  %v538 = vld [vmem:[%s1 + $0xd18] sm:$0xff]
  %v539 = vld [vmem:[%s1 + $0xd20] sm:$0xff]
  %v540 = vld [vmem:[%s1 + $0xd28] sm:$0xff]
  %v541 = vld [vmem:[%s1 + $0xd30] sm:$0xff]
  %v542 = vld [vmem:[%s1 + $0xd38] sm:$0xff]
  %v543 = vld [vmem:[%s1 + $0xd40] sm:$0xff]
  %v544 = vld [vmem:[%s1 + $0xd48] sm:$0xff]
  %v545 = vld [vmem:[%s1 + $0xd50] sm:$0xff]
  %v546 = vld [vmem:[%s1 + $0xd58] sm:$0xff]
  %v547 = vld [vmem:[%s1 + $0xd60] sm:$0xff]
  %v548 = vld [vmem:[%s1 + $0xd68] sm:$0xff]
  %v549 = vld [vmem:[%s1 + $0xd70] sm:$0xff]
  %v550 = vld [vmem:[%s1 + $0xd78] sm:$0xff]
  %v551 = vld [vmem:[%s1 + $0xd80] sm:$0xff]
  %v552 = vld [vmem:[%s1 + $0xd88] sm:$0xff]
  %v553 = vld [vmem:[%s1 + $0xd90] sm:$0xff]
  %v554 = vld [vmem:[%s1 + $0xd98] sm:$0xff]
  %v555 = vld [vmem:[%s1 + $0xda0] sm:$0xff]
  %v556 = vld [vmem:[%s1 + $0xda8] sm:$0xff]
  %v557 = vld [vmem:[%s1 + $0xdb0] sm:$0xff]
  %v558 = vld [vmem:[%s1 + $0xdb8] sm:$0xff]
  %v559 = vld [vmem:[%s1 + $0xdc0] sm:$0xff]
  %v560 = vld [vmem:[%s1 + $0xdc8] sm:$0xff]
  %v561 = vld [vmem:[%s1 + $0xdd0] sm:$0xff]
  %v562 = vld [vmem:[%s1 + $0xdd8] sm:$0xff]
  %v563 = vld [vmem:[%s1 + $0xde0] sm:$0xff]
  %v564 = vld [vmem:[%s1 + $0xde8] sm:$0xff]
  %v565 = vld [vmem:[%s1 + $0xdf0] sm:$0xff]
  %v566 = vld [vmem:[%s1 + $0xdf8] sm:$0xff]
  %v567 = vld [vmem:[%s1 + $0xe00] sm:$0xff]
  %v568 = vld [vmem:[%s1 + $0xe08] sm:$0xff]
  %v569 = vld [vmem:[%s1 + $0xe10] sm:$0xff]
  %v570 = vld [vmem:[%s1 + $0xe18] sm:$0xff]
  %v571 = vld [vmem:[%s1 + $0xe20] sm:$0xff]
  %v572 = vld [vmem:[%s1 + $0xe28] sm:$0xff]
  %v573 = vld [vmem:[%s1 + $0xe30] sm:$0xff]
  %v574 = vld [vmem:[%s1 + $0xe38] sm:$0xff]
  %v575 = vld [vmem:[%s1 + $0xe40] sm:$0xff]
  %v576 = vld [vmem:[%s1 + $0xe48] sm:$0xff]
  %v577 = vld [vmem:[%s1 + $0xe50] sm:$0xff]
  %v578 = vld [vmem:[%s1 + $0xe58] sm:$0xff]
  %v579 = vld [vmem:[%s1 + $0xe60] sm:$0xff]
  %v580 = vld [vmem:[%s1 + $0xe68] sm:$0xff]
  %v581 = vld [vmem:[%s1 + $0xe70] sm:$0xff]
  %v582 = vld [vmem:[%s1 + $0xe78] sm:$0xff]
  %v583 = vld [vmem:[%s1 + $0xe80] sm:$0xff]
  %v584 = vld [vmem:[%s1 + $0xe88] sm:$0xff]
  %v585 = vld [vmem:[%s1 + $0xe90] sm:$0xff]
  %v586 = vld [vmem:[%s1 + $0xe98] sm:$0xff]
  %v587 = vld [vmem:[%s1 + $0xea0] sm:$0xff]
  %v588 = vld [vmem:[%s1 + $0xea8] sm:$0xff]
  %v589 = vld [vmem:[%s1 + $0xeb0] sm:$0xff]
  %v590 = vld [vmem:[%s1 + $0xeb8] sm:$0xff]
  %v591 = vld [vmem:[%s1 + $0xec0] sm:$0xff]
  %v592 = vld [vmem:[%s1 + $0xec8] sm:$0xff]
  %v593 = vld [vmem:[%s1 + $0xed0] sm:$0xff]
  %v594 = vld [vmem:[%s1 + $0xed8] sm:$0xff]
  %v595 = vld [vmem:[%s1 + $0xee0] sm:$0xff]
  %v596 = vld [vmem:[%s1 + $0xee8] sm:$0xff]
  %v597 = vld [vmem:[%s1 + $0xef0] sm:$0xff]
  %v598 = vld [vmem:[%s1 + $0xef8] sm:$0xff]
  %v599 = vld [vmem:[%s1 + $0xf00] sm:$0xff]
  %v600 = vld [vmem:[%s1 + $0xf08] sm:$0xff]
  %v601 = vld [vmem:[%s1 + $0xf10] sm:$0xff]
  %v602 = vld [vmem:[%s1 + $0xf18] sm:$0xff]
  %v603 = vld [vmem:[%s1 + $0xf20] sm:$0xff]
  %v604 = vld [vmem:[%s1 + $0xf28] sm:$0xff]
  %v605 = vld [vmem:[%s1 + $0xf30] sm:$0xff]
  %v606 = vld [vmem:[%s1 + $0xf38] sm:$0xff]
  %v607 = vld [vmem:[%s1 + $0xf40] sm:$0xff]
  %v608 = vld [vmem:[%s1 + $0xf48] sm:$0xff]
  %v609 = vld [vmem:[%s1 + $0xf50] sm:$0xff]
  %v610 = vld [vmem:[%s1 + $0xf58] sm:$0xff]
  %v611 = vld [vmem:[%s1 + $0xf60] sm:$0xff]
  %v612 = vld [vmem:[%s1 + $0xf68] sm:$0xff]
  %v613 = vld [vmem:[%s1 + $0xf70] sm:$0xff]
  %v614 = vld [vmem:[%s1 + $0xf78] sm:$0xff]
  %v615 = vld [vmem:[%s1 + $0xf80] sm:$0xff]
  %v616 = vld [vmem:[%s1 + $0xf88] sm:$0xff]
  %v617 = vld [vmem:[%s1 + $0xf90] sm:$0xff]
  %v618 = vld [vmem:[%s1 + $0xf98] sm:$0xff]
  %v619 = vld [vmem:[%s1 + $0xfa0] sm:$0xff]
  %v620 = vld [vmem:[%s1 + $0xfa8] sm:$0xff]
  %v621 = vld [vmem:[%s1 + $0xfb0] sm:$0xff]
  %v622 = vld [vmem:[%s1 + $0xfb8] sm:$0xff]
  %v623 = vld [vmem:[%s1 + $0xfc0] sm:$0xff]
  %v624 = vld [vmem:[%s1 + $0xfc8] sm:$0xff]
  %v625 = vld [vmem:[%s1 + $0xfd0] sm:$0xff]
  %v626 = vld [vmem:[%s1 + $0xfd8] sm:$0xff]
  %v627 = vld [vmem:[%s1 + $0xfe0] sm:$0xff]
  %v628 = vld [vmem:[%s1 + $0xfe8] sm:$0xff]
  %v629 = vld [vmem:[%s1 + $0xff0] sm:$0xff]
  %v630 = vld [vmem:[%s1 + $0xff8] sm:$0xff]
  %v631 = vld [vmem:[%s2] sm:$0xff]
  %v633 = vlaneseq
  %v634 = vshrl.u32 %v633, 7
  %v635 = vsub.s32 0, %v634
  %v636 = vrot.slane %v631, %v635
  %v637 = vlaneseq
  %v638 = vshrl.u32 %v637, 7
  %v639 = vsub.s32 1, %v638
  %v640 = vrot.slane %v631, %v639
  %v641 = vlaneseq
  %v642 = vshrl.u32 %v641, 7
  %v643 = vsub.s32 2, %v642
  %v644 = vrot.slane %v631, %v643
  %v645 = vlaneseq
  %v646 = vshrl.u32 %v645, 7
  %v647 = vsub.s32 3, %v646
  %v648 = vrot.slane %v631, %v647
  %v649 = vlaneseq
  %v650 = vshrl.u32 %v649, 7
  %v651 = vsub.s32 4, %v650
  %v652 = vrot.slane %v631, %v651
  %v653 = vlaneseq
  %v654 = vshrl.u32 %v653, 7
  %v655 = vsub.s32 5, %v654
  %v656 = vrot.slane %v631, %v655
  %v657 = vlaneseq
  %v658 = vshrl.u32 %v657, 7
  %v659 = vsub.s32 6, %v658
  %v660 = vrot.slane %v631, %v659
  %v661 = vlaneseq
  %v662 = vshrl.u32 %v661, 7
  %v663 = vsub.s32 7, %v662
  %v664 = vrot.slane %v631, %v663
  %v1185 = vunpack.c.l.b16 %v119
  %v1186 = vunpack.c.h.b16 %v119
  %v1187 = vunpack.c.l.b16 %v120
  %v1188 = vunpack.c.h.b16 %v120
  %v1189 = vunpack.c.l.b16 %v121
  %v1190 = vunpack.c.h.b16 %v121
  %v1191 = vunpack.c.l.b16 %v122
  %v1192 = vunpack.c.h.b16 %v122
  %v1193 = vunpack.c.l.b16 %v123
  %v1194 = vunpack.c.h.b16 %v123
  %v1195 = vunpack.c.l.b16 %v124
  %v1196 = vunpack.c.h.b16 %v124
  %v1197 = vunpack.c.l.b16 %v125
  %v1198 = vunpack.c.h.b16 %v125
  %v1199 = vunpack.c.l.b16 %v126
  %v1200 = vunpack.c.h.b16 %v126
  %v1201 = vunpack.c.l.b16 %v127
  %v1202 = vunpack.c.h.b16 %v127
  %v1203 = vunpack.c.l.b16 %v128
  %v1204 = vunpack.c.h.b16 %v128
  %v1205 = vunpack.c.l.b16 %v129
  %v1206 = vunpack.c.h.b16 %v129
  %v1207 = vunpack.c.l.b16 %v130
  %v1208 = vunpack.c.h.b16 %v130
  %v1209 = vunpack.c.l.b16 %v131
  %v1210 = vunpack.c.h.b16 %v131
  %v1211 = vunpack.c.l.b16 %v132
  %v1212 = vunpack.c.h.b16 %v132
  %v1213 = vunpack.c.l.b16 %v133
  %v1214 = vunpack.c.h.b16 %v133
  %v1215 = vunpack.c.l.b16 %v134
  %v1216 = vunpack.c.h.b16 %v134
  %v1217 = vunpack.c.l.b16 %v135
  %v1218 = vunpack.c.h.b16 %v135
  %v1219 = vunpack.c.l.b16 %v136
  %v1220 = vunpack.c.h.b16 %v136
  %v1221 = vunpack.c.l.b16 %v137
  %v1222 = vunpack.c.h.b16 %v137
  %v1223 = vunpack.c.l.b16 %v138
  %v1224 = vunpack.c.h.b16 %v138
  %v1225 = vunpack.c.l.b16 %v139
  %v1226 = vunpack.c.h.b16 %v139
  %v1227 = vunpack.c.l.b16 %v140
  %v1228 = vunpack.c.h.b16 %v140
  %v1229 = vunpack.c.l.b16 %v141
  %v1230 = vunpack.c.h.b16 %v141
  %v1231 = vunpack.c.l.b16 %v142
  %v1232 = vunpack.c.h.b16 %v142
  %v1233 = vunpack.c.l.b16 %v143
  %v1234 = vunpack.c.h.b16 %v143
  %v1235 = vunpack.c.l.b16 %v144
  %v1236 = vunpack.c.h.b16 %v144
  %v1237 = vunpack.c.l.b16 %v145
  %v1238 = vunpack.c.h.b16 %v145
  %v1239 = vunpack.c.l.b16 %v146
  %v1240 = vunpack.c.h.b16 %v146
  %v1241 = vunpack.c.l.b16 %v147
  %v1242 = vunpack.c.h.b16 %v147
  %v1243 = vunpack.c.l.b16 %v148
  %v1244 = vunpack.c.h.b16 %v148
  %v1245 = vunpack.c.l.b16 %v149
  %v1246 = vunpack.c.h.b16 %v149
  %v1247 = vunpack.c.l.b16 %v150
  %v1248 = vunpack.c.h.b16 %v150
  %v1249 = vunpack.c.l.b16 %v151
  %v1250 = vunpack.c.h.b16 %v151
  %v1251 = vunpack.c.l.b16 %v152
  %v1252 = vunpack.c.h.b16 %v152
  %v1253 = vunpack.c.l.b16 %v153
  %v1254 = vunpack.c.h.b16 %v153
  %v1255 = vunpack.c.l.b16 %v154
  %v1256 = vunpack.c.h.b16 %v154
  %v1257 = vunpack.c.l.b16 %v155
  %v1258 = vunpack.c.h.b16 %v155
  %v1259 = vunpack.c.l.b16 %v156
  %v1260 = vunpack.c.h.b16 %v156
  %v1261 = vunpack.c.l.b16 %v157
  %v1262 = vunpack.c.h.b16 %v157
  %v1263 = vunpack.c.l.b16 %v158
  %v1264 = vunpack.c.h.b16 %v158
  %v1265 = vunpack.c.l.b16 %v159
  %v1266 = vunpack.c.h.b16 %v159
  %v1267 = vunpack.c.l.b16 %v160
  %v1268 = vunpack.c.h.b16 %v160
  %v1269 = vunpack.c.l.b16 %v161
  %v1270 = vunpack.c.h.b16 %v161
  %v1271 = vunpack.c.l.b16 %v162
  %v1272 = vunpack.c.h.b16 %v162
  %v1273 = vunpack.c.l.b16 %v163
  %v1274 = vunpack.c.h.b16 %v163
  %v1275 = vunpack.c.l.b16 %v164
  %v1276 = vunpack.c.h.b16 %v164
  %v1277 = vunpack.c.l.b16 %v165
  %v1278 = vunpack.c.h.b16 %v165
  %v1279 = vunpack.c.l.b16 %v166
  %v1280 = vunpack.c.h.b16 %v166
  %v1281 = vunpack.c.l.b16 %v167
  %v1282 = vunpack.c.h.b16 %v167
  %v1283 = vunpack.c.l.b16 %v168
  %v1284 = vunpack.c.h.b16 %v168
  %v1285 = vunpack.c.l.b16 %v169
  %v1286 = vunpack.c.h.b16 %v169
  %v1287 = vunpack.c.l.b16 %v170
  %v1288 = vunpack.c.h.b16 %v170
  %v1289 = vunpack.c.l.b16 %v171
  %v1290 = vunpack.c.h.b16 %v171
  %v1291 = vunpack.c.l.b16 %v172
  %v1292 = vunpack.c.h.b16 %v172
  %v1293 = vunpack.c.l.b16 %v173
  %v1294 = vunpack.c.h.b16 %v173
  %v1295 = vunpack.c.l.b16 %v174
  %v1296 = vunpack.c.h.b16 %v174
  %v1297 = vunpack.c.l.b16 %v175
  %v1298 = vunpack.c.h.b16 %v175
  %v1299 = vunpack.c.l.b16 %v176
  %v1300 = vunpack.c.h.b16 %v176
  %v1301 = vunpack.c.l.b16 %v177
  %v1302 = vunpack.c.h.b16 %v177
  %v1303 = vunpack.c.l.b16 %v178
  %v1304 = vunpack.c.h.b16 %v178
  %v1305 = vunpack.c.l.b16 %v179
  %v1306 = vunpack.c.h.b16 %v179
  %v1307 = vunpack.c.l.b16 %v180
  %v1308 = vunpack.c.h.b16 %v180
  %v1309 = vunpack.c.l.b16 %v181
  %v1310 = vunpack.c.h.b16 %v181
  %v1311 = vunpack.c.l.b16 %v182
  %v1312 = vunpack.c.h.b16 %v182
  %v1313 = vunpack.c.l.b16 %v183
  %v1314 = vunpack.c.h.b16 %v183
  %v1315 = vunpack.c.l.b16 %v184
  %v1316 = vunpack.c.h.b16 %v184
  %v1317 = vunpack.c.l.b16 %v185
  %v1318 = vunpack.c.h.b16 %v185
  %v1319 = vunpack.c.l.b16 %v186
  %v1320 = vunpack.c.h.b16 %v186
  %v1321 = vunpack.c.l.b16 %v187
  %v1322 = vunpack.c.h.b16 %v187
  %v1323 = vunpack.c.l.b16 %v188
  %v1324 = vunpack.c.h.b16 %v188
  %v1325 = vunpack.c.l.b16 %v189
  %v1326 = vunpack.c.h.b16 %v189
  %v1327 = vunpack.c.l.b16 %v190
  %v1328 = vunpack.c.h.b16 %v190
  %v1329 = vunpack.c.l.b16 %v191
  %v1330 = vunpack.c.h.b16 %v191
  %v1331 = vunpack.c.l.b16 %v192
  %v1332 = vunpack.c.h.b16 %v192
  %v1333 = vunpack.c.l.b16 %v193
  %v1334 = vunpack.c.h.b16 %v193
  %v1335 = vunpack.c.l.b16 %v194
  %v1336 = vunpack.c.h.b16 %v194
  %v1337 = vunpack.c.l.b16 %v195
  %v1338 = vunpack.c.h.b16 %v195
  %v1339 = vunpack.c.l.b16 %v196
  %v1340 = vunpack.c.h.b16 %v196
  %v1341 = vunpack.c.l.b16 %v197
  %v1342 = vunpack.c.h.b16 %v197
  %v1343 = vunpack.c.l.b16 %v198
  %v1344 = vunpack.c.h.b16 %v198
  %v1345 = vunpack.c.l.b16 %v199
  %v1346 = vunpack.c.h.b16 %v199
  %v1347 = vunpack.c.l.b16 %v200
  %v1348 = vunpack.c.h.b16 %v200
  %v1349 = vunpack.c.l.b16 %v201
  %v1350 = vunpack.c.h.b16 %v201
  %v1351 = vunpack.c.l.b16 %v202
  %v1352 = vunpack.c.h.b16 %v202
  %v1353 = vunpack.c.l.b16 %v203
  %v1354 = vunpack.c.h.b16 %v203
  %v1355 = vunpack.c.l.b16 %v204
  %v1356 = vunpack.c.h.b16 %v204
  %v1357 = vunpack.c.l.b16 %v205
  %v1358 = vunpack.c.h.b16 %v205
  %v1359 = vunpack.c.l.b16 %v206
  %v1360 = vunpack.c.h.b16 %v206
  %v1361 = vunpack.c.l.b16 %v207
  %v1362 = vunpack.c.h.b16 %v207
  %v1363 = vunpack.c.l.b16 %v208
  %v1364 = vunpack.c.h.b16 %v208
  %v1365 = vunpack.c.l.b16 %v209
  %v1366 = vunpack.c.h.b16 %v209
  %v1367 = vunpack.c.l.b16 %v210
  %v1368 = vunpack.c.h.b16 %v210
  %v1369 = vunpack.c.l.b16 %v211
  %v1370 = vunpack.c.h.b16 %v211
  %v1371 = vunpack.c.l.b16 %v212
  %v1372 = vunpack.c.h.b16 %v212
  %v1373 = vunpack.c.l.b16 %v213
  %v1374 = vunpack.c.h.b16 %v213
  %v1375 = vunpack.c.l.b16 %v214
  %v1376 = vunpack.c.h.b16 %v214
  %v1377 = vunpack.c.l.b16 %v215
  %v1378 = vunpack.c.h.b16 %v215
  %v1379 = vunpack.c.l.b16 %v216
  %v1380 = vunpack.c.h.b16 %v216
  %v1381 = vunpack.c.l.b16 %v217
  %v1382 = vunpack.c.h.b16 %v217
  %v1383 = vunpack.c.l.b16 %v218
  %v1384 = vunpack.c.h.b16 %v218
  %v1385 = vunpack.c.l.b16 %v219
  %v1386 = vunpack.c.h.b16 %v219
  %v1387 = vunpack.c.l.b16 %v220
  %v1388 = vunpack.c.h.b16 %v220
  %v1389 = vunpack.c.l.b16 %v221
  %v1390 = vunpack.c.h.b16 %v221
  %v1391 = vunpack.c.l.b16 %v222
  %v1392 = vunpack.c.h.b16 %v222
  %v1393 = vunpack.c.l.b16 %v223
  %v1394 = vunpack.c.h.b16 %v223
  %v1395 = vunpack.c.l.b16 %v224
  %v1396 = vunpack.c.h.b16 %v224
  %v1397 = vunpack.c.l.b16 %v225
  %v1398 = vunpack.c.h.b16 %v225
  %v1399 = vunpack.c.l.b16 %v226
  %v1400 = vunpack.c.h.b16 %v226
  %v1401 = vunpack.c.l.b16 %v227
  %v1402 = vunpack.c.h.b16 %v227
  %v1403 = vunpack.c.l.b16 %v228
  %v1404 = vunpack.c.h.b16 %v228
  %v1405 = vunpack.c.l.b16 %v229
  %v1406 = vunpack.c.h.b16 %v229
  %v1407 = vunpack.c.l.b16 %v230
  %v1408 = vunpack.c.h.b16 %v230
  %v1409 = vunpack.c.l.b16 %v231
  %v1410 = vunpack.c.h.b16 %v231
  %v1411 = vunpack.c.l.b16 %v232
  %v1412 = vunpack.c.h.b16 %v232
  %v1413 = vunpack.c.l.b16 %v233
  %v1414 = vunpack.c.h.b16 %v233
  %v1415 = vunpack.c.l.b16 %v234
  %v1416 = vunpack.c.h.b16 %v234
  %v1417 = vunpack.c.l.b16 %v235
  %v1418 = vunpack.c.h.b16 %v235
  %v1419 = vunpack.c.l.b16 %v236
  %v1420 = vunpack.c.h.b16 %v236
  %v1421 = vunpack.c.l.b16 %v237
  %v1422 = vunpack.c.h.b16 %v237
  %v1423 = vunpack.c.l.b16 %v238
  %v1424 = vunpack.c.h.b16 %v238
  %v1425 = vunpack.c.l.b16 %v239
  %v1426 = vunpack.c.h.b16 %v239
  %v1427 = vunpack.c.l.b16 %v240
  %v1428 = vunpack.c.h.b16 %v240
  %v1429 = vunpack.c.l.b16 %v241
  %v1430 = vunpack.c.h.b16 %v241
  %v1431 = vunpack.c.l.b16 %v242
  %v1432 = vunpack.c.h.b16 %v242
  %v1433 = vunpack.c.l.b16 %v243
  %v1434 = vunpack.c.h.b16 %v243
  %v1435 = vunpack.c.l.b16 %v244
  %v1436 = vunpack.c.h.b16 %v244
  %v1437 = vunpack.c.l.b16 %v245
  %v1438 = vunpack.c.h.b16 %v245
  %v1439 = vunpack.c.l.b16 %v246
  %v1440 = vunpack.c.h.b16 %v246
  %v1441 = vunpack.c.l.b16 %v247
  %v1442 = vunpack.c.h.b16 %v247
  %v1443 = vunpack.c.l.b16 %v248
  %v1444 = vunpack.c.h.b16 %v248
  %v1445 = vunpack.c.l.b16 %v249
  %v1446 = vunpack.c.h.b16 %v249
  %v1447 = vunpack.c.l.b16 %v250
  %v1448 = vunpack.c.h.b16 %v250
  %v1449 = vunpack.c.l.b16 %v251
  %v1450 = vunpack.c.h.b16 %v251
  %v1451 = vunpack.c.l.b16 %v252
  %v1452 = vunpack.c.h.b16 %v252
  %v1453 = vunpack.c.l.b16 %v253
  %v1454 = vunpack.c.h.b16 %v253
  %v1455 = vunpack.c.l.b16 %v254
  %v1456 = vunpack.c.h.b16 %v254
  %v1457 = vunpack.c.l.b16 %v255
  %v1458 = vunpack.c.h.b16 %v255
  %v1459 = vunpack.c.l.b16 %v256
  %v1460 = vunpack.c.h.b16 %v256
  %v1461 = vunpack.c.l.b16 %v257
  %v1462 = vunpack.c.h.b16 %v257
  %v1463 = vunpack.c.l.b16 %v258
  %v1464 = vunpack.c.h.b16 %v258
  %v1465 = vunpack.c.l.b16 %v259
  %v1466 = vunpack.c.h.b16 %v259
  %v1467 = vunpack.c.l.b16 %v260
  %v1468 = vunpack.c.h.b16 %v260
  %v1469 = vunpack.c.l.b16 %v261
  %v1470 = vunpack.c.h.b16 %v261
  %v1471 = vunpack.c.l.b16 %v262
  %v1472 = vunpack.c.h.b16 %v262
  %v1473 = vunpack.c.l.b16 %v263
  %v1474 = vunpack.c.h.b16 %v263
  %v1475 = vunpack.c.l.b16 %v264
  %v1476 = vunpack.c.h.b16 %v264
  %v1477 = vunpack.c.l.b16 %v265
  %v1478 = vunpack.c.h.b16 %v265
  %v1479 = vunpack.c.l.b16 %v266
  %v1480 = vunpack.c.h.b16 %v266
  %v1481 = vunpack.c.l.b16 %v267
  %v1482 = vunpack.c.h.b16 %v267
  %v1483 = vunpack.c.l.b16 %v268
  %v1484 = vunpack.c.h.b16 %v268
  %v1485 = vunpack.c.l.b16 %v269
  %v1486 = vunpack.c.h.b16 %v269
  %v1487 = vunpack.c.l.b16 %v270
  %v1488 = vunpack.c.h.b16 %v270
  %v1489 = vunpack.c.l.b16 %v271
  %v1490 = vunpack.c.h.b16 %v271
  %v1491 = vunpack.c.l.b16 %v272
  %v1492 = vunpack.c.h.b16 %v272
  %v1493 = vunpack.c.l.b16 %v273
  %v1494 = vunpack.c.h.b16 %v273
  %v1495 = vunpack.c.l.b16 %v274
  %v1496 = vunpack.c.h.b16 %v274
  %v1497 = vunpack.c.l.b16 %v275
  %v1498 = vunpack.c.h.b16 %v275
  %v1499 = vunpack.c.l.b16 %v276
  %v1500 = vunpack.c.h.b16 %v276
  %v1501 = vunpack.c.l.b16 %v277
  %v1502 = vunpack.c.h.b16 %v277
  %v1503 = vunpack.c.l.b16 %v278
  %v1504 = vunpack.c.h.b16 %v278
  %v1505 = vunpack.c.l.b16 %v279
  %v1506 = vunpack.c.h.b16 %v279
  %v1507 = vunpack.c.l.b16 %v280
  %v1508 = vunpack.c.h.b16 %v280
  %v1509 = vunpack.c.l.b16 %v281
  %v1510 = vunpack.c.h.b16 %v281
  %v1511 = vunpack.c.l.b16 %v282
  %v1512 = vunpack.c.h.b16 %v282
  %v1513 = vunpack.c.l.b16 %v283
  %v1514 = vunpack.c.h.b16 %v283
  %v1515 = vunpack.c.l.b16 %v284
  %v1516 = vunpack.c.h.b16 %v284
  %v1517 = vunpack.c.l.b16 %v285
  %v1518 = vunpack.c.h.b16 %v285
  %v1519 = vunpack.c.l.b16 %v286
  %v1520 = vunpack.c.h.b16 %v286
  %v1521 = vunpack.c.l.b16 %v287
  %v1522 = vunpack.c.h.b16 %v287
  %v1523 = vunpack.c.l.b16 %v288
  %v1524 = vunpack.c.h.b16 %v288
  %v1525 = vunpack.c.l.b16 %v289
  %v1526 = vunpack.c.h.b16 %v289
  %v1527 = vunpack.c.l.b16 %v290
  %v1528 = vunpack.c.h.b16 %v290
  %v1529 = vunpack.c.l.b16 %v291
  %v1530 = vunpack.c.h.b16 %v291
  %v1531 = vunpack.c.l.b16 %v292
  %v1532 = vunpack.c.h.b16 %v292
  %v1533 = vunpack.c.l.b16 %v293
  %v1534 = vunpack.c.h.b16 %v293
  %v1535 = vunpack.c.l.b16 %v294
  %v1536 = vunpack.c.h.b16 %v294
  %v1537 = vunpack.c.l.b16 %v295
  %v1538 = vunpack.c.h.b16 %v295
  %v1539 = vunpack.c.l.b16 %v296
  %v1540 = vunpack.c.h.b16 %v296
  %v1541 = vunpack.c.l.b16 %v297
  %v1542 = vunpack.c.h.b16 %v297
  %v1543 = vunpack.c.l.b16 %v298
  %v1544 = vunpack.c.h.b16 %v298
  %v1545 = vunpack.c.l.b16 %v299
  %v1546 = vunpack.c.h.b16 %v299
  %v1547 = vunpack.c.l.b16 %v300
  %v1548 = vunpack.c.h.b16 %v300
  %v1549 = vunpack.c.l.b16 %v301
  %v1550 = vunpack.c.h.b16 %v301
  %v1551 = vunpack.c.l.b16 %v302
  %v1552 = vunpack.c.h.b16 %v302
  %v1553 = vunpack.c.l.b16 %v303
  %v1554 = vunpack.c.h.b16 %v303
  %v1555 = vunpack.c.l.b16 %v304
  %v1556 = vunpack.c.h.b16 %v304
  %v1557 = vunpack.c.l.b16 %v305
  %v1558 = vunpack.c.h.b16 %v305
  %v1559 = vunpack.c.l.b16 %v306
  %v1560 = vunpack.c.h.b16 %v306
  %v1561 = vunpack.c.l.b16 %v307
  %v1562 = vunpack.c.h.b16 %v307
  %v1563 = vunpack.c.l.b16 %v308
  %v1564 = vunpack.c.h.b16 %v308
  %v1565 = vunpack.c.l.b16 %v309
  %v1566 = vunpack.c.h.b16 %v309
  %v1567 = vunpack.c.l.b16 %v310
  %v1568 = vunpack.c.h.b16 %v310
  %v1569 = vunpack.c.l.b16 %v311
  %v1570 = vunpack.c.h.b16 %v311
  %v1571 = vunpack.c.l.b16 %v312
  %v1572 = vunpack.c.h.b16 %v312
  %v1573 = vunpack.c.l.b16 %v313
  %v1574 = vunpack.c.h.b16 %v313
  %v1575 = vunpack.c.l.b16 %v314
  %v1576 = vunpack.c.h.b16 %v314
  %v1577 = vunpack.c.l.b16 %v315
  %v1578 = vunpack.c.h.b16 %v315
  %v1579 = vunpack.c.l.b16 %v316
  %v1580 = vunpack.c.h.b16 %v316
  %v1581 = vunpack.c.l.b16 %v317
  %v1582 = vunpack.c.h.b16 %v317
  %v1583 = vunpack.c.l.b16 %v318
  %v1584 = vunpack.c.h.b16 %v318
  %v1585 = vunpack.c.l.b16 %v319
  %v1586 = vunpack.c.h.b16 %v319
  %v1587 = vunpack.c.l.b16 %v320
  %v1588 = vunpack.c.h.b16 %v320
  %v1589 = vunpack.c.l.b16 %v321
  %v1590 = vunpack.c.h.b16 %v321
  %v1591 = vunpack.c.l.b16 %v322
  %v1592 = vunpack.c.h.b16 %v322
  %v1593 = vunpack.c.l.b16 %v323
  %v1594 = vunpack.c.h.b16 %v323
  %v1595 = vunpack.c.l.b16 %v324
  %v1596 = vunpack.c.h.b16 %v324
  %v1597 = vunpack.c.l.b16 %v325
  %v1598 = vunpack.c.h.b16 %v325
  %v1599 = vunpack.c.l.b16 %v326
  %v1600 = vunpack.c.h.b16 %v326
  %v1601 = vunpack.c.l.b16 %v327
  %v1602 = vunpack.c.h.b16 %v327
  %v1603 = vunpack.c.l.b16 %v328
  %v1604 = vunpack.c.h.b16 %v328
  %v1605 = vunpack.c.l.b16 %v329
  %v1606 = vunpack.c.h.b16 %v329
  %v1607 = vunpack.c.l.b16 %v330
  %v1608 = vunpack.c.h.b16 %v330
  %v1609 = vunpack.c.l.b16 %v331
  %v1610 = vunpack.c.h.b16 %v331
  %v1611 = vunpack.c.l.b16 %v332
  %v1612 = vunpack.c.h.b16 %v332
  %v1613 = vunpack.c.l.b16 %v333
  %v1614 = vunpack.c.h.b16 %v333
  %v1615 = vunpack.c.l.b16 %v334
  %v1616 = vunpack.c.h.b16 %v334
  %v1617 = vunpack.c.l.b16 %v335
  %v1618 = vunpack.c.h.b16 %v335
  %v1619 = vunpack.c.l.b16 %v336
  %v1620 = vunpack.c.h.b16 %v336
  %v1621 = vunpack.c.l.b16 %v337
  %v1622 = vunpack.c.h.b16 %v337
  %v1623 = vunpack.c.l.b16 %v338
  %v1624 = vunpack.c.h.b16 %v338
  %v1625 = vunpack.c.l.b16 %v339
  %v1626 = vunpack.c.h.b16 %v339
  %v1627 = vunpack.c.l.b16 %v340
  %v1628 = vunpack.c.h.b16 %v340
  %v1629 = vunpack.c.l.b16 %v341
  %v1630 = vunpack.c.h.b16 %v341
  %v1631 = vunpack.c.l.b16 %v342
  %v1632 = vunpack.c.h.b16 %v342
  %v1633 = vunpack.c.l.b16 %v343
  %v1634 = vunpack.c.h.b16 %v343
  %v1635 = vunpack.c.l.b16 %v344
  %v1636 = vunpack.c.h.b16 %v344
  %v1637 = vunpack.c.l.b16 %v345
  %v1638 = vunpack.c.h.b16 %v345
  %v1639 = vunpack.c.l.b16 %v346
  %v1640 = vunpack.c.h.b16 %v346
  %v1641 = vunpack.c.l.b16 %v347
  %v1642 = vunpack.c.h.b16 %v347
  %v1643 = vunpack.c.l.b16 %v348
  %v1644 = vunpack.c.h.b16 %v348
  %v1645 = vunpack.c.l.b16 %v349
  %v1646 = vunpack.c.h.b16 %v349
  %v1647 = vunpack.c.l.b16 %v350
  %v1648 = vunpack.c.h.b16 %v350
  %v1649 = vunpack.c.l.b16 %v351
  %v1650 = vunpack.c.h.b16 %v351
  %v1651 = vunpack.c.l.b16 %v352
  %v1652 = vunpack.c.h.b16 %v352
  %v1653 = vunpack.c.l.b16 %v353
  %v1654 = vunpack.c.h.b16 %v353
  %v1655 = vunpack.c.l.b16 %v354
  %v1656 = vunpack.c.h.b16 %v354
  %v1657 = vunpack.c.l.b16 %v355
  %v1658 = vunpack.c.h.b16 %v355
  %v1659 = vunpack.c.l.b16 %v356
  %v1660 = vunpack.c.h.b16 %v356
  %v1661 = vunpack.c.l.b16 %v357
  %v1662 = vunpack.c.h.b16 %v357
  %v1663 = vunpack.c.l.b16 %v358
  %v1664 = vunpack.c.h.b16 %v358
  %v1665 = vunpack.c.l.b16 %v359
  %v1666 = vunpack.c.h.b16 %v359
  %v1667 = vunpack.c.l.b16 %v360
  %v1668 = vunpack.c.h.b16 %v360
  %v1669 = vunpack.c.l.b16 %v361
  %v1670 = vunpack.c.h.b16 %v361
  %v1671 = vunpack.c.l.b16 %v362
  %v1672 = vunpack.c.h.b16 %v362
  %v1673 = vunpack.c.l.b16 %v363
  %v1674 = vunpack.c.h.b16 %v363
  %v1675 = vunpack.c.l.b16 %v364
  %v1676 = vunpack.c.h.b16 %v364
  %v1677 = vunpack.c.l.b16 %v365
  %v1678 = vunpack.c.h.b16 %v365
  %v1679 = vunpack.c.l.b16 %v366
  %v1680 = vunpack.c.h.b16 %v366
  %v1681 = vunpack.c.l.b16 %v367
  %v1682 = vunpack.c.h.b16 %v367
  %v1683 = vunpack.c.l.b16 %v368
  %v1684 = vunpack.c.h.b16 %v368
  %v1685 = vunpack.c.l.b16 %v369
  %v1686 = vunpack.c.h.b16 %v369
  %v1687 = vunpack.c.l.b16 %v370
  %v1688 = vunpack.c.h.b16 %v370
  %v1689 = vunpack.c.l.b16 %v371
  %v1690 = vunpack.c.h.b16 %v371
  %v1691 = vunpack.c.l.b16 %v372
  %v1692 = vunpack.c.h.b16 %v372
  %v1693 = vunpack.c.l.b16 %v373
  %v1694 = vunpack.c.h.b16 %v373
  %v1695 = vunpack.c.l.b16 %v374
  %v1696 = vunpack.c.h.b16 %v374
  %v1697 = vunpack.c.l.b16 %v375
  %v1698 = vunpack.c.h.b16 %v375
  %v1699 = vunpack.c.l.b16 %v376
  %v1700 = vunpack.c.h.b16 %v376
  %v1701 = vunpack.c.l.b16 %v377
  %v1702 = vunpack.c.h.b16 %v377
  %v1703 = vunpack.c.l.b16 %v378
  %v1704 = vunpack.c.h.b16 %v378
  %v1705 = vunpack.c.l.b16 %v379
  %v1706 = vunpack.c.h.b16 %v379
  %v1707 = vunpack.c.l.b16 %v380
  %v1708 = vunpack.c.h.b16 %v380
  %v1709 = vunpack.c.l.b16 %v381
  %v1710 = vunpack.c.h.b16 %v381
  %v1711 = vunpack.c.l.b16 %v382
  %v1712 = vunpack.c.h.b16 %v382
  %v1713 = vunpack.c.l.b16 %v383
  %v1714 = vunpack.c.h.b16 %v383
  %v1715 = vunpack.c.l.b16 %v384
  %v1716 = vunpack.c.h.b16 %v384
  %v1717 = vunpack.c.l.b16 %v385
  %v1718 = vunpack.c.h.b16 %v385
  %v1719 = vunpack.c.l.b16 %v386
  %v1720 = vunpack.c.h.b16 %v386
  %v1721 = vunpack.c.l.b16 %v387
  %v1722 = vunpack.c.h.b16 %v387
  %v1723 = vunpack.c.l.b16 %v388
  %v1724 = vunpack.c.h.b16 %v388
  %v1725 = vunpack.c.l.b16 %v389
  %v1726 = vunpack.c.h.b16 %v389
  %v1727 = vunpack.c.l.b16 %v390
  %v1728 = vunpack.c.h.b16 %v390
  %v1729 = vunpack.c.l.b16 %v391
  %v1730 = vunpack.c.h.b16 %v391
  %v1731 = vunpack.c.l.b16 %v392
  %v1732 = vunpack.c.h.b16 %v392
  %v1733 = vunpack.c.l.b16 %v393
  %v1734 = vunpack.c.h.b16 %v393
  %v1735 = vunpack.c.l.b16 %v394
  %v1736 = vunpack.c.h.b16 %v394
  %v1737 = vunpack.c.l.b16 %v395
  %v1738 = vunpack.c.h.b16 %v395
  %v1739 = vunpack.c.l.b16 %v396
  %v1740 = vunpack.c.h.b16 %v396
  %v1741 = vunpack.c.l.b16 %v397
  %v1742 = vunpack.c.h.b16 %v397
  %v1743 = vunpack.c.l.b16 %v398
  %v1744 = vunpack.c.h.b16 %v398
  %v1745 = vunpack.c.l.b16 %v399
  %v1746 = vunpack.c.h.b16 %v399
  %v1747 = vunpack.c.l.b16 %v400
  %v1748 = vunpack.c.h.b16 %v400
  %v1749 = vunpack.c.l.b16 %v401
  %v1750 = vunpack.c.h.b16 %v401
  %v1751 = vunpack.c.l.b16 %v402
  %v1752 = vunpack.c.h.b16 %v402
  %v1753 = vunpack.c.l.b16 %v403
  %v1754 = vunpack.c.h.b16 %v403
  %v1755 = vunpack.c.l.b16 %v404
  %v1756 = vunpack.c.h.b16 %v404
  %v1757 = vunpack.c.l.b16 %v405
  %v1758 = vunpack.c.h.b16 %v405
  %v1759 = vunpack.c.l.b16 %v406
  %v1760 = vunpack.c.h.b16 %v406
  %v1761 = vunpack.c.l.b16 %v407
  %v1762 = vunpack.c.h.b16 %v407
  %v1763 = vunpack.c.l.b16 %v408
  %v1764 = vunpack.c.h.b16 %v408
  %v1765 = vunpack.c.l.b16 %v409
  %v1766 = vunpack.c.h.b16 %v409
  %v1767 = vunpack.c.l.b16 %v410
  %v1768 = vunpack.c.h.b16 %v410
  %v1769 = vunpack.c.l.b16 %v411
  %v1770 = vunpack.c.h.b16 %v411
  %v1771 = vunpack.c.l.b16 %v412
  %v1772 = vunpack.c.h.b16 %v412
  %v1773 = vunpack.c.l.b16 %v413
  %v1774 = vunpack.c.h.b16 %v413
  %v1775 = vunpack.c.l.b16 %v414
  %v1776 = vunpack.c.h.b16 %v414
  %v1777 = vunpack.c.l.b16 %v415
  %v1778 = vunpack.c.h.b16 %v415
  %v1779 = vunpack.c.l.b16 %v416
  %v1780 = vunpack.c.h.b16 %v416
  %v1781 = vunpack.c.l.b16 %v417
  %v1782 = vunpack.c.h.b16 %v417
  %v1783 = vunpack.c.l.b16 %v418
  %v1784 = vunpack.c.h.b16 %v418
  %v1785 = vunpack.c.l.b16 %v419
  %v1786 = vunpack.c.h.b16 %v419
  %v1787 = vunpack.c.l.b16 %v420
  %v1788 = vunpack.c.h.b16 %v420
  %v1789 = vunpack.c.l.b16 %v421
  %v1790 = vunpack.c.h.b16 %v421
  %v1791 = vunpack.c.l.b16 %v422
  %v1792 = vunpack.c.h.b16 %v422
  %v1793 = vunpack.c.l.b16 %v423
  %v1794 = vunpack.c.h.b16 %v423
  %v1795 = vunpack.c.l.b16 %v424
  %v1796 = vunpack.c.h.b16 %v424
  %v1797 = vunpack.c.l.b16 %v425
  %v1798 = vunpack.c.h.b16 %v425
  %v1799 = vunpack.c.l.b16 %v426
  %v1800 = vunpack.c.h.b16 %v426
  %v1801 = vunpack.c.l.b16 %v427
  %v1802 = vunpack.c.h.b16 %v427
  %v1803 = vunpack.c.l.b16 %v428
  %v1804 = vunpack.c.h.b16 %v428
  %v1805 = vunpack.c.l.b16 %v429
  %v1806 = vunpack.c.h.b16 %v429
  %v1807 = vunpack.c.l.b16 %v430
  %v1808 = vunpack.c.h.b16 %v430
  %v1809 = vunpack.c.l.b16 %v431
  %v1810 = vunpack.c.h.b16 %v431
  %v1811 = vunpack.c.l.b16 %v432
  %v1812 = vunpack.c.h.b16 %v432
  %v1813 = vunpack.c.l.b16 %v433
  %v1814 = vunpack.c.h.b16 %v433
  %v1815 = vunpack.c.l.b16 %v434
  %v1816 = vunpack.c.h.b16 %v434
  %v1817 = vunpack.c.l.b16 %v435
  %v1818 = vunpack.c.h.b16 %v435
  %v1819 = vunpack.c.l.b16 %v436
  %v1820 = vunpack.c.h.b16 %v436
  %v1821 = vunpack.c.l.b16 %v437
  %v1822 = vunpack.c.h.b16 %v437
  %v1823 = vunpack.c.l.b16 %v438
  %v1824 = vunpack.c.h.b16 %v438
  %v1825 = vunpack.c.l.b16 %v439
  %v1826 = vunpack.c.h.b16 %v439
  %v1827 = vunpack.c.l.b16 %v440
  %v1828 = vunpack.c.h.b16 %v440
  %v1829 = vunpack.c.l.b16 %v441
  %v1830 = vunpack.c.h.b16 %v441
  %v1831 = vunpack.c.l.b16 %v442
  %v1832 = vunpack.c.h.b16 %v442
  %v1833 = vunpack.c.l.b16 %v443
  %v1834 = vunpack.c.h.b16 %v443
  %v1835 = vunpack.c.l.b16 %v444
  %v1836 = vunpack.c.h.b16 %v444
  %v1837 = vunpack.c.l.b16 %v445
  %v1838 = vunpack.c.h.b16 %v445
  %v1839 = vunpack.c.l.b16 %v446
  %v1840 = vunpack.c.h.b16 %v446
  %v1841 = vunpack.c.l.b16 %v447
  %v1842 = vunpack.c.h.b16 %v447
  %v1843 = vunpack.c.l.b16 %v448
  %v1844 = vunpack.c.h.b16 %v448
  %v1845 = vunpack.c.l.b16 %v449
  %v1846 = vunpack.c.h.b16 %v449
  %v1847 = vunpack.c.l.b16 %v450
  %v1848 = vunpack.c.h.b16 %v450
  %v1849 = vunpack.c.l.b16 %v451
  %v1850 = vunpack.c.h.b16 %v451
  %v1851 = vunpack.c.l.b16 %v452
  %v1852 = vunpack.c.h.b16 %v452
  %v1853 = vunpack.c.l.b16 %v453
  %v1854 = vunpack.c.h.b16 %v453
  %v1855 = vunpack.c.l.b16 %v454
  %v1856 = vunpack.c.h.b16 %v454
  %v1857 = vunpack.c.l.b16 %v455
  %v1858 = vunpack.c.h.b16 %v455
  %v1859 = vunpack.c.l.b16 %v456
  %v1860 = vunpack.c.h.b16 %v456
  %v1861 = vunpack.c.l.b16 %v457
  %v1862 = vunpack.c.h.b16 %v457
  %v1863 = vunpack.c.l.b16 %v458
  %v1864 = vunpack.c.h.b16 %v458
  %v1865 = vunpack.c.l.b16 %v459
  %v1866 = vunpack.c.h.b16 %v459
  %v1867 = vunpack.c.l.b16 %v460
  %v1868 = vunpack.c.h.b16 %v460
  %v1869 = vunpack.c.l.b16 %v461
  %v1870 = vunpack.c.h.b16 %v461
  %v1871 = vunpack.c.l.b16 %v462
  %v1872 = vunpack.c.h.b16 %v462
  %v1873 = vunpack.c.l.b16 %v463
  %v1874 = vunpack.c.h.b16 %v463
  %v1875 = vunpack.c.l.b16 %v464
  %v1876 = vunpack.c.h.b16 %v464
  %v1877 = vunpack.c.l.b16 %v465
  %v1878 = vunpack.c.h.b16 %v465
  %v1879 = vunpack.c.l.b16 %v466
  %v1880 = vunpack.c.h.b16 %v466
  %v1881 = vunpack.c.l.b16 %v467
  %v1882 = vunpack.c.h.b16 %v467
  %v1883 = vunpack.c.l.b16 %v468
  %v1884 = vunpack.c.h.b16 %v468
  %v1885 = vunpack.c.l.b16 %v469
  %v1886 = vunpack.c.h.b16 %v469
  %v1887 = vunpack.c.l.b16 %v470
  %v1888 = vunpack.c.h.b16 %v470
  %v1889 = vunpack.c.l.b16 %v471
  %v1890 = vunpack.c.h.b16 %v471
  %v1891 = vunpack.c.l.b16 %v472
  %v1892 = vunpack.c.h.b16 %v472
  %v1893 = vunpack.c.l.b16 %v473
  %v1894 = vunpack.c.h.b16 %v473
  %v1895 = vunpack.c.l.b16 %v474
  %v1896 = vunpack.c.h.b16 %v474
  %v1897 = vunpack.c.l.b16 %v475
  %v1898 = vunpack.c.h.b16 %v475
  %v1899 = vunpack.c.l.b16 %v476
  %v1900 = vunpack.c.h.b16 %v476
  %v1901 = vunpack.c.l.b16 %v477
  %v1902 = vunpack.c.h.b16 %v477
  %v1903 = vunpack.c.l.b16 %v478
  %v1904 = vunpack.c.h.b16 %v478
  %v1905 = vunpack.c.l.b16 %v479
  %v1906 = vunpack.c.h.b16 %v479
  %v1907 = vunpack.c.l.b16 %v480
  %v1908 = vunpack.c.h.b16 %v480
  %v1909 = vunpack.c.l.b16 %v481
  %v1910 = vunpack.c.h.b16 %v481
  %v1911 = vunpack.c.l.b16 %v482
  %v1912 = vunpack.c.h.b16 %v482
  %v1913 = vunpack.c.l.b16 %v483
  %v1914 = vunpack.c.h.b16 %v483
  %v1915 = vunpack.c.l.b16 %v484
  %v1916 = vunpack.c.h.b16 %v484
  %v1917 = vunpack.c.l.b16 %v485
  %v1918 = vunpack.c.h.b16 %v485
  %v1919 = vunpack.c.l.b16 %v486
  %v1920 = vunpack.c.h.b16 %v486
  %v1921 = vunpack.c.l.b16 %v487
  %v1922 = vunpack.c.h.b16 %v487
  %v1923 = vunpack.c.l.b16 %v488
  %v1924 = vunpack.c.h.b16 %v488
  %v1925 = vunpack.c.l.b16 %v489
  %v1926 = vunpack.c.h.b16 %v489
  %v1927 = vunpack.c.l.b16 %v490
  %v1928 = vunpack.c.h.b16 %v490
  %v1929 = vunpack.c.l.b16 %v491
  %v1930 = vunpack.c.h.b16 %v491
  %v1931 = vunpack.c.l.b16 %v492
  %v1932 = vunpack.c.h.b16 %v492
  %v1933 = vunpack.c.l.b16 %v493
  %v1934 = vunpack.c.h.b16 %v493
  %v1935 = vunpack.c.l.b16 %v494
  %v1936 = vunpack.c.h.b16 %v494
  %v1937 = vunpack.c.l.b16 %v495
  %v1938 = vunpack.c.h.b16 %v495
  %v1939 = vunpack.c.l.b16 %v496
  %v1940 = vunpack.c.h.b16 %v496
  %v1941 = vunpack.c.l.b16 %v497
  %v1942 = vunpack.c.h.b16 %v497
  %v1943 = vunpack.c.l.b16 %v498
  %v1944 = vunpack.c.h.b16 %v498
  %v1945 = vunpack.c.l.b16 %v499
  %v1946 = vunpack.c.h.b16 %v499
  %v1947 = vunpack.c.l.b16 %v500
  %v1948 = vunpack.c.h.b16 %v500
  %v1949 = vunpack.c.l.b16 %v501
  %v1950 = vunpack.c.h.b16 %v501
  %v1951 = vunpack.c.l.b16 %v502
  %v1952 = vunpack.c.h.b16 %v502
  %v1953 = vunpack.c.l.b16 %v503
  %v1954 = vunpack.c.h.b16 %v503
  %v1955 = vunpack.c.l.b16 %v504
  %v1956 = vunpack.c.h.b16 %v504
  %v1957 = vunpack.c.l.b16 %v505
  %v1958 = vunpack.c.h.b16 %v505
  %v1959 = vunpack.c.l.b16 %v506
  %v1960 = vunpack.c.h.b16 %v506
  %v1961 = vunpack.c.l.b16 %v507
  %v1962 = vunpack.c.h.b16 %v507
  %v1963 = vunpack.c.l.b16 %v508
  %v1964 = vunpack.c.h.b16 %v508
  %v1965 = vunpack.c.l.b16 %v509
  %v1966 = vunpack.c.h.b16 %v509
  %v1967 = vunpack.c.l.b16 %v510
  %v1968 = vunpack.c.h.b16 %v510
  %v1969 = vunpack.c.l.b16 %v511
  %v1970 = vunpack.c.h.b16 %v511
  %v1971 = vunpack.c.l.b16 %v512
  %v1972 = vunpack.c.h.b16 %v512
  %v1973 = vunpack.c.l.b16 %v513
  %v1974 = vunpack.c.h.b16 %v513
  %v1975 = vunpack.c.l.b16 %v514
  %v1976 = vunpack.c.h.b16 %v514
  %v1977 = vunpack.c.l.b16 %v515
  %v1978 = vunpack.c.h.b16 %v515
  %v1979 = vunpack.c.l.b16 %v516
  %v1980 = vunpack.c.h.b16 %v516
  %v1981 = vunpack.c.l.b16 %v517
  %v1982 = vunpack.c.h.b16 %v517
  %v1983 = vunpack.c.l.b16 %v518
  %v1984 = vunpack.c.h.b16 %v518
  %v1985 = vunpack.c.l.b16 %v519
  %v1986 = vunpack.c.h.b16 %v519
  %v1987 = vunpack.c.l.b16 %v520
  %v1988 = vunpack.c.h.b16 %v520
  %v1989 = vunpack.c.l.b16 %v521
  %v1990 = vunpack.c.h.b16 %v521
  %v1991 = vunpack.c.l.b16 %v522
  %v1992 = vunpack.c.h.b16 %v522
  %v1993 = vunpack.c.l.b16 %v523
  %v1994 = vunpack.c.h.b16 %v523
  %v1995 = vunpack.c.l.b16 %v524
  %v1996 = vunpack.c.h.b16 %v524
  %v1997 = vunpack.c.l.b16 %v525
  %v1998 = vunpack.c.h.b16 %v525
  %v1999 = vunpack.c.l.b16 %v526
  %v2000 = vunpack.c.h.b16 %v526
  %v2001 = vunpack.c.l.b16 %v527
  %v2002 = vunpack.c.h.b16 %v527
  %v2003 = vunpack.c.l.b16 %v528
  %v2004 = vunpack.c.h.b16 %v528
  %v2005 = vunpack.c.l.b16 %v529
  %v2006 = vunpack.c.h.b16 %v529
  %v2007 = vunpack.c.l.b16 %v530
  %v2008 = vunpack.c.h.b16 %v530
  %v2009 = vunpack.c.l.b16 %v531
  %v2010 = vunpack.c.h.b16 %v531
  %v2011 = vunpack.c.l.b16 %v532
  %v2012 = vunpack.c.h.b16 %v532
  %v2013 = vunpack.c.l.b16 %v533
  %v2014 = vunpack.c.h.b16 %v533
  %v2015 = vunpack.c.l.b16 %v534
  %v2016 = vunpack.c.h.b16 %v534
  %v2017 = vunpack.c.l.b16 %v535
  %v2018 = vunpack.c.h.b16 %v535
  %v2019 = vunpack.c.l.b16 %v536
  %v2020 = vunpack.c.h.b16 %v536
  %v2021 = vunpack.c.l.b16 %v537
  %v2022 = vunpack.c.h.b16 %v537
  %v2023 = vunpack.c.l.b16 %v538
  %v2024 = vunpack.c.h.b16 %v538
  %v2025 = vunpack.c.l.b16 %v539
  %v2026 = vunpack.c.h.b16 %v539
  %v2027 = vunpack.c.l.b16 %v540
  %v2028 = vunpack.c.h.b16 %v540
  %v2029 = vunpack.c.l.b16 %v541
  %v2030 = vunpack.c.h.b16 %v541
  %v2031 = vunpack.c.l.b16 %v542
  %v2032 = vunpack.c.h.b16 %v542
  %v2033 = vunpack.c.l.b16 %v543
  %v2034 = vunpack.c.h.b16 %v543
  %v2035 = vunpack.c.l.b16 %v544
  %v2036 = vunpack.c.h.b16 %v544
  %v2037 = vunpack.c.l.b16 %v545
  %v2038 = vunpack.c.h.b16 %v545
  %v2039 = vunpack.c.l.b16 %v546
  %v2040 = vunpack.c.h.b16 %v546
  %v2041 = vunpack.c.l.b16 %v547
  %v2042 = vunpack.c.h.b16 %v547
  %v2043 = vunpack.c.l.b16 %v548
  %v2044 = vunpack.c.h.b16 %v548
  %v2045 = vunpack.c.l.b16 %v549
  %v2046 = vunpack.c.h.b16 %v549
  %v2047 = vunpack.c.l.b16 %v550
  %v2048 = vunpack.c.h.b16 %v550
  %v2049 = vunpack.c.l.b16 %v551
  %v2050 = vunpack.c.h.b16 %v551
  %v2051 = vunpack.c.l.b16 %v552
  %v2052 = vunpack.c.h.b16 %v552
  %v2053 = vunpack.c.l.b16 %v553
  %v2054 = vunpack.c.h.b16 %v553
  %v2055 = vunpack.c.l.b16 %v554
  %v2056 = vunpack.c.h.b16 %v554
  %v2057 = vunpack.c.l.b16 %v555
  %v2058 = vunpack.c.h.b16 %v555
  %v2059 = vunpack.c.l.b16 %v556
  %v2060 = vunpack.c.h.b16 %v556
  %v2061 = vunpack.c.l.b16 %v557
  %v2062 = vunpack.c.h.b16 %v557
  %v2063 = vunpack.c.l.b16 %v558
  %v2064 = vunpack.c.h.b16 %v558
  %v2065 = vunpack.c.l.b16 %v559
  %v2066 = vunpack.c.h.b16 %v559
  %v2067 = vunpack.c.l.b16 %v560
  %v2068 = vunpack.c.h.b16 %v560
  %v2069 = vunpack.c.l.b16 %v561
  %v2070 = vunpack.c.h.b16 %v561
  %v2071 = vunpack.c.l.b16 %v562
  %v2072 = vunpack.c.h.b16 %v562
  %v2073 = vunpack.c.l.b16 %v563
  %v2074 = vunpack.c.h.b16 %v563
  %v2075 = vunpack.c.l.b16 %v564
  %v2076 = vunpack.c.h.b16 %v564
  %v2077 = vunpack.c.l.b16 %v565
  %v2078 = vunpack.c.h.b16 %v565
  %v2079 = vunpack.c.l.b16 %v566
  %v2080 = vunpack.c.h.b16 %v566
  %v2081 = vunpack.c.l.b16 %v567
  %v2082 = vunpack.c.h.b16 %v567
  %v2083 = vunpack.c.l.b16 %v568
  %v2084 = vunpack.c.h.b16 %v568
  %v2085 = vunpack.c.l.b16 %v569
  %v2086 = vunpack.c.h.b16 %v569
  %v2087 = vunpack.c.l.b16 %v570
  %v2088 = vunpack.c.h.b16 %v570
  %v2089 = vunpack.c.l.b16 %v571
  %v2090 = vunpack.c.h.b16 %v571
  %v2091 = vunpack.c.l.b16 %v572
  %v2092 = vunpack.c.h.b16 %v572
  %v2093 = vunpack.c.l.b16 %v573
  %v2094 = vunpack.c.h.b16 %v573
  %v2095 = vunpack.c.l.b16 %v574
  %v2096 = vunpack.c.h.b16 %v574
  %v2097 = vunpack.c.l.b16 %v575
  %v2098 = vunpack.c.h.b16 %v575
  %v2099 = vunpack.c.l.b16 %v576
  %v2100 = vunpack.c.h.b16 %v576
  %v2101 = vunpack.c.l.b16 %v577
  %v2102 = vunpack.c.h.b16 %v577
  %v2103 = vunpack.c.l.b16 %v578
  %v2104 = vunpack.c.h.b16 %v578
  %v2105 = vunpack.c.l.b16 %v579
  %v2106 = vunpack.c.h.b16 %v579
  %v2107 = vunpack.c.l.b16 %v580
  %v2108 = vunpack.c.h.b16 %v580
  %v2109 = vunpack.c.l.b16 %v581
  %v2110 = vunpack.c.h.b16 %v581
  %v2111 = vunpack.c.l.b16 %v582
  %v2112 = vunpack.c.h.b16 %v582
  %v2113 = vunpack.c.l.b16 %v583
  %v2114 = vunpack.c.h.b16 %v583
  %v2115 = vunpack.c.l.b16 %v584
  %v2116 = vunpack.c.h.b16 %v584
  %v2117 = vunpack.c.l.b16 %v585
  %v2118 = vunpack.c.h.b16 %v585
  %v2119 = vunpack.c.l.b16 %v586
  %v2120 = vunpack.c.h.b16 %v586
  %v2121 = vunpack.c.l.b16 %v587
  %v2122 = vunpack.c.h.b16 %v587
  %v2123 = vunpack.c.l.b16 %v588
  %v2124 = vunpack.c.h.b16 %v588
  %v2125 = vunpack.c.l.b16 %v589
  %v2126 = vunpack.c.h.b16 %v589
  %v2127 = vunpack.c.l.b16 %v590
  %v2128 = vunpack.c.h.b16 %v590
  %v2129 = vunpack.c.l.b16 %v591
  %v2130 = vunpack.c.h.b16 %v591
  %v2131 = vunpack.c.l.b16 %v592
  %v2132 = vunpack.c.h.b16 %v592
  %v2133 = vunpack.c.l.b16 %v593
  %v2134 = vunpack.c.h.b16 %v593
  %v2135 = vunpack.c.l.b16 %v594
  %v2136 = vunpack.c.h.b16 %v594
  %v2137 = vunpack.c.l.b16 %v595
  %v2138 = vunpack.c.h.b16 %v595
  %v2139 = vunpack.c.l.b16 %v596
  %v2140 = vunpack.c.h.b16 %v596
  %v2141 = vunpack.c.l.b16 %v597
  %v2142 = vunpack.c.h.b16 %v597
  %v2143 = vunpack.c.l.b16 %v598
  %v2144 = vunpack.c.h.b16 %v598
  %v2145 = vunpack.c.l.b16 %v599
  %v2146 = vunpack.c.h.b16 %v599
  %v2147 = vunpack.c.l.b16 %v600
  %v2148 = vunpack.c.h.b16 %v600
  %v2149 = vunpack.c.l.b16 %v601
  %v2150 = vunpack.c.h.b16 %v601
  %v2151 = vunpack.c.l.b16 %v602
  %v2152 = vunpack.c.h.b16 %v602
  %v2153 = vunpack.c.l.b16 %v603
  %v2154 = vunpack.c.h.b16 %v603
  %v2155 = vunpack.c.l.b16 %v604
  %v2156 = vunpack.c.h.b16 %v604
  %v2157 = vunpack.c.l.b16 %v605
  %v2158 = vunpack.c.h.b16 %v605
  %v2159 = vunpack.c.l.b16 %v606
  %v2160 = vunpack.c.h.b16 %v606
  %v2161 = vunpack.c.l.b16 %v607
  %v2162 = vunpack.c.h.b16 %v607
  %v2163 = vunpack.c.l.b16 %v608
  %v2164 = vunpack.c.h.b16 %v608
  %v2165 = vunpack.c.l.b16 %v609
  %v2166 = vunpack.c.h.b16 %v609
  %v2167 = vunpack.c.l.b16 %v610
  %v2168 = vunpack.c.h.b16 %v610
  %v2169 = vunpack.c.l.b16 %v611
  %v2170 = vunpack.c.h.b16 %v611
  %v2171 = vunpack.c.l.b16 %v612
  %v2172 = vunpack.c.h.b16 %v612
  %v2173 = vunpack.c.l.b16 %v613
  %v2174 = vunpack.c.h.b16 %v613
  %v2175 = vunpack.c.l.b16 %v614
  %v2176 = vunpack.c.h.b16 %v614
  %v2177 = vunpack.c.l.b16 %v615
  %v2178 = vunpack.c.h.b16 %v615
  %v2179 = vunpack.c.l.b16 %v616
  %v2180 = vunpack.c.h.b16 %v616
  %v2181 = vunpack.c.l.b16 %v617
  %v2182 = vunpack.c.h.b16 %v617
  %v2183 = vunpack.c.l.b16 %v618
  %v2184 = vunpack.c.h.b16 %v618
  %v2185 = vunpack.c.l.b16 %v619
  %v2186 = vunpack.c.h.b16 %v619
  %v2187 = vunpack.c.l.b16 %v620
  %v2188 = vunpack.c.h.b16 %v620
  %v2189 = vunpack.c.l.b16 %v621
  %v2190 = vunpack.c.h.b16 %v621
  %v2191 = vunpack.c.l.b16 %v622
  %v2192 = vunpack.c.h.b16 %v622
  %v2193 = vunpack.c.l.b16 %v623
  %v2194 = vunpack.c.h.b16 %v623
  %v2195 = vunpack.c.l.b16 %v624
  %v2196 = vunpack.c.h.b16 %v624
  %v2197 = vunpack.c.l.b16 %v625
  %v2198 = vunpack.c.h.b16 %v625
  %v2199 = vunpack.c.l.b16 %v626
  %v2200 = vunpack.c.h.b16 %v626
  %v2201 = vunpack.c.l.b16 %v627
  %v2202 = vunpack.c.h.b16 %v627
  %v2203 = vunpack.c.l.b16 %v628
  %v2204 = vunpack.c.h.b16 %v628
  %v2205 = vunpack.c.l.b16 %v629
  %v2206 = vunpack.c.h.b16 %v629
  %v2207 = vunpack.c.l.b16 %v630
  %v2208 = vunpack.c.h.b16 %v630
  %v2209 = vpack.c.b16 %v1193, %v1185
  %v2210 = vpack.c.b16 %v1194, %v1186
  %v2211 = vpack.c.b16 %v1195, %v1187
  %v2212 = vpack.c.b16 %v1196, %v1188
  %v2213 = vpack.c.b16 %v1197, %v1189
  %v2214 = vpack.c.b16 %v1198, %v1190
  %v2215 = vpack.c.b16 %v1199, %v1191
  %v2216 = vpack.c.b16 %v1200, %v1192
  %v2217 = vpack.c.b16 %v1209, %v1201
  %v2218 = vpack.c.b16 %v1210, %v1202
  %v2219 = vpack.c.b16 %v1211, %v1203
  %v2220 = vpack.c.b16 %v1212, %v1204
  %v2221 = vpack.c.b16 %v1213, %v1205
  %v2222 = vpack.c.b16 %v1214, %v1206
  %v2223 = vpack.c.b16 %v1215, %v1207
  %v2224 = vpack.c.b16 %v1216, %v1208
  %v2225 = vpack.c.b16 %v1225, %v1217
  %v2226 = vpack.c.b16 %v1226, %v1218
  %v2227 = vpack.c.b16 %v1227, %v1219
  %v2228 = vpack.c.b16 %v1228, %v1220
  %v2229 = vpack.c.b16 %v1229, %v1221
  %v2230 = vpack.c.b16 %v1230, %v1222
  %v2231 = vpack.c.b16 %v1231, %v1223
  %v2232 = vpack.c.b16 %v1232, %v1224
  %v2233 = vpack.c.b16 %v1241, %v1233
  %v2234 = vpack.c.b16 %v1242, %v1234
  %v2235 = vpack.c.b16 %v1243, %v1235
  %v2236 = vpack.c.b16 %v1244, %v1236
  %v2237 = vpack.c.b16 %v1245, %v1237
  %v2238 = vpack.c.b16 %v1246, %v1238
  %v2239 = vpack.c.b16 %v1247, %v1239
  %v2240 = vpack.c.b16 %v1248, %v1240
  %v2241 = vpack.c.b16 %v1257, %v1249
  %v2242 = vpack.c.b16 %v1258, %v1250
  %v2243 = vpack.c.b16 %v1259, %v1251
  %v2244 = vpack.c.b16 %v1260, %v1252
  %v2245 = vpack.c.b16 %v1261, %v1253
  %v2246 = vpack.c.b16 %v1262, %v1254
  %v2247 = vpack.c.b16 %v1263, %v1255
  %v2248 = vpack.c.b16 %v1264, %v1256
  %v2249 = vpack.c.b16 %v1273, %v1265
  %v2250 = vpack.c.b16 %v1274, %v1266
  %v2251 = vpack.c.b16 %v1275, %v1267
  %v2252 = vpack.c.b16 %v1276, %v1268
  %v2253 = vpack.c.b16 %v1277, %v1269
  %v2254 = vpack.c.b16 %v1278, %v1270
  %v2255 = vpack.c.b16 %v1279, %v1271
  %v2256 = vpack.c.b16 %v1280, %v1272
  %v2257 = vpack.c.b16 %v1289, %v1281
  %v2258 = vpack.c.b16 %v1290, %v1282
  %v2259 = vpack.c.b16 %v1291, %v1283
  %v2260 = vpack.c.b16 %v1292, %v1284
  %v2261 = vpack.c.b16 %v1293, %v1285
  %v2262 = vpack.c.b16 %v1294, %v1286
  %v2263 = vpack.c.b16 %v1295, %v1287
  %v2264 = vpack.c.b16 %v1296, %v1288
  %v2265 = vpack.c.b16 %v1305, %v1297
  %v2266 = vpack.c.b16 %v1306, %v1298
  %v2267 = vpack.c.b16 %v1307, %v1299
  %v2268 = vpack.c.b16 %v1308, %v1300
  %v2269 = vpack.c.b16 %v1309, %v1301
  %v2270 = vpack.c.b16 %v1310, %v1302
  %v2271 = vpack.c.b16 %v1311, %v1303
  %v2272 = vpack.c.b16 %v1312, %v1304
  %v2273 = vpack.c.b16 %v1321, %v1313
  %v2274 = vpack.c.b16 %v1322, %v1314
  %v2275 = vpack.c.b16 %v1323, %v1315
  %v2276 = vpack.c.b16 %v1324, %v1316
  %v2277 = vpack.c.b16 %v1325, %v1317
  %v2278 = vpack.c.b16 %v1326, %v1318
  %v2279 = vpack.c.b16 %v1327, %v1319
  %v2280 = vpack.c.b16 %v1328, %v1320
  %v2281 = vpack.c.b16 %v1337, %v1329
  %v2282 = vpack.c.b16 %v1338, %v1330
  %v2283 = vpack.c.b16 %v1339, %v1331
  %v2284 = vpack.c.b16 %v1340, %v1332
  %v2285 = vpack.c.b16 %v1341, %v1333
  %v2286 = vpack.c.b16 %v1342, %v1334
  %v2287 = vpack.c.b16 %v1343, %v1335
  %v2288 = vpack.c.b16 %v1344, %v1336
  %v2289 = vpack.c.b16 %v1353, %v1345
  %v2290 = vpack.c.b16 %v1354, %v1346
  %v2291 = vpack.c.b16 %v1355, %v1347
  %v2292 = vpack.c.b16 %v1356, %v1348
  %v2293 = vpack.c.b16 %v1357, %v1349
  %v2294 = vpack.c.b16 %v1358, %v1350
  %v2295 = vpack.c.b16 %v1359, %v1351
  %v2296 = vpack.c.b16 %v1360, %v1352
  %v2297 = vpack.c.b16 %v1369, %v1361
  %v2298 = vpack.c.b16 %v1370, %v1362
  %v2299 = vpack.c.b16 %v1371, %v1363
  %v2300 = vpack.c.b16 %v1372, %v1364
  %v2301 = vpack.c.b16 %v1373, %v1365
  %v2302 = vpack.c.b16 %v1374, %v1366
  %v2303 = vpack.c.b16 %v1375, %v1367
  %v2304 = vpack.c.b16 %v1376, %v1368
  %v2305 = vpack.c.b16 %v1385, %v1377
  %v2306 = vpack.c.b16 %v1386, %v1378
  %v2307 = vpack.c.b16 %v1387, %v1379
  %v2308 = vpack.c.b16 %v1388, %v1380
  %v2309 = vpack.c.b16 %v1389, %v1381
  %v2310 = vpack.c.b16 %v1390, %v1382
  %v2311 = vpack.c.b16 %v1391, %v1383
  %v2312 = vpack.c.b16 %v1392, %v1384
  %v2313 = vpack.c.b16 %v1401, %v1393
  %v2314 = vpack.c.b16 %v1402, %v1394
  %v2315 = vpack.c.b16 %v1403, %v1395
  %v2316 = vpack.c.b16 %v1404, %v1396
  %v2317 = vpack.c.b16 %v1405, %v1397
  %v2318 = vpack.c.b16 %v1406, %v1398
  %v2319 = vpack.c.b16 %v1407, %v1399
  %v2320 = vpack.c.b16 %v1408, %v1400
  %v2321 = vpack.c.b16 %v1417, %v1409
  %v2322 = vpack.c.b16 %v1418, %v1410
  %v2323 = vpack.c.b16 %v1419, %v1411
  %v2324 = vpack.c.b16 %v1420, %v1412
  %v2325 = vpack.c.b16 %v1421, %v1413
  %v2326 = vpack.c.b16 %v1422, %v1414
  %v2327 = vpack.c.b16 %v1423, %v1415
  %v2328 = vpack.c.b16 %v1424, %v1416
  %v2329 = vpack.c.b16 %v1433, %v1425
  %v2330 = vpack.c.b16 %v1434, %v1426
  %v2331 = vpack.c.b16 %v1435, %v1427
  %v2332 = vpack.c.b16 %v1436, %v1428
  %v2333 = vpack.c.b16 %v1437, %v1429
  %v2334 = vpack.c.b16 %v1438, %v1430
  %v2335 = vpack.c.b16 %v1439, %v1431
  %v2336 = vpack.c.b16 %v1440, %v1432
  %v2337 = vpack.c.b16 %v1449, %v1441
  %v2338 = vpack.c.b16 %v1450, %v1442
  %v2339 = vpack.c.b16 %v1451, %v1443
  %v2340 = vpack.c.b16 %v1452, %v1444
  %v2341 = vpack.c.b16 %v1453, %v1445
  %v2342 = vpack.c.b16 %v1454, %v1446
  %v2343 = vpack.c.b16 %v1455, %v1447
  %v2344 = vpack.c.b16 %v1456, %v1448
  %v2345 = vpack.c.b16 %v1465, %v1457
  %v2346 = vpack.c.b16 %v1466, %v1458
  %v2347 = vpack.c.b16 %v1467, %v1459
  %v2348 = vpack.c.b16 %v1468, %v1460
  %v2349 = vpack.c.b16 %v1469, %v1461
  %v2350 = vpack.c.b16 %v1470, %v1462
  %v2351 = vpack.c.b16 %v1471, %v1463
  %v2352 = vpack.c.b16 %v1472, %v1464
  %v2353 = vpack.c.b16 %v1481, %v1473
  %v2354 = vpack.c.b16 %v1482, %v1474
  %v2355 = vpack.c.b16 %v1483, %v1475
  %v2356 = vpack.c.b16 %v1484, %v1476
  %v2357 = vpack.c.b16 %v1485, %v1477
  %v2358 = vpack.c.b16 %v1486, %v1478
  %v2359 = vpack.c.b16 %v1487, %v1479
  %v2360 = vpack.c.b16 %v1488, %v1480
  %v2361 = vpack.c.b16 %v1497, %v1489
  %v2362 = vpack.c.b16 %v1498, %v1490
  %v2363 = vpack.c.b16 %v1499, %v1491
  %v2364 = vpack.c.b16 %v1500, %v1492
  %v2365 = vpack.c.b16 %v1501, %v1493
  %v2366 = vpack.c.b16 %v1502, %v1494
  %v2367 = vpack.c.b16 %v1503, %v1495
  %v2368 = vpack.c.b16 %v1504, %v1496
  %v2369 = vpack.c.b16 %v1513, %v1505
  %v2370 = vpack.c.b16 %v1514, %v1506
  %v2371 = vpack.c.b16 %v1515, %v1507
  %v2372 = vpack.c.b16 %v1516, %v1508
  %v2373 = vpack.c.b16 %v1517, %v1509
  %v2374 = vpack.c.b16 %v1518, %v1510
  %v2375 = vpack.c.b16 %v1519, %v1511
  %v2376 = vpack.c.b16 %v1520, %v1512
  %v2377 = vpack.c.b16 %v1529, %v1521
  %v2378 = vpack.c.b16 %v1530, %v1522
  %v2379 = vpack.c.b16 %v1531, %v1523
  %v2380 = vpack.c.b16 %v1532, %v1524
  %v2381 = vpack.c.b16 %v1533, %v1525
  %v2382 = vpack.c.b16 %v1534, %v1526
  %v2383 = vpack.c.b16 %v1535, %v1527
  %v2384 = vpack.c.b16 %v1536, %v1528
  %v2385 = vpack.c.b16 %v1545, %v1537
  %v2386 = vpack.c.b16 %v1546, %v1538
  %v2387 = vpack.c.b16 %v1547, %v1539
  %v2388 = vpack.c.b16 %v1548, %v1540
  %v2389 = vpack.c.b16 %v1549, %v1541
  %v2390 = vpack.c.b16 %v1550, %v1542
  %v2391 = vpack.c.b16 %v1551, %v1543
  %v2392 = vpack.c.b16 %v1552, %v1544
  %v2393 = vpack.c.b16 %v1561, %v1553
  %v2394 = vpack.c.b16 %v1562, %v1554
  %v2395 = vpack.c.b16 %v1563, %v1555
  %v2396 = vpack.c.b16 %v1564, %v1556
  %v2397 = vpack.c.b16 %v1565, %v1557
  %v2398 = vpack.c.b16 %v1566, %v1558
  %v2399 = vpack.c.b16 %v1567, %v1559
  %v2400 = vpack.c.b16 %v1568, %v1560
  %v2401 = vpack.c.b16 %v1577, %v1569
  %v2402 = vpack.c.b16 %v1578, %v1570
  %v2403 = vpack.c.b16 %v1579, %v1571
  %v2404 = vpack.c.b16 %v1580, %v1572
  %v2405 = vpack.c.b16 %v1581, %v1573
  %v2406 = vpack.c.b16 %v1582, %v1574
  %v2407 = vpack.c.b16 %v1583, %v1575
  %v2408 = vpack.c.b16 %v1584, %v1576
  %v2409 = vpack.c.b16 %v1593, %v1585
  %v2410 = vpack.c.b16 %v1594, %v1586
  %v2411 = vpack.c.b16 %v1595, %v1587
  %v2412 = vpack.c.b16 %v1596, %v1588
  %v2413 = vpack.c.b16 %v1597, %v1589
  %v2414 = vpack.c.b16 %v1598, %v1590
  %v2415 = vpack.c.b16 %v1599, %v1591
  %v2416 = vpack.c.b16 %v1600, %v1592
  %v2417 = vpack.c.b16 %v1609, %v1601
  %v2418 = vpack.c.b16 %v1610, %v1602
  %v2419 = vpack.c.b16 %v1611, %v1603
  %v2420 = vpack.c.b16 %v1612, %v1604
  %v2421 = vpack.c.b16 %v1613, %v1605
  %v2422 = vpack.c.b16 %v1614, %v1606
  %v2423 = vpack.c.b16 %v1615, %v1607
  %v2424 = vpack.c.b16 %v1616, %v1608
  %v2425 = vpack.c.b16 %v1625, %v1617
  %v2426 = vpack.c.b16 %v1626, %v1618
  %v2427 = vpack.c.b16 %v1627, %v1619
  %v2428 = vpack.c.b16 %v1628, %v1620
  %v2429 = vpack.c.b16 %v1629, %v1621
  %v2430 = vpack.c.b16 %v1630, %v1622
  %v2431 = vpack.c.b16 %v1631, %v1623
  %v2432 = vpack.c.b16 %v1632, %v1624
  %v2433 = vpack.c.b16 %v1641, %v1633
  %v2434 = vpack.c.b16 %v1642, %v1634
  %v2435 = vpack.c.b16 %v1643, %v1635
  %v2436 = vpack.c.b16 %v1644, %v1636
  %v2437 = vpack.c.b16 %v1645, %v1637
  %v2438 = vpack.c.b16 %v1646, %v1638
  %v2439 = vpack.c.b16 %v1647, %v1639
  %v2440 = vpack.c.b16 %v1648, %v1640
  %v2441 = vpack.c.b16 %v1657, %v1649
  %v2442 = vpack.c.b16 %v1658, %v1650
  %v2443 = vpack.c.b16 %v1659, %v1651
  %v2444 = vpack.c.b16 %v1660, %v1652
  %v2445 = vpack.c.b16 %v1661, %v1653
  %v2446 = vpack.c.b16 %v1662, %v1654
  %v2447 = vpack.c.b16 %v1663, %v1655
  %v2448 = vpack.c.b16 %v1664, %v1656
  %v2449 = vpack.c.b16 %v1673, %v1665
  %v2450 = vpack.c.b16 %v1674, %v1666
  %v2451 = vpack.c.b16 %v1675, %v1667
  %v2452 = vpack.c.b16 %v1676, %v1668
  %v2453 = vpack.c.b16 %v1677, %v1669
  %v2454 = vpack.c.b16 %v1678, %v1670
  %v2455 = vpack.c.b16 %v1679, %v1671
  %v2456 = vpack.c.b16 %v1680, %v1672
  %v2457 = vpack.c.b16 %v1689, %v1681
  %v2458 = vpack.c.b16 %v1690, %v1682
  %v2459 = vpack.c.b16 %v1691, %v1683
  %v2460 = vpack.c.b16 %v1692, %v1684
  %v2461 = vpack.c.b16 %v1693, %v1685
  %v2462 = vpack.c.b16 %v1694, %v1686
  %v2463 = vpack.c.b16 %v1695, %v1687
  %v2464 = vpack.c.b16 %v1696, %v1688
  %v2465 = vpack.c.b16 %v1705, %v1697
  %v2466 = vpack.c.b16 %v1706, %v1698
  %v2467 = vpack.c.b16 %v1707, %v1699
  %v2468 = vpack.c.b16 %v1708, %v1700
  %v2469 = vpack.c.b16 %v1709, %v1701
  %v2470 = vpack.c.b16 %v1710, %v1702
  %v2471 = vpack.c.b16 %v1711, %v1703
  %v2472 = vpack.c.b16 %v1712, %v1704
  %v2473 = vpack.c.b16 %v1721, %v1713
  %v2474 = vpack.c.b16 %v1722, %v1714
  %v2475 = vpack.c.b16 %v1723, %v1715
  %v2476 = vpack.c.b16 %v1724, %v1716
  %v2477 = vpack.c.b16 %v1725, %v1717
  %v2478 = vpack.c.b16 %v1726, %v1718
  %v2479 = vpack.c.b16 %v1727, %v1719
  %v2480 = vpack.c.b16 %v1728, %v1720
  %v2481 = vpack.c.b16 %v1737, %v1729
  %v2482 = vpack.c.b16 %v1738, %v1730
  %v2483 = vpack.c.b16 %v1739, %v1731
  %v2484 = vpack.c.b16 %v1740, %v1732
  %v2485 = vpack.c.b16 %v1741, %v1733
  %v2486 = vpack.c.b16 %v1742, %v1734
  %v2487 = vpack.c.b16 %v1743, %v1735
  %v2488 = vpack.c.b16 %v1744, %v1736
  %v2489 = vpack.c.b16 %v1753, %v1745
  %v2490 = vpack.c.b16 %v1754, %v1746
  %v2491 = vpack.c.b16 %v1755, %v1747
  %v2492 = vpack.c.b16 %v1756, %v1748
  %v2493 = vpack.c.b16 %v1757, %v1749
  %v2494 = vpack.c.b16 %v1758, %v1750
  %v2495 = vpack.c.b16 %v1759, %v1751
  %v2496 = vpack.c.b16 %v1760, %v1752
  %v2497 = vpack.c.b16 %v1769, %v1761
  %v2498 = vpack.c.b16 %v1770, %v1762
  %v2499 = vpack.c.b16 %v1771, %v1763
  %v2500 = vpack.c.b16 %v1772, %v1764
  %v2501 = vpack.c.b16 %v1773, %v1765
  %v2502 = vpack.c.b16 %v1774, %v1766
  %v2503 = vpack.c.b16 %v1775, %v1767
  %v2504 = vpack.c.b16 %v1776, %v1768
  %v2505 = vpack.c.b16 %v1785, %v1777
  %v2506 = vpack.c.b16 %v1786, %v1778
  %v2507 = vpack.c.b16 %v1787, %v1779
  %v2508 = vpack.c.b16 %v1788, %v1780
  %v2509 = vpack.c.b16 %v1789, %v1781
  %v2510 = vpack.c.b16 %v1790, %v1782
  %v2511 = vpack.c.b16 %v1791, %v1783
  %v2512 = vpack.c.b16 %v1792, %v1784
  %v2513 = vpack.c.b16 %v1801, %v1793
  %v2514 = vpack.c.b16 %v1802, %v1794
  %v2515 = vpack.c.b16 %v1803, %v1795
  %v2516 = vpack.c.b16 %v1804, %v1796
  %v2517 = vpack.c.b16 %v1805, %v1797
  %v2518 = vpack.c.b16 %v1806, %v1798
  %v2519 = vpack.c.b16 %v1807, %v1799
  %v2520 = vpack.c.b16 %v1808, %v1800
  %v2521 = vpack.c.b16 %v1817, %v1809
  %v2522 = vpack.c.b16 %v1818, %v1810
  %v2523 = vpack.c.b16 %v1819, %v1811
  %v2524 = vpack.c.b16 %v1820, %v1812
  %v2525 = vpack.c.b16 %v1821, %v1813
  %v2526 = vpack.c.b16 %v1822, %v1814
  %v2527 = vpack.c.b16 %v1823, %v1815
  %v2528 = vpack.c.b16 %v1824, %v1816
  %v2529 = vpack.c.b16 %v1833, %v1825
  %v2530 = vpack.c.b16 %v1834, %v1826
  %v2531 = vpack.c.b16 %v1835, %v1827
  %v2532 = vpack.c.b16 %v1836, %v1828
  %v2533 = vpack.c.b16 %v1837, %v1829
  %v2534 = vpack.c.b16 %v1838, %v1830
  %v2535 = vpack.c.b16 %v1839, %v1831
  %v2536 = vpack.c.b16 %v1840, %v1832
  %v2537 = vpack.c.b16 %v1849, %v1841
  %v2538 = vpack.c.b16 %v1850, %v1842
  %v2539 = vpack.c.b16 %v1851, %v1843
  %v2540 = vpack.c.b16 %v1852, %v1844
  %v2541 = vpack.c.b16 %v1853, %v1845
  %v2542 = vpack.c.b16 %v1854, %v1846
  %v2543 = vpack.c.b16 %v1855, %v1847
  %v2544 = vpack.c.b16 %v1856, %v1848
  %v2545 = vpack.c.b16 %v1865, %v1857
  %v2546 = vpack.c.b16 %v1866, %v1858
  %v2547 = vpack.c.b16 %v1867, %v1859
  %v2548 = vpack.c.b16 %v1868, %v1860
  %v2549 = vpack.c.b16 %v1869, %v1861
  %v2550 = vpack.c.b16 %v1870, %v1862
  %v2551 = vpack.c.b16 %v1871, %v1863
  %v2552 = vpack.c.b16 %v1872, %v1864
  %v2553 = vpack.c.b16 %v1881, %v1873
  %v2554 = vpack.c.b16 %v1882, %v1874
  %v2555 = vpack.c.b16 %v1883, %v1875
  %v2556 = vpack.c.b16 %v1884, %v1876
  %v2557 = vpack.c.b16 %v1885, %v1877
  %v2558 = vpack.c.b16 %v1886, %v1878
  %v2559 = vpack.c.b16 %v1887, %v1879
  %v2560 = vpack.c.b16 %v1888, %v1880
  %v2561 = vpack.c.b16 %v1897, %v1889
  %v2562 = vpack.c.b16 %v1898, %v1890
  %v2563 = vpack.c.b16 %v1899, %v1891
  %v2564 = vpack.c.b16 %v1900, %v1892
  %v2565 = vpack.c.b16 %v1901, %v1893
  %v2566 = vpack.c.b16 %v1902, %v1894
  %v2567 = vpack.c.b16 %v1903, %v1895
  %v2568 = vpack.c.b16 %v1904, %v1896
  %v2569 = vpack.c.b16 %v1913, %v1905
  %v2570 = vpack.c.b16 %v1914, %v1906
  %v2571 = vpack.c.b16 %v1915, %v1907
  %v2572 = vpack.c.b16 %v1916, %v1908
  %v2573 = vpack.c.b16 %v1917, %v1909
  %v2574 = vpack.c.b16 %v1918, %v1910
  %v2575 = vpack.c.b16 %v1919, %v1911
  %v2576 = vpack.c.b16 %v1920, %v1912
  %v2577 = vpack.c.b16 %v1929, %v1921
  %v2578 = vpack.c.b16 %v1930, %v1922
  %v2579 = vpack.c.b16 %v1931, %v1923
  %v2580 = vpack.c.b16 %v1932, %v1924
  %v2581 = vpack.c.b16 %v1933, %v1925
  %v2582 = vpack.c.b16 %v1934, %v1926
  %v2583 = vpack.c.b16 %v1935, %v1927
  %v2584 = vpack.c.b16 %v1936, %v1928
  %v2585 = vpack.c.b16 %v1945, %v1937
  %v2586 = vpack.c.b16 %v1946, %v1938
  %v2587 = vpack.c.b16 %v1947, %v1939
  %v2588 = vpack.c.b16 %v1948, %v1940
  %v2589 = vpack.c.b16 %v1949, %v1941
  %v2590 = vpack.c.b16 %v1950, %v1942
  %v2591 = vpack.c.b16 %v1951, %v1943
  %v2592 = vpack.c.b16 %v1952, %v1944
  %v2593 = vpack.c.b16 %v1961, %v1953
  %v2594 = vpack.c.b16 %v1962, %v1954
  %v2595 = vpack.c.b16 %v1963, %v1955
  %v2596 = vpack.c.b16 %v1964, %v1956
  %v2597 = vpack.c.b16 %v1965, %v1957
  %v2598 = vpack.c.b16 %v1966, %v1958
  %v2599 = vpack.c.b16 %v1967, %v1959
  %v2600 = vpack.c.b16 %v1968, %v1960
  %v2601 = vpack.c.b16 %v1977, %v1969
  %v2602 = vpack.c.b16 %v1978, %v1970
  %v2603 = vpack.c.b16 %v1979, %v1971
  %v2604 = vpack.c.b16 %v1980, %v1972
  %v2605 = vpack.c.b16 %v1981, %v1973
  %v2606 = vpack.c.b16 %v1982, %v1974
  %v2607 = vpack.c.b16 %v1983, %v1975
  %v2608 = vpack.c.b16 %v1984, %v1976
  %v2609 = vpack.c.b16 %v1993, %v1985
  %v2610 = vpack.c.b16 %v1994, %v1986
  %v2611 = vpack.c.b16 %v1995, %v1987
  %v2612 = vpack.c.b16 %v1996, %v1988
  %v2613 = vpack.c.b16 %v1997, %v1989
  %v2614 = vpack.c.b16 %v1998, %v1990
  %v2615 = vpack.c.b16 %v1999, %v1991
  %v2616 = vpack.c.b16 %v2000, %v1992
  %v2617 = vpack.c.b16 %v2009, %v2001
  %v2618 = vpack.c.b16 %v2010, %v2002
  %v2619 = vpack.c.b16 %v2011, %v2003
  %v2620 = vpack.c.b16 %v2012, %v2004
  %v2621 = vpack.c.b16 %v2013, %v2005
  %v2622 = vpack.c.b16 %v2014, %v2006
  %v2623 = vpack.c.b16 %v2015, %v2007
  %v2624 = vpack.c.b16 %v2016, %v2008
  %v2625 = vpack.c.b16 %v2025, %v2017
  %v2626 = vpack.c.b16 %v2026, %v2018
  %v2627 = vpack.c.b16 %v2027, %v2019
  %v2628 = vpack.c.b16 %v2028, %v2020
  %v2629 = vpack.c.b16 %v2029, %v2021
  %v2630 = vpack.c.b16 %v2030, %v2022
  %v2631 = vpack.c.b16 %v2031, %v2023
  %v2632 = vpack.c.b16 %v2032, %v2024
  %v2633 = vpack.c.b16 %v2041, %v2033
  %v2634 = vpack.c.b16 %v2042, %v2034
  %v2635 = vpack.c.b16 %v2043, %v2035
  %v2636 = vpack.c.b16 %v2044, %v2036
  %v2637 = vpack.c.b16 %v2045, %v2037
  %v2638 = vpack.c.b16 %v2046, %v2038
  %v2639 = vpack.c.b16 %v2047, %v2039
  %v2640 = vpack.c.b16 %v2048, %v2040
  %v2641 = vpack.c.b16 %v2057, %v2049
  %v2642 = vpack.c.b16 %v2058, %v2050
  %v2643 = vpack.c.b16 %v2059, %v2051
  %v2644 = vpack.c.b16 %v2060, %v2052
  %v2645 = vpack.c.b16 %v2061, %v2053
  %v2646 = vpack.c.b16 %v2062, %v2054
  %v2647 = vpack.c.b16 %v2063, %v2055
  %v2648 = vpack.c.b16 %v2064, %v2056
  %v2649 = vpack.c.b16 %v2073, %v2065
  %v2650 = vpack.c.b16 %v2074, %v2066
  %v2651 = vpack.c.b16 %v2075, %v2067
  %v2652 = vpack.c.b16 %v2076, %v2068
  %v2653 = vpack.c.b16 %v2077, %v2069
  %v2654 = vpack.c.b16 %v2078, %v2070
  %v2655 = vpack.c.b16 %v2079, %v2071
  %v2656 = vpack.c.b16 %v2080, %v2072
  %v2657 = vpack.c.b16 %v2089, %v2081
  %v2658 = vpack.c.b16 %v2090, %v2082
  %v2659 = vpack.c.b16 %v2091, %v2083
  %v2660 = vpack.c.b16 %v2092, %v2084
  %v2661 = vpack.c.b16 %v2093, %v2085
  %v2662 = vpack.c.b16 %v2094, %v2086
  %v2663 = vpack.c.b16 %v2095, %v2087
  %v2664 = vpack.c.b16 %v2096, %v2088
  %v2665 = vpack.c.b16 %v2105, %v2097
  %v2666 = vpack.c.b16 %v2106, %v2098
  %v2667 = vpack.c.b16 %v2107, %v2099
  %v2668 = vpack.c.b16 %v2108, %v2100
  %v2669 = vpack.c.b16 %v2109, %v2101
  %v2670 = vpack.c.b16 %v2110, %v2102
  %v2671 = vpack.c.b16 %v2111, %v2103
  %v2672 = vpack.c.b16 %v2112, %v2104
  %v2673 = vpack.c.b16 %v2121, %v2113
  %v2674 = vpack.c.b16 %v2122, %v2114
  %v2675 = vpack.c.b16 %v2123, %v2115
  %v2676 = vpack.c.b16 %v2124, %v2116
  %v2677 = vpack.c.b16 %v2125, %v2117
  %v2678 = vpack.c.b16 %v2126, %v2118
  %v2679 = vpack.c.b16 %v2127, %v2119
  %v2680 = vpack.c.b16 %v2128, %v2120
  %v2681 = vpack.c.b16 %v2137, %v2129
  %v2682 = vpack.c.b16 %v2138, %v2130
  %v2683 = vpack.c.b16 %v2139, %v2131
  %v2684 = vpack.c.b16 %v2140, %v2132
  %v2685 = vpack.c.b16 %v2141, %v2133
  %v2686 = vpack.c.b16 %v2142, %v2134
  %v2687 = vpack.c.b16 %v2143, %v2135
  %v2688 = vpack.c.b16 %v2144, %v2136
  %v2689 = vpack.c.b16 %v2153, %v2145
  %v2690 = vpack.c.b16 %v2154, %v2146
  %v2691 = vpack.c.b16 %v2155, %v2147
  %v2692 = vpack.c.b16 %v2156, %v2148
  %v2693 = vpack.c.b16 %v2157, %v2149
  %v2694 = vpack.c.b16 %v2158, %v2150
  %v2695 = vpack.c.b16 %v2159, %v2151
  %v2696 = vpack.c.b16 %v2160, %v2152
  %v2697 = vpack.c.b16 %v2169, %v2161
  %v2698 = vpack.c.b16 %v2170, %v2162
  %v2699 = vpack.c.b16 %v2171, %v2163
  %v2700 = vpack.c.b16 %v2172, %v2164
  %v2701 = vpack.c.b16 %v2173, %v2165
  %v2702 = vpack.c.b16 %v2174, %v2166
  %v2703 = vpack.c.b16 %v2175, %v2167
  %v2704 = vpack.c.b16 %v2176, %v2168
  %v2705 = vpack.c.b16 %v2185, %v2177
  %v2706 = vpack.c.b16 %v2186, %v2178
  %v2707 = vpack.c.b16 %v2187, %v2179
  %v2708 = vpack.c.b16 %v2188, %v2180
  %v2709 = vpack.c.b16 %v2189, %v2181
  %v2710 = vpack.c.b16 %v2190, %v2182
  %v2711 = vpack.c.b16 %v2191, %v2183
  %v2712 = vpack.c.b16 %v2192, %v2184
  %v2713 = vpack.c.b16 %v2201, %v2193
  %v2714 = vpack.c.b16 %v2202, %v2194
  %v2715 = vpack.c.b16 %v2203, %v2195
  %v2716 = vpack.c.b16 %v2204, %v2196
  %v2717 = vpack.c.b16 %v2205, %v2197
  %v2718 = vpack.c.b16 %v2206, %v2198
  %v2719 = vpack.c.b16 %v2207, %v2199
  %v2720 = vpack.c.b16 %v2208, %v2200
  %3233 = vmatprep.subr.bf16.mxu0 %v2210
  %3234 = vmatpush1.bf16.msra.mxu0 %v2209
  %3235 = vmatprep.subr.bf16.mxu0 %v2218
  %3236 = vmatpush1.bf16.msra.mxu0 %v2217
  %3237 = vmatprep.subr.bf16.mxu0 %v2226
  %3238 = vmatpush1.bf16.msra.mxu0 %v2225
  %3239 = vmatprep.subr.bf16.mxu0 %v2234
  %3240 = vmatpush1.bf16.msra.mxu0 %v2233
  %3241 = vmatprep.subr.bf16.mxu0 %v2242
  %3242 = vmatpush1.bf16.msra.mxu0 %v2241
  %3243 = vmatprep.subr.bf16.mxu0 %v2250
  %3244 = vmatpush1.bf16.msra.mxu0 %v2249
  %3245 = vmatprep.subr.bf16.mxu0 %v2258
  %3246 = vmatpush1.bf16.msra.mxu0 %v2257
  %3247 = vmatprep.subr.bf16.mxu0 %v2266
  %3248 = vmatpush1.bf16.msra.mxu0 %v2265
  %3249 = vmatprep.subr.bf16.mxu0 %v2274
  %3250 = vmatpush1.bf16.msra.mxu0 %v2273
  %3251 = vmatprep.subr.bf16.mxu0 %v2282
  %3252 = vmatpush1.bf16.msra.mxu0 %v2281
  %3253 = vmatprep.subr.bf16.mxu0 %v2290
  %3254 = vmatpush1.bf16.msra.mxu0 %v2289
  %3255 = vmatprep.subr.bf16.mxu0 %v2298
  %3256 = vmatpush1.bf16.msra.mxu0 %v2297
  %3257 = vmatprep.subr.bf16.mxu0 %v2306
  %3258 = vmatpush1.bf16.msra.mxu0 %v2305
  %3259 = vmatprep.subr.bf16.mxu0 %v2314
  %3260 = vmatpush1.bf16.msra.mxu0 %v2313
  %3261 = vmatprep.subr.bf16.mxu0 %v2322
  %3262 = vmatpush1.bf16.msra.mxu0 %v2321
  %3263 = vmatprep.subr.bf16.mxu0 %v2330
  %3264 = vmatpush1.bf16.msra.mxu0 %v2329
  %3265 = vmatprep.mubr.bf16.mxu0 %v112
  %3266 = vmatmul.mubr.bf16.gmra.mrb[0].mxu0 %v111
  %v3267 = vpop.f32.mrb[0].mxu0
  %v3268 = vadd.f32 %v636, %v3267
  %v3269 = vpop.f32.mrb[0].mxu0
  %v3270 = vadd.f32 %v640, %v3269
  %v3271 = vpop.f32.mrb[0].mxu0
  %v3272 = vpop.f32.mrb[0].mxu0
  %3273 = vdwg.mxu0
  %3274 = vmatprep.subr.bf16.mxu0 %v2338
  %3275 = vmatpush1.bf16.msra.mxu0 %v2337
  %3276 = vmatprep.subr.bf16.mxu0 %v2346
  %3277 = vmatpush1.bf16.msra.mxu0 %v2345
  %3278 = vmatprep.subr.bf16.mxu0 %v2354
  %3279 = vmatpush1.bf16.msra.mxu0 %v2353
  %3280 = vmatprep.subr.bf16.mxu0 %v2362
  %3281 = vmatpush1.bf16.msra.mxu0 %v2361
  %3282 = vmatprep.subr.bf16.mxu0 %v2370
  %3283 = vmatpush1.bf16.msra.mxu0 %v2369
  %3284 = vmatprep.subr.bf16.mxu0 %v2378
  %3285 = vmatpush1.bf16.msra.mxu0 %v2377
  %3286 = vmatprep.subr.bf16.mxu0 %v2386
  %3287 = vmatpush1.bf16.msra.mxu0 %v2385
  %3288 = vmatprep.subr.bf16.mxu0 %v2394
  %3289 = vmatpush1.bf16.msra.mxu0 %v2393
  %3290 = vmatprep.subr.bf16.mxu0 %v2402
  %3291 = vmatpush1.bf16.msra.mxu0 %v2401
  %3292 = vmatprep.subr.bf16.mxu0 %v2410
  %3293 = vmatpush1.bf16.msra.mxu0 %v2409
  %3294 = vmatprep.subr.bf16.mxu0 %v2418
  %3295 = vmatpush1.bf16.msra.mxu0 %v2417
  %3296 = vmatprep.subr.bf16.mxu0 %v2426
  %3297 = vmatpush1.bf16.msra.mxu0 %v2425
  %3298 = vmatprep.subr.bf16.mxu0 %v2434
  %3299 = vmatpush1.bf16.msra.mxu0 %v2433
  %3300 = vmatprep.subr.bf16.mxu0 %v2442
  %3301 = vmatpush1.bf16.msra.mxu0 %v2441
  %3302 = vmatprep.subr.bf16.mxu0 %v2450
  %3303 = vmatpush1.bf16.msra.mxu0 %v2449
  %3304 = vmatprep.subr.bf16.mxu0 %v2458
  %3305 = vmatpush1.bf16.msra.mxu0 %v2457
  %3306 = vmatprep.mubr.bf16.mxu0 %v114
  %3307 = vmatmul.mubr.bf16.gmra.mrb[0].mxu0 %v113
  %v3308 = vpop.f32.mrb[0].mxu0
  %v3309 = vadd.f32 %v3268, %v3308
  %v3310 = vpop.f32.mrb[0].mxu0
  %v3311 = vadd.f32 %v3270, %v3310
  %v3312 = vpop.f32.mrb[0].mxu0
  %v3313 = vpop.f32.mrb[0].mxu0
  %3314 = vdwg.mxu0
  %3315 = vmatprep.subr.bf16.mxu0 %v2466
  %3316 = vmatpush1.bf16.msra.mxu0 %v2465
  %3317 = vmatprep.subr.bf16.mxu0 %v2474
  %3318 = vmatpush1.bf16.msra.mxu0 %v2473
  %3319 = vmatprep.subr.bf16.mxu0 %v2482
  %3320 = vmatpush1.bf16.msra.mxu0 %v2481
  %3321 = vmatprep.subr.bf16.mxu0 %v2490
  %3322 = vmatpush1.bf16.msra.mxu0 %v2489
  %3323 = vmatprep.subr.bf16.mxu0 %v2498
  %3324 = vmatpush1.bf16.msra.mxu0 %v2497
  %3325 = vmatprep.subr.bf16.mxu0 %v2506
  %3326 = vmatpush1.bf16.msra.mxu0 %v2505
  %3327 = vmatprep.subr.bf16.mxu0 %v2514
  %3328 = vmatpush1.bf16.msra.mxu0 %v2513
  %3329 = vmatprep.subr.bf16.mxu0 %v2522
  %3330 = vmatpush1.bf16.msra.mxu0 %v2521
  %3331 = vmatprep.subr.bf16.mxu0 %v2530
  %3332 = vmatpush1.bf16.msra.mxu0 %v2529
  %3333 = vmatprep.subr.bf16.mxu0 %v2538
  %3334 = vmatpush1.bf16.msra.mxu0 %v2537
  %3335 = vmatprep.subr.bf16.mxu0 %v2546
  %3336 = vmatpush1.bf16.msra.mxu0 %v2545
  %3337 = vmatprep.subr.bf16.mxu0 %v2554
  %3338 = vmatpush1.bf16.msra.mxu0 %v2553
  %3339 = vmatprep.subr.bf16.mxu0 %v2562
  %3340 = vmatpush1.bf16.msra.mxu0 %v2561
  %3341 = vmatprep.subr.bf16.mxu0 %v2570
  %3342 = vmatpush1.bf16.msra.mxu0 %v2569
  %3343 = vmatprep.subr.bf16.mxu0 %v2578
  %3344 = vmatpush1.bf16.msra.mxu0 %v2577
  %3345 = vmatprep.subr.bf16.mxu0 %v2586
  %3346 = vmatpush1.bf16.msra.mxu0 %v2585
  %3347 = vmatprep.mubr.bf16.mxu0 %v116
  %3348 = vmatmul.mubr.bf16.gmra.mrb[0].mxu0 %v115
  %v3349 = vpop.f32.mrb[0].mxu0
  %v3350 = vadd.f32 %v3309, %v3349
  %v3351 = vpop.f32.mrb[0].mxu0
  %v3352 = vadd.f32 %v3311, %v3351
  %v3353 = vpop.f32.mrb[0].mxu0
  %v3354 = vpop.f32.mrb[0].mxu0
  %3355 = vdwg.mxu0
  %3356 = vmatprep.subr.bf16.mxu0 %v2594
  %3357 = vmatpush1.bf16.msra.mxu0 %v2593
  %3358 = vmatprep.subr.bf16.mxu0 %v2602
  %3359 = vmatpush1.bf16.msra.mxu0 %v2601
  %3360 = vmatprep.subr.bf16.mxu0 %v2610
  %3361 = vmatpush1.bf16.msra.mxu0 %v2609
  %3362 = vmatprep.subr.bf16.mxu0 %v2618
  %3363 = vmatpush1.bf16.msra.mxu0 %v2617
  %3364 = vmatprep.subr.bf16.mxu0 %v2626
  %3365 = vmatpush1.bf16.msra.mxu0 %v2625
  %3366 = vmatprep.subr.bf16.mxu0 %v2634
  %3367 = vmatpush1.bf16.msra.mxu0 %v2633
  %3368 = vmatprep.subr.bf16.mxu0 %v2642
  %3369 = vmatpush1.bf16.msra.mxu0 %v2641
  %3370 = vmatprep.subr.bf16.mxu0 %v2650
  %3371 = vmatpush1.bf16.msra.mxu0 %v2649
  %3372 = vmatprep.subr.bf16.mxu0 %v2658
  %3373 = vmatpush1.bf16.msra.mxu0 %v2657
  %3374 = vmatprep.subr.bf16.mxu0 %v2666
  %3375 = vmatpush1.bf16.msra.mxu0 %v2665
  %3376 = vmatprep.subr.bf16.mxu0 %v2674
  %3377 = vmatpush1.bf16.msra.mxu0 %v2673
  %3378 = vmatprep.subr.bf16.mxu0 %v2682
  %3379 = vmatpush1.bf16.msra.mxu0 %v2681
  %3380 = vmatprep.subr.bf16.mxu0 %v2690
  %3381 = vmatpush1.bf16.msra.mxu0 %v2689
  %3382 = vmatprep.subr.bf16.mxu0 %v2698
  %3383 = vmatpush1.bf16.msra.mxu0 %v2697
  %3384 = vmatprep.subr.bf16.mxu0 %v2706
  %3385 = vmatpush1.bf16.msra.mxu0 %v2705
  %3386 = vmatprep.subr.bf16.mxu0 %v2714
  %3387 = vmatpush1.bf16.msra.mxu0 %v2713
  %3388 = vmatprep.mubr.bf16.mxu0 %v118
  %3389 = vmatmul.mubr.bf16.gmra.mrb[0].mxu0 %v117
  %v3390 = vpop.f32.mrb[0].mxu0
  %v3391 = vadd.f32 %v3350, %v3390
  %v3392 = vpop.f32.mrb[0].mxu0
  %v3393 = vadd.f32 %v3352, %v3392
  %v3394 = vpop.f32.mrb[0].mxu0
  %v3395 = vpop.f32.mrb[0].mxu0
  %3396 = vdwg.mxu0
  %3397 = vmatprep.subr.bf16.mxu0 %v2212
  %3398 = vmatpush1.bf16.msra.mxu0 %v2211
  %3399 = vmatprep.subr.bf16.mxu0 %v2220
  %3400 = vmatpush1.bf16.msra.mxu0 %v2219
  %3401 = vmatprep.subr.bf16.mxu0 %v2228
  %3402 = vmatpush1.bf16.msra.mxu0 %v2227
  %3403 = vmatprep.subr.bf16.mxu0 %v2236
  %3404 = vmatpush1.bf16.msra.mxu0 %v2235
  %3405 = vmatprep.subr.bf16.mxu0 %v2244
  %3406 = vmatpush1.bf16.msra.mxu0 %v2243
  %3407 = vmatprep.subr.bf16.mxu0 %v2252
  %3408 = vmatpush1.bf16.msra.mxu0 %v2251
  %3409 = vmatprep.subr.bf16.mxu0 %v2260
  %3410 = vmatpush1.bf16.msra.mxu0 %v2259
  %3411 = vmatprep.subr.bf16.mxu0 %v2268
  %3412 = vmatpush1.bf16.msra.mxu0 %v2267
  %3413 = vmatprep.subr.bf16.mxu0 %v2276
  %3414 = vmatpush1.bf16.msra.mxu0 %v2275
  %3415 = vmatprep.subr.bf16.mxu0 %v2284
  %3416 = vmatpush1.bf16.msra.mxu0 %v2283
  %3417 = vmatprep.subr.bf16.mxu0 %v2292
  %3418 = vmatpush1.bf16.msra.mxu0 %v2291
  %3419 = vmatprep.subr.bf16.mxu0 %v2300
  %3420 = vmatpush1.bf16.msra.mxu0 %v2299
  %3421 = vmatprep.subr.bf16.mxu0 %v2308
  %3422 = vmatpush1.bf16.msra.mxu0 %v2307
  %3423 = vmatprep.subr.bf16.mxu0 %v2316
  %3424 = vmatpush1.bf16.msra.mxu0 %v2315
  %3425 = vmatprep.subr.bf16.mxu0 %v2324
  %3426 = vmatpush1.bf16.msra.mxu0 %v2323
  %3427 = vmatprep.subr.bf16.mxu0 %v2332
  %3428 = vmatpush1.bf16.msra.mxu0 %v2331
  %3429 = vmatprep.mubr.bf16.mxu0 %v112
  %3430 = vmatmul.mubr.bf16.gmra.mrb[0].mxu0 %v111
  %v3431 = vpop.f32.mrb[0].mxu0
  %v3432 = vadd.f32 %v644, %v3431
  %v3433 = vpop.f32.mrb[0].mxu0
  %v3434 = vadd.f32 %v648, %v3433
  %v3435 = vpop.f32.mrb[0].mxu0
  %v3436 = vpop.f32.mrb[0].mxu0
  %3437 = vdwg.mxu0
  %3438 = vmatprep.subr.bf16.mxu0 %v2340
  %3439 = vmatpush1.bf16.msra.mxu0 %v2339
  %3440 = vmatprep.subr.bf16.mxu0 %v2348
  %3441 = vmatpush1.bf16.msra.mxu0 %v2347
  %3442 = vmatprep.subr.bf16.mxu0 %v2356
  %3443 = vmatpush1.bf16.msra.mxu0 %v2355
  %3444 = vmatprep.subr.bf16.mxu0 %v2364
  %3445 = vmatpush1.bf16.msra.mxu0 %v2363
  %3446 = vmatprep.subr.bf16.mxu0 %v2372
  %3447 = vmatpush1.bf16.msra.mxu0 %v2371
  %3448 = vmatprep.subr.bf16.mxu0 %v2380
  %3449 = vmatpush1.bf16.msra.mxu0 %v2379
  %3450 = vmatprep.subr.bf16.mxu0 %v2388
  %3451 = vmatpush1.bf16.msra.mxu0 %v2387
  %3452 = vmatprep.subr.bf16.mxu0 %v2396
  %3453 = vmatpush1.bf16.msra.mxu0 %v2395
  %3454 = vmatprep.subr.bf16.mxu0 %v2404
  %3455 = vmatpush1.bf16.msra.mxu0 %v2403
  %3456 = vmatprep.subr.bf16.mxu0 %v2412
  %3457 = vmatpush1.bf16.msra.mxu0 %v2411
  %3458 = vmatprep.subr.bf16.mxu0 %v2420
  %3459 = vmatpush1.bf16.msra.mxu0 %v2419
  %3460 = vmatprep.subr.bf16.mxu0 %v2428
  %3461 = vmatpush1.bf16.msra.mxu0 %v2427
  %3462 = vmatprep.subr.bf16.mxu0 %v2436
  %3463 = vmatpush1.bf16.msra.mxu0 %v2435
  %3464 = vmatprep.subr.bf16.mxu0 %v2444
  %3465 = vmatpush1.bf16.msra.mxu0 %v2443
  %3466 = vmatprep.subr.bf16.mxu0 %v2452
  %3467 = vmatpush1.bf16.msra.mxu0 %v2451
  %3468 = vmatprep.subr.bf16.mxu0 %v2460
  %3469 = vmatpush1.bf16.msra.mxu0 %v2459
  %3470 = vmatprep.mubr.bf16.mxu0 %v114
  %3471 = vmatmul.mubr.bf16.gmra.mrb[0].mxu0 %v113
  %v3472 = vpop.f32.mrb[0].mxu0
  %v3473 = vadd.f32 %v3432, %v3472
  %v3474 = vpop.f32.mrb[0].mxu0
  %v3475 = vadd.f32 %v3434, %v3474
  %v3476 = vpop.f32.mrb[0].mxu0
  %v3477 = vpop.f32.mrb[0].mxu0
  %3478 = vdwg.mxu0
  %3479 = vmatprep.subr.bf16.mxu0 %v2468
  %3480 = vmatpush1.bf16.msra.mxu0 %v2467
  %3481 = vmatprep.subr.bf16.mxu0 %v2476
  %3482 = vmatpush1.bf16.msra.mxu0 %v2475
  %3483 = vmatprep.subr.bf16.mxu0 %v2484
  %3484 = vmatpush1.bf16.msra.mxu0 %v2483
  %3485 = vmatprep.subr.bf16.mxu0 %v2492
  %3486 = vmatpush1.bf16.msra.mxu0 %v2491
  %3487 = vmatprep.subr.bf16.mxu0 %v2500
  %3488 = vmatpush1.bf16.msra.mxu0 %v2499
  %3489 = vmatprep.subr.bf16.mxu0 %v2508
  %3490 = vmatpush1.bf16.msra.mxu0 %v2507
  %3491 = vmatprep.subr.bf16.mxu0 %v2516
  %3492 = vmatpush1.bf16.msra.mxu0 %v2515
  %3493 = vmatprep.subr.bf16.mxu0 %v2524
  %3494 = vmatpush1.bf16.msra.mxu0 %v2523
  %3495 = vmatprep.subr.bf16.mxu0 %v2532
  %3496 = vmatpush1.bf16.msra.mxu0 %v2531
  %3497 = vmatprep.subr.bf16.mxu0 %v2540
  %3498 = vmatpush1.bf16.msra.mxu0 %v2539
  %3499 = vmatprep.subr.bf16.mxu0 %v2548
  %3500 = vmatpush1.bf16.msra.mxu0 %v2547
  %3501 = vmatprep.subr.bf16.mxu0 %v2556
  %3502 = vmatpush1.bf16.msra.mxu0 %v2555
  %3503 = vmatprep.subr.bf16.mxu0 %v2564
  %3504 = vmatpush1.bf16.msra.mxu0 %v2563
  %3505 = vmatprep.subr.bf16.mxu0 %v2572
  %3506 = vmatpush1.bf16.msra.mxu0 %v2571
  %3507 = vmatprep.subr.bf16.mxu0 %v2580
  %3508 = vmatpush1.bf16.msra.mxu0 %v2579
  %3509 = vmatprep.subr.bf16.mxu0 %v2588
  %3510 = vmatpush1.bf16.msra.mxu0 %v2587
  %3511 = vmatprep.mubr.bf16.mxu0 %v116
  %3512 = vmatmul.mubr.bf16.gmra.mrb[0].mxu0 %v115
  %v3513 = vpop.f32.mrb[0].mxu0
  %v3514 = vadd.f32 %v3473, %v3513
  %v3515 = vpop.f32.mrb[0].mxu0
  %v3516 = vadd.f32 %v3475, %v3515
  %v3517 = vpop.f32.mrb[0].mxu0
  %v3518 = vpop.f32.mrb[0].mxu0
  %3519 = vdwg.mxu0
  %3520 = vmatprep.subr.bf16.mxu0 %v2596
  %3521 = vmatpush1.bf16.msra.mxu0 %v2595
  %3522 = vmatprep.subr.bf16.mxu0 %v2604
  %3523 = vmatpush1.bf16.msra.mxu0 %v2603
  %3524 = vmatprep.subr.bf16.mxu0 %v2612
  %3525 = vmatpush1.bf16.msra.mxu0 %v2611
  %3526 = vmatprep.subr.bf16.mxu0 %v2620
  %3527 = vmatpush1.bf16.msra.mxu0 %v2619
  %3528 = vmatprep.subr.bf16.mxu0 %v2628
  %3529 = vmatpush1.bf16.msra.mxu0 %v2627
  %3530 = vmatprep.subr.bf16.mxu0 %v2636
  %3531 = vmatpush1.bf16.msra.mxu0 %v2635
  %3532 = vmatprep.subr.bf16.mxu0 %v2644
  %3533 = vmatpush1.bf16.msra.mxu0 %v2643
  %3534 = vmatprep.subr.bf16.mxu0 %v2652
  %3535 = vmatpush1.bf16.msra.mxu0 %v2651
  %3536 = vmatprep.subr.bf16.mxu0 %v2660
  %3537 = vmatpush1.bf16.msra.mxu0 %v2659
  %3538 = vmatprep.subr.bf16.mxu0 %v2668
  %3539 = vmatpush1.bf16.msra.mxu0 %v2667
  %3540 = vmatprep.subr.bf16.mxu0 %v2676
  %3541 = vmatpush1.bf16.msra.mxu0 %v2675
  %3542 = vmatprep.subr.bf16.mxu0 %v2684
  %3543 = vmatpush1.bf16.msra.mxu0 %v2683
  %3544 = vmatprep.subr.bf16.mxu0 %v2692
  %3545 = vmatpush1.bf16.msra.mxu0 %v2691
  %3546 = vmatprep.subr.bf16.mxu0 %v2700
  %3547 = vmatpush1.bf16.msra.mxu0 %v2699
  %3548 = vmatprep.subr.bf16.mxu0 %v2708
  %3549 = vmatpush1.bf16.msra.mxu0 %v2707
  %3550 = vmatprep.subr.bf16.mxu0 %v2716
  %3551 = vmatpush1.bf16.msra.mxu0 %v2715
  %3552 = vmatprep.mubr.bf16.mxu0 %v118
  %3553 = vmatmul.mubr.bf16.gmra.mrb[0].mxu0 %v117
  %v3554 = vpop.f32.mrb[0].mxu0
  %v3555 = vadd.f32 %v3514, %v3554
  %v3556 = vpop.f32.mrb[0].mxu0
  %v3557 = vadd.f32 %v3516, %v3556
  %v3558 = vpop.f32.mrb[0].mxu0
  %v3559 = vpop.f32.mrb[0].mxu0
  %3560 = vdwg.mxu0
  %3561 = vmatprep.subr.bf16.mxu0 %v2214
  %3562 = vmatpush1.bf16.msra.mxu0 %v2213
  %3563 = vmatprep.subr.bf16.mxu0 %v2222
  %3564 = vmatpush1.bf16.msra.mxu0 %v2221
  %3565 = vmatprep.subr.bf16.mxu0 %v2230
  %3566 = vmatpush1.bf16.msra.mxu0 %v2229
  %3567 = vmatprep.subr.bf16.mxu0 %v2238
  %3568 = vmatpush1.bf16.msra.mxu0 %v2237
  %3569 = vmatprep.subr.bf16.mxu0 %v2246
  %3570 = vmatpush1.bf16.msra.mxu0 %v2245
  %3571 = vmatprep.subr.bf16.mxu0 %v2254
  %3572 = vmatpush1.bf16.msra.mxu0 %v2253
  %3573 = vmatprep.subr.bf16.mxu0 %v2262
  %3574 = vmatpush1.bf16.msra.mxu0 %v2261
  %3575 = vmatprep.subr.bf16.mxu0 %v2270
  %3576 = vmatpush1.bf16.msra.mxu0 %v2269
  %3577 = vmatprep.subr.bf16.mxu0 %v2278
  %3578 = vmatpush1.bf16.msra.mxu0 %v2277
  %3579 = vmatprep.subr.bf16.mxu0 %v2286
  %3580 = vmatpush1.bf16.msra.mxu0 %v2285
  %3581 = vmatprep.subr.bf16.mxu0 %v2294
  %3582 = vmatpush1.bf16.msra.mxu0 %v2293
  %3583 = vmatprep.subr.bf16.mxu0 %v2302
  %3584 = vmatpush1.bf16.msra.mxu0 %v2301
  %3585 = vmatprep.subr.bf16.mxu0 %v2310
  %3586 = vmatpush1.bf16.msra.mxu0 %v2309
  %3587 = vmatprep.subr.bf16.mxu0 %v2318
  %3588 = vmatpush1.bf16.msra.mxu0 %v2317
  %3589 = vmatprep.subr.bf16.mxu0 %v2326
  %3590 = vmatpush1.bf16.msra.mxu0 %v2325
  %3591 = vmatprep.subr.bf16.mxu0 %v2334
  %3592 = vmatpush1.bf16.msra.mxu0 %v2333
  %3593 = vmatprep.mubr.bf16.mxu0 %v112
  %3594 = vmatmul.mubr.bf16.gmra.mrb[0].mxu0 %v111
  %v3595 = vpop.f32.mrb[0].mxu0
  %v3596 = vadd.f32 %v652, %v3595
  %v3597 = vpop.f32.mrb[0].mxu0
  %v3598 = vadd.f32 %v656, %v3597
  %v3599 = vpop.f32.mrb[0].mxu0
  %v3600 = vpop.f32.mrb[0].mxu0
  %3601 = vdwg.mxu0
  %3602 = vmatprep.subr.bf16.mxu0 %v2342
  %3603 = vmatpush1.bf16.msra.mxu0 %v2341
  %3604 = vmatprep.subr.bf16.mxu0 %v2350
  %3605 = vmatpush1.bf16.msra.mxu0 %v2349
  %3606 = vmatprep.subr.bf16.mxu0 %v2358
  %3607 = vmatpush1.bf16.msra.mxu0 %v2357
  %3608 = vmatprep.subr.bf16.mxu0 %v2366
  %3609 = vmatpush1.bf16.msra.mxu0 %v2365
  %3610 = vmatprep.subr.bf16.mxu0 %v2374
  %3611 = vmatpush1.bf16.msra.mxu0 %v2373
  %3612 = vmatprep.subr.bf16.mxu0 %v2382
  %3613 = vmatpush1.bf16.msra.mxu0 %v2381
  %3614 = vmatprep.subr.bf16.mxu0 %v2390
  %3615 = vmatpush1.bf16.msra.mxu0 %v2389
  %3616 = vmatprep.subr.bf16.mxu0 %v2398
  %3617 = vmatpush1.bf16.msra.mxu0 %v2397
  %3618 = vmatprep.subr.bf16.mxu0 %v2406
  %3619 = vmatpush1.bf16.msra.mxu0 %v2405
  %3620 = vmatprep.subr.bf16.mxu0 %v2414
  %3621 = vmatpush1.bf16.msra.mxu0 %v2413
  %3622 = vmatprep.subr.bf16.mxu0 %v2422
  %3623 = vmatpush1.bf16.msra.mxu0 %v2421
  %3624 = vmatprep.subr.bf16.mxu0 %v2430
  %3625 = vmatpush1.bf16.msra.mxu0 %v2429
  %3626 = vmatprep.subr.bf16.mxu0 %v2438
  %3627 = vmatpush1.bf16.msra.mxu0 %v2437
  %3628 = vmatprep.subr.bf16.mxu0 %v2446
  %3629 = vmatpush1.bf16.msra.mxu0 %v2445
  %3630 = vmatprep.subr.bf16.mxu0 %v2454
  %3631 = vmatpush1.bf16.msra.mxu0 %v2453
  %3632 = vmatprep.subr.bf16.mxu0 %v2462
  %3633 = vmatpush1.bf16.msra.mxu0 %v2461
  %3634 = vmatprep.mubr.bf16.mxu0 %v114
  %3635 = vmatmul.mubr.bf16.gmra.mrb[0].mxu0 %v113
  %v3636 = vpop.f32.mrb[0].mxu0
  %v3637 = vadd.f32 %v3596, %v3636
  %v3638 = vpop.f32.mrb[0].mxu0
  %v3639 = vadd.f32 %v3598, %v3638
  %v3640 = vpop.f32.mrb[0].mxu0
  %v3641 = vpop.f32.mrb[0].mxu0
  %3642 = vdwg.mxu0
  %3643 = vmatprep.subr.bf16.mxu0 %v2470
  %3644 = vmatpush1.bf16.msra.mxu0 %v2469
  %3645 = vmatprep.subr.bf16.mxu0 %v2478
  %3646 = vmatpush1.bf16.msra.mxu0 %v2477
  %3647 = vmatprep.subr.bf16.mxu0 %v2486
  %3648 = vmatpush1.bf16.msra.mxu0 %v2485
  %3649 = vmatprep.subr.bf16.mxu0 %v2494
  %3650 = vmatpush1.bf16.msra.mxu0 %v2493
  %3651 = vmatprep.subr.bf16.mxu0 %v2502
  %3652 = vmatpush1.bf16.msra.mxu0 %v2501
  %3653 = vmatprep.subr.bf16.mxu0 %v2510
  %3654 = vmatpush1.bf16.msra.mxu0 %v2509
  %3655 = vmatprep.subr.bf16.mxu0 %v2518
  %3656 = vmatpush1.bf16.msra.mxu0 %v2517
  %3657 = vmatprep.subr.bf16.mxu0 %v2526
  %3658 = vmatpush1.bf16.msra.mxu0 %v2525
  %3659 = vmatprep.subr.bf16.mxu0 %v2534
  %3660 = vmatpush1.bf16.msra.mxu0 %v2533
  %3661 = vmatprep.subr.bf16.mxu0 %v2542
  %3662 = vmatpush1.bf16.msra.mxu0 %v2541
  %3663 = vmatprep.subr.bf16.mxu0 %v2550
  %3664 = vmatpush1.bf16.msra.mxu0 %v2549
  %3665 = vmatprep.subr.bf16.mxu0 %v2558
  %3666 = vmatpush1.bf16.msra.mxu0 %v2557
  %3667 = vmatprep.subr.bf16.mxu0 %v2566
  %3668 = vmatpush1.bf16.msra.mxu0 %v2565
  %3669 = vmatprep.subr.bf16.mxu0 %v2574
  %3670 = vmatpush1.bf16.msra.mxu0 %v2573
  %3671 = vmatprep.subr.bf16.mxu0 %v2582
  %3672 = vmatpush1.bf16.msra.mxu0 %v2581
  %3673 = vmatprep.subr.bf16.mxu0 %v2590
  %3674 = vmatpush1.bf16.msra.mxu0 %v2589
  %3675 = vmatprep.mubr.bf16.mxu0 %v116
  %3676 = vmatmul.mubr.bf16.gmra.mrb[0].mxu0 %v115
  %v3677 = vpop.f32.mrb[0].mxu0
  %v3678 = vadd.f32 %v3637, %v3677
  %v3679 = vpop.f32.mrb[0].mxu0
  %v3680 = vadd.f32 %v3639, %v3679
  %v3681 = vpop.f32.mrb[0].mxu0
  %v3682 = vpop.f32.mrb[0].mxu0
  %3683 = vdwg.mxu0
  %3684 = vmatprep.subr.bf16.mxu0 %v2598
  %3685 = vmatpush1.bf16.msra.mxu0 %v2597
  %3686 = vmatprep.subr.bf16.mxu0 %v2606
  %3687 = vmatpush1.bf16.msra.mxu0 %v2605
  %3688 = vmatprep.subr.bf16.mxu0 %v2614
  %3689 = vmatpush1.bf16.msra.mxu0 %v2613
  %3690 = vmatprep.subr.bf16.mxu0 %v2622
  %3691 = vmatpush1.bf16.msra.mxu0 %v2621
  %3692 = vmatprep.subr.bf16.mxu0 %v2630
  %3693 = vmatpush1.bf16.msra.mxu0 %v2629
  %3694 = vmatprep.subr.bf16.mxu0 %v2638
  %3695 = vmatpush1.bf16.msra.mxu0 %v2637
  %3696 = vmatprep.subr.bf16.mxu0 %v2646
  %3697 = vmatpush1.bf16.msra.mxu0 %v2645
  %3698 = vmatprep.subr.bf16.mxu0 %v2654
  %3699 = vmatpush1.bf16.msra.mxu0 %v2653
  %3700 = vmatprep.subr.bf16.mxu0 %v2662
  %3701 = vmatpush1.bf16.msra.mxu0 %v2661
  %3702 = vmatprep.subr.bf16.mxu0 %v2670
  %3703 = vmatpush1.bf16.msra.mxu0 %v2669
  %3704 = vmatprep.subr.bf16.mxu0 %v2678
  %3705 = vmatpush1.bf16.msra.mxu0 %v2677
  %3706 = vmatprep.subr.bf16.mxu0 %v2686
  %3707 = vmatpush1.bf16.msra.mxu0 %v2685
  %3708 = vmatprep.subr.bf16.mxu0 %v2694
  %3709 = vmatpush1.bf16.msra.mxu0 %v2693
  %3710 = vmatprep.subr.bf16.mxu0 %v2702
  %3711 = vmatpush1.bf16.msra.mxu0 %v2701
  %3712 = vmatprep.subr.bf16.mxu0 %v2710
  %3713 = vmatpush1.bf16.msra.mxu0 %v2709
  %3714 = vmatprep.subr.bf16.mxu0 %v2718
  %3715 = vmatpush1.bf16.msra.mxu0 %v2717
  %3716 = vmatprep.mubr.bf16.mxu0 %v118
  %3717 = vmatmul.mubr.bf16.gmra.mrb[0].mxu0 %v117
  %v3718 = vpop.f32.mrb[0].mxu0
  %v3719 = vadd.f32 %v3678, %v3718
  %v3720 = vpop.f32.mrb[0].mxu0
  %v3721 = vadd.f32 %v3680, %v3720
  %v3722 = vpop.f32.mrb[0].mxu0
  %v3723 = vpop.f32.mrb[0].mxu0
  %3724 = vdwg.mxu0
  %3725 = vmatprep.subr.bf16.mxu0 %v2216
  %3726 = vmatpush1.bf16.msra.mxu0 %v2215
  %3727 = vmatprep.subr.bf16.mxu0 %v2224
  %3728 = vmatpush1.bf16.msra.mxu0 %v2223
  %3729 = vmatprep.subr.bf16.mxu0 %v2232
  %3730 = vmatpush1.bf16.msra.mxu0 %v2231
  %3731 = vmatprep.subr.bf16.mxu0 %v2240
  %3732 = vmatpush1.bf16.msra.mxu0 %v2239
  %3733 = vmatprep.subr.bf16.mxu0 %v2248
  %3734 = vmatpush1.bf16.msra.mxu0 %v2247
  %3735 = vmatprep.subr.bf16.mxu0 %v2256
  %3736 = vmatpush1.bf16.msra.mxu0 %v2255
  %3737 = vmatprep.subr.bf16.mxu0 %v2264
  %3738 = vmatpush1.bf16.msra.mxu0 %v2263
  %3739 = vmatprep.subr.bf16.mxu0 %v2272
  %3740 = vmatpush1.bf16.msra.mxu0 %v2271
  %3741 = vmatprep.subr.bf16.mxu0 %v2280
  %3742 = vmatpush1.bf16.msra.mxu0 %v2279
  %3743 = vmatprep.subr.bf16.mxu0 %v2288
  %3744 = vmatpush1.bf16.msra.mxu0 %v2287
  %3745 = vmatprep.subr.bf16.mxu0 %v2296
  %3746 = vmatpush1.bf16.msra.mxu0 %v2295
  %3747 = vmatprep.subr.bf16.mxu0 %v2304
  %3748 = vmatpush1.bf16.msra.mxu0 %v2303
  %3749 = vmatprep.subr.bf16.mxu0 %v2312
  %3750 = vmatpush1.bf16.msra.mxu0 %v2311
  %3751 = vmatprep.subr.bf16.mxu0 %v2320
  %3752 = vmatpush1.bf16.msra.mxu0 %v2319
  %3753 = vmatprep.subr.bf16.mxu0 %v2328
  %3754 = vmatpush1.bf16.msra.mxu0 %v2327
  %3755 = vmatprep.subr.bf16.mxu0 %v2336
  %3756 = vmatpush1.bf16.msra.mxu0 %v2335
  %3757 = vmatprep.mubr.bf16.mxu0 %v112
  %3758 = vmatmul.mubr.bf16.gmra.mrb[0].mxu0 %v111
  %v3759 = vpop.f32.mrb[0].mxu0
  %v3760 = vadd.f32 %v660, %v3759
  %v3761 = vpop.f32.mrb[0].mxu0
  %v3762 = vadd.f32 %v664, %v3761
  %v3763 = vpop.f32.mrb[0].mxu0
  %v3764 = vpop.f32.mrb[0].mxu0
  %3765 = vdwg.mxu0
  %3766 = vmatprep.subr.bf16.mxu0 %v2344
  %3767 = vmatpush1.bf16.msra.mxu0 %v2343
  %3768 = vmatprep.subr.bf16.mxu0 %v2352
  %3769 = vmatpush1.bf16.msra.mxu0 %v2351
  %3770 = vmatprep.subr.bf16.mxu0 %v2360
  %3771 = vmatpush1.bf16.msra.mxu0 %v2359
  %3772 = vmatprep.subr.bf16.mxu0 %v2368
  %3773 = vmatpush1.bf16.msra.mxu0 %v2367
  %3774 = vmatprep.subr.bf16.mxu0 %v2376
  %3775 = vmatpush1.bf16.msra.mxu0 %v2375
  %3776 = vmatprep.subr.bf16.mxu0 %v2384
  %3777 = vmatpush1.bf16.msra.mxu0 %v2383
  %3778 = vmatprep.subr.bf16.mxu0 %v2392
  %3779 = vmatpush1.bf16.msra.mxu0 %v2391
  %3780 = vmatprep.subr.bf16.mxu0 %v2400
  %3781 = vmatpush1.bf16.msra.mxu0 %v2399
  %3782 = vmatprep.subr.bf16.mxu0 %v2408
  %3783 = vmatpush1.bf16.msra.mxu0 %v2407
  %3784 = vmatprep.subr.bf16.mxu0 %v2416
  %3785 = vmatpush1.bf16.msra.mxu0 %v2415
  %3786 = vmatprep.subr.bf16.mxu0 %v2424
  %3787 = vmatpush1.bf16.msra.mxu0 %v2423
  %3788 = vmatprep.subr.bf16.mxu0 %v2432
  %3789 = vmatpush1.bf16.msra.mxu0 %v2431
  %3790 = vmatprep.subr.bf16.mxu0 %v2440
  %3791 = vmatpush1.bf16.msra.mxu0 %v2439
  %3792 = vmatprep.subr.bf16.mxu0 %v2448
  %3793 = vmatpush1.bf16.msra.mxu0 %v2447
  %3794 = vmatprep.subr.bf16.mxu0 %v2456
  %3795 = vmatpush1.bf16.msra.mxu0 %v2455
  %3796 = vmatprep.subr.bf16.mxu0 %v2464
  %3797 = vmatpush1.bf16.msra.mxu0 %v2463
  %3798 = vmatprep.mubr.bf16.mxu0 %v114
  %3799 = vmatmul.mubr.bf16.gmra.mrb[0].mxu0 %v113
  %v3800 = vpop.f32.mrb[0].mxu0
  %v3801 = vadd.f32 %v3760, %v3800
  %v3802 = vpop.f32.mrb[0].mxu0
  %v3803 = vadd.f32 %v3762, %v3802
  %v3804 = vpop.f32.mrb[0].mxu0
  %v3805 = vpop.f32.mrb[0].mxu0
  %3806 = vdwg.mxu0
  %3807 = vmatprep.subr.bf16.mxu0 %v2472
  %3808 = vmatpush1.bf16.msra.mxu0 %v2471
  %3809 = vmatprep.subr.bf16.mxu0 %v2480
  %3810 = vmatpush1.bf16.msra.mxu0 %v2479
  %3811 = vmatprep.subr.bf16.mxu0 %v2488
  %3812 = vmatpush1.bf16.msra.mxu0 %v2487
  %3813 = vmatprep.subr.bf16.mxu0 %v2496
  %3814 = vmatpush1.bf16.msra.mxu0 %v2495
  %3815 = vmatprep.subr.bf16.mxu0 %v2504
  %3816 = vmatpush1.bf16.msra.mxu0 %v2503
  %3817 = vmatprep.subr.bf16.mxu0 %v2512
  %3818 = vmatpush1.bf16.msra.mxu0 %v2511
  %3819 = vmatprep.subr.bf16.mxu0 %v2520
  %3820 = vmatpush1.bf16.msra.mxu0 %v2519
  %3821 = vmatprep.subr.bf16.mxu0 %v2528
  %3822 = vmatpush1.bf16.msra.mxu0 %v2527
  %3823 = vmatprep.subr.bf16.mxu0 %v2536
  %3824 = vmatpush1.bf16.msra.mxu0 %v2535
  %3825 = vmatprep.subr.bf16.mxu0 %v2544
  %3826 = vmatpush1.bf16.msra.mxu0 %v2543
  %3827 = vmatprep.subr.bf16.mxu0 %v2552
  %3828 = vmatpush1.bf16.msra.mxu0 %v2551
  %3829 = vmatprep.subr.bf16.mxu0 %v2560
  %3830 = vmatpush1.bf16.msra.mxu0 %v2559
  %3831 = vmatprep.subr.bf16.mxu0 %v2568
  %3832 = vmatpush1.bf16.msra.mxu0 %v2567
  %3833 = vmatprep.subr.bf16.mxu0 %v2576
  %3834 = vmatpush1.bf16.msra.mxu0 %v2575
  %3835 = vmatprep.subr.bf16.mxu0 %v2584
  %3836 = vmatpush1.bf16.msra.mxu0 %v2583
  %3837 = vmatprep.subr.bf16.mxu0 %v2592
  %3838 = vmatpush1.bf16.msra.mxu0 %v2591
  %3839 = vmatprep.mubr.bf16.mxu0 %v116
  %3840 = vmatmul.mubr.bf16.gmra.mrb[0].mxu0 %v115
  %v3841 = vpop.f32.mrb[0].mxu0
  %v3842 = vadd.f32 %v3801, %v3841
  %v3843 = vpop.f32.mrb[0].mxu0
  %v3844 = vadd.f32 %v3803, %v3843
  %v3845 = vpop.f32.mrb[0].mxu0
  %v3846 = vpop.f32.mrb[0].mxu0
  %3847 = vdwg.mxu0
  %3848 = vmatprep.subr.bf16.mxu0 %v2600
  %3849 = vmatpush1.bf16.msra.mxu0 %v2599
  %3850 = vmatprep.subr.bf16.mxu0 %v2608
  %3851 = vmatpush1.bf16.msra.mxu0 %v2607
  %3852 = vmatprep.subr.bf16.mxu0 %v2616
  %3853 = vmatpush1.bf16.msra.mxu0 %v2615
  %3854 = vmatprep.subr.bf16.mxu0 %v2624
  %3855 = vmatpush1.bf16.msra.mxu0 %v2623
  %3856 = vmatprep.subr.bf16.mxu0 %v2632
  %3857 = vmatpush1.bf16.msra.mxu0 %v2631
  %3858 = vmatprep.subr.bf16.mxu0 %v2640
  %3859 = vmatpush1.bf16.msra.mxu0 %v2639
  %3860 = vmatprep.subr.bf16.mxu0 %v2648
  %3861 = vmatpush1.bf16.msra.mxu0 %v2647
  %3862 = vmatprep.subr.bf16.mxu0 %v2656
  %3863 = vmatpush1.bf16.msra.mxu0 %v2655
  %3864 = vmatprep.subr.bf16.mxu0 %v2664
  %3865 = vmatpush1.bf16.msra.mxu0 %v2663
  %3866 = vmatprep.subr.bf16.mxu0 %v2672
  %3867 = vmatpush1.bf16.msra.mxu0 %v2671
  %3868 = vmatprep.subr.bf16.mxu0 %v2680
  %3869 = vmatpush1.bf16.msra.mxu0 %v2679
  %3870 = vmatprep.subr.bf16.mxu0 %v2688
  %3871 = vmatpush1.bf16.msra.mxu0 %v2687
  %3872 = vmatprep.subr.bf16.mxu0 %v2696
  %3873 = vmatpush1.bf16.msra.mxu0 %v2695
  %3874 = vmatprep.subr.bf16.mxu0 %v2704
  %3875 = vmatpush1.bf16.msra.mxu0 %v2703
  %3876 = vmatprep.subr.bf16.mxu0 %v2712
  %3877 = vmatpush1.bf16.msra.mxu0 %v2711
  %3878 = vmatprep.subr.bf16.mxu0 %v2720
  %3879 = vmatpush1.bf16.msra.mxu0 %v2719
  %3880 = vmatprep.mubr.bf16.mxu0 %v118
  %3881 = vmatmul.mubr.bf16.gmra.mrb[0].mxu0 %v117
  %v3882 = vpop.f32.mrb[0].mxu0
  %v3883 = vadd.f32 %v3842, %v3882
  %v3884 = vpop.f32.mrb[0].mxu0
  %v3885 = vadd.f32 %v3844, %v3884
  %v3886 = vpop.f32.mrb[0].mxu0
  %v3887 = vpop.f32.mrb[0].mxu0
  %3888 = vdwg.mxu0
  %v3889 = vmax.f32 %v3391, 0.0
  %v3890 = vmax.f32 %v3393, 0.0
  %v3891 = vmax.f32 %v3555, 0.0
  %v3892 = vmax.f32 %v3557, 0.0
  %v3893 = vmax.f32 %v3719, 0.0
  %v3894 = vmax.f32 %v3721, 0.0
  %v3895 = vmax.f32 %v3883, 0.0
  %v3896 = vmax.f32 %v3885, 0.0
  %v3897 = vpack.c.bf16 %v3889, %v3889
  %v3898 = vpack.c.bf16 %v3890, %v3890
  %v3899 = vpack.c.bf16 %v3891, %v3891
  %v3900 = vpack.c.bf16 %v3892, %v3892
  %v3901 = vpack.c.bf16 %v3893, %v3893
  %v3902 = vpack.c.bf16 %v3894, %v3894
  %v3903 = vpack.c.bf16 %v3895, %v3895
  %v3904 = vpack.c.bf16 %v3896, %v3896
  %v3905 = vld [vmem:[%s3] sm:$0xff]
  %v3906 = vld [vmem:[%s3 + $0x8] sm:$0xff]
  %v3907 = vld [vmem:[%s3 + $0x10] sm:$0xff]
  %v3908 = vld [vmem:[%s3 + $0x18] sm:$0xff]
  %v3909 = vld [vmem:[%s3 + $0x20] sm:$0xff]
  %v3910 = vld [vmem:[%s3 + $0x28] sm:$0xff]
  %v3911 = vld [vmem:[%s3 + $0x30] sm:$0xff]
  %v3912 = vld [vmem:[%s3 + $0x38] sm:$0xff]
  %v3913 = vld [vmem:[%s3 + $0x40] sm:$0xff]
  %v3914 = vld [vmem:[%s3 + $0x48] sm:$0xff]
  %v3915 = vld [vmem:[%s3 + $0x50] sm:$0xff]
  %v3916 = vld [vmem:[%s3 + $0x58] sm:$0xff]
  %v3917 = vld [vmem:[%s3 + $0x60] sm:$0xff]
  %v3918 = vld [vmem:[%s3 + $0x68] sm:$0xff]
  %v3919 = vld [vmem:[%s3 + $0x70] sm:$0xff]
  %v3920 = vld [vmem:[%s3 + $0x78] sm:$0xff]
  %v3921 = vld [vmem:[%s3 + $0x80] sm:$0xff]
  %v3922 = vld [vmem:[%s3 + $0x88] sm:$0xff]
  %v3923 = vld [vmem:[%s3 + $0x90] sm:$0xff]
  %v3924 = vld [vmem:[%s3 + $0x98] sm:$0xff]
  %v3925 = vld [vmem:[%s3 + $0xa0] sm:$0xff]
  %v3926 = vld [vmem:[%s3 + $0xa8] sm:$0xff]
  %v3927 = vld [vmem:[%s3 + $0xb0] sm:$0xff]
  %v3928 = vld [vmem:[%s3 + $0xb8] sm:$0xff]
  %v3929 = vld [vmem:[%s3 + $0xc0] sm:$0xff]
  %v3930 = vld [vmem:[%s3 + $0xc8] sm:$0xff]
  %v3931 = vld [vmem:[%s3 + $0xd0] sm:$0xff]
  %v3932 = vld [vmem:[%s3 + $0xd8] sm:$0xff]
  %v3933 = vld [vmem:[%s3 + $0xe0] sm:$0xff]
  %v3934 = vld [vmem:[%s3 + $0xe8] sm:$0xff]
  %v3935 = vld [vmem:[%s3 + $0xf0] sm:$0xff]
  %v3936 = vld [vmem:[%s3 + $0xf8] sm:$0xff]
  %v3937 = vld [vmem:[%s3 + $0x100] sm:$0xff]
  %v3938 = vld [vmem:[%s3 + $0x108] sm:$0xff]
  %v3939 = vld [vmem:[%s3 + $0x110] sm:$0xff]
  %v3940 = vld [vmem:[%s3 + $0x118] sm:$0xff]
  %v3941 = vld [vmem:[%s3 + $0x120] sm:$0xff]
  %v3942 = vld [vmem:[%s3 + $0x128] sm:$0xff]
  %v3943 = vld [vmem:[%s3 + $0x130] sm:$0xff]
  %v3944 = vld [vmem:[%s3 + $0x138] sm:$0xff]
  %v3945 = vld [vmem:[%s3 + $0x140] sm:$0xff]
  %v3946 = vld [vmem:[%s3 + $0x148] sm:$0xff]
  %v3947 = vld [vmem:[%s3 + $0x150] sm:$0xff]
  %v3948 = vld [vmem:[%s3 + $0x158] sm:$0xff]
  %v3949 = vld [vmem:[%s3 + $0x160] sm:$0xff]
  %v3950 = vld [vmem:[%s3 + $0x168] sm:$0xff]
  %v3951 = vld [vmem:[%s3 + $0x170] sm:$0xff]
  %v3952 = vld [vmem:[%s3 + $0x178] sm:$0xff]
  %v3953 = vld [vmem:[%s3 + $0x180] sm:$0xff]
  %v3954 = vld [vmem:[%s3 + $0x188] sm:$0xff]
  %v3955 = vld [vmem:[%s3 + $0x190] sm:$0xff]
  %v3956 = vld [vmem:[%s3 + $0x198] sm:$0xff]
  %v3957 = vld [vmem:[%s3 + $0x1a0] sm:$0xff]
  %v3958 = vld [vmem:[%s3 + $0x1a8] sm:$0xff]
  %v3959 = vld [vmem:[%s3 + $0x1b0] sm:$0xff]
  %v3960 = vld [vmem:[%s3 + $0x1b8] sm:$0xff]
  %v3961 = vld [vmem:[%s3 + $0x1c0] sm:$0xff]
  %v3962 = vld [vmem:[%s3 + $0x1c8] sm:$0xff]
  %v3963 = vld [vmem:[%s3 + $0x1d0] sm:$0xff]
  %v3964 = vld [vmem:[%s3 + $0x1d8] sm:$0xff]
  %v3965 = vld [vmem:[%s3 + $0x1e0] sm:$0xff]
  %v3966 = vld [vmem:[%s3 + $0x1e8] sm:$0xff]
  %v3967 = vld [vmem:[%s3 + $0x1f0] sm:$0xff]
  %v3968 = vld [vmem:[%s3 + $0x1f8] sm:$0xff]
  %v3969 = vld [vmem:[%s3 + $0x200] sm:$0xff]
  %v3970 = vld [vmem:[%s3 + $0x208] sm:$0xff]
  %v3971 = vld [vmem:[%s3 + $0x210] sm:$0xff]
  %v3972 = vld [vmem:[%s3 + $0x218] sm:$0xff]
  %v3973 = vld [vmem:[%s3 + $0x220] sm:$0xff]
  %v3974 = vld [vmem:[%s3 + $0x228] sm:$0xff]
  %v3975 = vld [vmem:[%s3 + $0x230] sm:$0xff]
  %v3976 = vld [vmem:[%s3 + $0x238] sm:$0xff]
  %v3977 = vld [vmem:[%s3 + $0x240] sm:$0xff]
  %v3978 = vld [vmem:[%s3 + $0x248] sm:$0xff]
  %v3979 = vld [vmem:[%s3 + $0x250] sm:$0xff]
  %v3980 = vld [vmem:[%s3 + $0x258] sm:$0xff]
  %v3981 = vld [vmem:[%s3 + $0x260] sm:$0xff]
  %v3982 = vld [vmem:[%s3 + $0x268] sm:$0xff]
  %v3983 = vld [vmem:[%s3 + $0x270] sm:$0xff]
  %v3984 = vld [vmem:[%s3 + $0x278] sm:$0xff]
  %v3985 = vld [vmem:[%s3 + $0x280] sm:$0xff]
  %v3986 = vld [vmem:[%s3 + $0x288] sm:$0xff]
  %v3987 = vld [vmem:[%s3 + $0x290] sm:$0xff]
  %v3988 = vld [vmem:[%s3 + $0x298] sm:$0xff]
  %v3989 = vld [vmem:[%s3 + $0x2a0] sm:$0xff]
  %v3990 = vld [vmem:[%s3 + $0x2a8] sm:$0xff]
  %v3991 = vld [vmem:[%s3 + $0x2b0] sm:$0xff]
  %v3992 = vld [vmem:[%s3 + $0x2b8] sm:$0xff]
  %v3993 = vld [vmem:[%s3 + $0x2c0] sm:$0xff]
  %v3994 = vld [vmem:[%s3 + $0x2c8] sm:$0xff]
  %v3995 = vld [vmem:[%s3 + $0x2d0] sm:$0xff]
  %v3996 = vld [vmem:[%s3 + $0x2d8] sm:$0xff]
  %v3997 = vld [vmem:[%s3 + $0x2e0] sm:$0xff]
  %v3998 = vld [vmem:[%s3 + $0x2e8] sm:$0xff]
  %v3999 = vld [vmem:[%s3 + $0x2f0] sm:$0xff]
  %v4000 = vld [vmem:[%s3 + $0x2f8] sm:$0xff]
  %v4001 = vld [vmem:[%s3 + $0x300] sm:$0xff]
  %v4002 = vld [vmem:[%s3 + $0x308] sm:$0xff]
  %v4003 = vld [vmem:[%s3 + $0x310] sm:$0xff]
  %v4004 = vld [vmem:[%s3 + $0x318] sm:$0xff]
  %v4005 = vld [vmem:[%s3 + $0x320] sm:$0xff]
  %v4006 = vld [vmem:[%s3 + $0x328] sm:$0xff]
  %v4007 = vld [vmem:[%s3 + $0x330] sm:$0xff]
  %v4008 = vld [vmem:[%s3 + $0x338] sm:$0xff]
  %v4009 = vld [vmem:[%s3 + $0x340] sm:$0xff]
  %v4010 = vld [vmem:[%s3 + $0x348] sm:$0xff]
  %v4011 = vld [vmem:[%s3 + $0x350] sm:$0xff]
  %v4012 = vld [vmem:[%s3 + $0x358] sm:$0xff]
  %v4013 = vld [vmem:[%s3 + $0x360] sm:$0xff]
  %v4014 = vld [vmem:[%s3 + $0x368] sm:$0xff]
  %v4015 = vld [vmem:[%s3 + $0x370] sm:$0xff]
  %v4016 = vld [vmem:[%s3 + $0x378] sm:$0xff]
  %v4017 = vld [vmem:[%s3 + $0x380] sm:$0xff]
  %v4018 = vld [vmem:[%s3 + $0x388] sm:$0xff]
  %v4019 = vld [vmem:[%s3 + $0x390] sm:$0xff]
  %v4020 = vld [vmem:[%s3 + $0x398] sm:$0xff]
  %v4021 = vld [vmem:[%s3 + $0x3a0] sm:$0xff]
  %v4022 = vld [vmem:[%s3 + $0x3a8] sm:$0xff]
  %v4023 = vld [vmem:[%s3 + $0x3b0] sm:$0xff]
  %v4024 = vld [vmem:[%s3 + $0x3b8] sm:$0xff]
  %v4025 = vld [vmem:[%s3 + $0x3c0] sm:$0xff]
  %v4026 = vld [vmem:[%s3 + $0x3c8] sm:$0xff]
  %v4027 = vld [vmem:[%s3 + $0x3d0] sm:$0xff]
  %v4028 = vld [vmem:[%s3 + $0x3d8] sm:$0xff]
  %v4029 = vld [vmem:[%s3 + $0x3e0] sm:$0xff]
  %v4030 = vld [vmem:[%s3 + $0x3e8] sm:$0xff]
  %v4031 = vld [vmem:[%s3 + $0x3f0] sm:$0xff]
  %v4032 = vld [vmem:[%s3 + $0x3f8] sm:$0xff]
  %v4033 = vld [vmem:[%s3 + $0x400] sm:$0xff]
  %v4034 = vld [vmem:[%s3 + $0x408] sm:$0xff]
  %v4035 = vld [vmem:[%s3 + $0x410] sm:$0xff]
  %v4036 = vld [vmem:[%s3 + $0x418] sm:$0xff]
  %v4037 = vld [vmem:[%s3 + $0x420] sm:$0xff]
  %v4038 = vld [vmem:[%s3 + $0x428] sm:$0xff]
  %v4039 = vld [vmem:[%s3 + $0x430] sm:$0xff]
  %v4040 = vld [vmem:[%s3 + $0x438] sm:$0xff]
  %v4041 = vld [vmem:[%s3 + $0x440] sm:$0xff]
  %v4042 = vld [vmem:[%s3 + $0x448] sm:$0xff]
  %v4043 = vld [vmem:[%s3 + $0x450] sm:$0xff]
  %v4044 = vld [vmem:[%s3 + $0x458] sm:$0xff]
  %v4045 = vld [vmem:[%s3 + $0x460] sm:$0xff]
  %v4046 = vld [vmem:[%s3 + $0x468] sm:$0xff]
  %v4047 = vld [vmem:[%s3 + $0x470] sm:$0xff]
  %v4048 = vld [vmem:[%s3 + $0x478] sm:$0xff]
  %v4049 = vld [vmem:[%s3 + $0x480] sm:$0xff]
  %v4050 = vld [vmem:[%s3 + $0x488] sm:$0xff]
  %v4051 = vld [vmem:[%s3 + $0x490] sm:$0xff]
  %v4052 = vld [vmem:[%s3 + $0x498] sm:$0xff]
  %v4053 = vld [vmem:[%s3 + $0x4a0] sm:$0xff]
  %v4054 = vld [vmem:[%s3 + $0x4a8] sm:$0xff]
  %v4055 = vld [vmem:[%s3 + $0x4b0] sm:$0xff]
  %v4056 = vld [vmem:[%s3 + $0x4b8] sm:$0xff]
  %v4057 = vld [vmem:[%s3 + $0x4c0] sm:$0xff]
  %v4058 = vld [vmem:[%s3 + $0x4c8] sm:$0xff]
  %v4059 = vld [vmem:[%s3 + $0x4d0] sm:$0xff]
  %v4060 = vld [vmem:[%s3 + $0x4d8] sm:$0xff]
  %v4061 = vld [vmem:[%s3 + $0x4e0] sm:$0xff]
  %v4062 = vld [vmem:[%s3 + $0x4e8] sm:$0xff]
  %v4063 = vld [vmem:[%s3 + $0x4f0] sm:$0xff]
  %v4064 = vld [vmem:[%s3 + $0x4f8] sm:$0xff]
  %v4065 = vld [vmem:[%s3 + $0x500] sm:$0xff]
  %v4066 = vld [vmem:[%s3 + $0x508] sm:$0xff]
  %v4067 = vld [vmem:[%s3 + $0x510] sm:$0xff]
  %v4068 = vld [vmem:[%s3 + $0x518] sm:$0xff]
  %v4069 = vld [vmem:[%s3 + $0x520] sm:$0xff]
  %v4070 = vld [vmem:[%s3 + $0x528] sm:$0xff]
  %v4071 = vld [vmem:[%s3 + $0x530] sm:$0xff]
  %v4072 = vld [vmem:[%s3 + $0x538] sm:$0xff]
  %v4073 = vld [vmem:[%s3 + $0x540] sm:$0xff]
  %v4074 = vld [vmem:[%s3 + $0x548] sm:$0xff]
  %v4075 = vld [vmem:[%s3 + $0x550] sm:$0xff]
  %v4076 = vld [vmem:[%s3 + $0x558] sm:$0xff]
  %v4077 = vld [vmem:[%s3 + $0x560] sm:$0xff]
  %v4078 = vld [vmem:[%s3 + $0x568] sm:$0xff]
  %v4079 = vld [vmem:[%s3 + $0x570] sm:$0xff]
  %v4080 = vld [vmem:[%s3 + $0x578] sm:$0xff]
  %v4081 = vld [vmem:[%s3 + $0x580] sm:$0xff]
  %v4082 = vld [vmem:[%s3 + $0x588] sm:$0xff]
  %v4083 = vld [vmem:[%s3 + $0x590] sm:$0xff]
  %v4084 = vld [vmem:[%s3 + $0x598] sm:$0xff]
  %v4085 = vld [vmem:[%s3 + $0x5a0] sm:$0xff]
  %v4086 = vld [vmem:[%s3 + $0x5a8] sm:$0xff]
  %v4087 = vld [vmem:[%s3 + $0x5b0] sm:$0xff]
  %v4088 = vld [vmem:[%s3 + $0x5b8] sm:$0xff]
  %v4089 = vld [vmem:[%s3 + $0x5c0] sm:$0xff]
  %v4090 = vld [vmem:[%s3 + $0x5c8] sm:$0xff]
  %v4091 = vld [vmem:[%s3 + $0x5d0] sm:$0xff]
  %v4092 = vld [vmem:[%s3 + $0x5d8] sm:$0xff]
  %v4093 = vld [vmem:[%s3 + $0x5e0] sm:$0xff]
  %v4094 = vld [vmem:[%s3 + $0x5e8] sm:$0xff]
  %v4095 = vld [vmem:[%s3 + $0x5f0] sm:$0xff]
  %v4096 = vld [vmem:[%s3 + $0x5f8] sm:$0xff]
  %v4097 = vld [vmem:[%s3 + $0x600] sm:$0xff]
  %v4098 = vld [vmem:[%s3 + $0x608] sm:$0xff]
  %v4099 = vld [vmem:[%s3 + $0x610] sm:$0xff]
  %v4100 = vld [vmem:[%s3 + $0x618] sm:$0xff]
  %v4101 = vld [vmem:[%s3 + $0x620] sm:$0xff]
  %v4102 = vld [vmem:[%s3 + $0x628] sm:$0xff]
  %v4103 = vld [vmem:[%s3 + $0x630] sm:$0xff]
  %v4104 = vld [vmem:[%s3 + $0x638] sm:$0xff]
  %v4105 = vld [vmem:[%s3 + $0x640] sm:$0xff]
  %v4106 = vld [vmem:[%s3 + $0x648] sm:$0xff]
  %v4107 = vld [vmem:[%s3 + $0x650] sm:$0xff]
  %v4108 = vld [vmem:[%s3 + $0x658] sm:$0xff]
  %v4109 = vld [vmem:[%s3 + $0x660] sm:$0xff]
  %v4110 = vld [vmem:[%s3 + $0x668] sm:$0xff]
  %v4111 = vld [vmem:[%s3 + $0x670] sm:$0xff]
  %v4112 = vld [vmem:[%s3 + $0x678] sm:$0xff]
  %v4113 = vld [vmem:[%s3 + $0x680] sm:$0xff]
  %v4114 = vld [vmem:[%s3 + $0x688] sm:$0xff]
  %v4115 = vld [vmem:[%s3 + $0x690] sm:$0xff]
  %v4116 = vld [vmem:[%s3 + $0x698] sm:$0xff]
  %v4117 = vld [vmem:[%s3 + $0x6a0] sm:$0xff]
  %v4118 = vld [vmem:[%s3 + $0x6a8] sm:$0xff]
  %v4119 = vld [vmem:[%s3 + $0x6b0] sm:$0xff]
  %v4120 = vld [vmem:[%s3 + $0x6b8] sm:$0xff]
  %v4121 = vld [vmem:[%s3 + $0x6c0] sm:$0xff]
  %v4122 = vld [vmem:[%s3 + $0x6c8] sm:$0xff]
  %v4123 = vld [vmem:[%s3 + $0x6d0] sm:$0xff]
  %v4124 = vld [vmem:[%s3 + $0x6d8] sm:$0xff]
  %v4125 = vld [vmem:[%s3 + $0x6e0] sm:$0xff]
  %v4126 = vld [vmem:[%s3 + $0x6e8] sm:$0xff]
  %v4127 = vld [vmem:[%s3 + $0x6f0] sm:$0xff]
  %v4128 = vld [vmem:[%s3 + $0x6f8] sm:$0xff]
  %v4129 = vld [vmem:[%s3 + $0x700] sm:$0xff]
  %v4130 = vld [vmem:[%s3 + $0x708] sm:$0xff]
  %v4131 = vld [vmem:[%s3 + $0x710] sm:$0xff]
  %v4132 = vld [vmem:[%s3 + $0x718] sm:$0xff]
  %v4133 = vld [vmem:[%s3 + $0x720] sm:$0xff]
  %v4134 = vld [vmem:[%s3 + $0x728] sm:$0xff]
  %v4135 = vld [vmem:[%s3 + $0x730] sm:$0xff]
  %v4136 = vld [vmem:[%s3 + $0x738] sm:$0xff]
  %v4137 = vld [vmem:[%s3 + $0x740] sm:$0xff]
  %v4138 = vld [vmem:[%s3 + $0x748] sm:$0xff]
  %v4139 = vld [vmem:[%s3 + $0x750] sm:$0xff]
  %v4140 = vld [vmem:[%s3 + $0x758] sm:$0xff]
  %v4141 = vld [vmem:[%s3 + $0x760] sm:$0xff]
  %v4142 = vld [vmem:[%s3 + $0x768] sm:$0xff]
  %v4143 = vld [vmem:[%s3 + $0x770] sm:$0xff]
  %v4144 = vld [vmem:[%s3 + $0x778] sm:$0xff]
  %v4145 = vld [vmem:[%s3 + $0x780] sm:$0xff]
  %v4146 = vld [vmem:[%s3 + $0x788] sm:$0xff]
  %v4147 = vld [vmem:[%s3 + $0x790] sm:$0xff]
  %v4148 = vld [vmem:[%s3 + $0x798] sm:$0xff]
  %v4149 = vld [vmem:[%s3 + $0x7a0] sm:$0xff]
  %v4150 = vld [vmem:[%s3 + $0x7a8] sm:$0xff]
  %v4151 = vld [vmem:[%s3 + $0x7b0] sm:$0xff]
  %v4152 = vld [vmem:[%s3 + $0x7b8] sm:$0xff]
  %v4153 = vld [vmem:[%s3 + $0x7c0] sm:$0xff]
  %v4154 = vld [vmem:[%s3 + $0x7c8] sm:$0xff]
  %v4155 = vld [vmem:[%s3 + $0x7d0] sm:$0xff]
  %v4156 = vld [vmem:[%s3 + $0x7d8] sm:$0xff]
  %v4157 = vld [vmem:[%s3 + $0x7e0] sm:$0xff]
  %v4158 = vld [vmem:[%s3 + $0x7e8] sm:$0xff]
  %v4159 = vld [vmem:[%s3 + $0x7f0] sm:$0xff]
  %v4160 = vld [vmem:[%s3 + $0x7f8] sm:$0xff]
  %v4161 = vld [vmem:[%s4] sm:$0xf]
  %v4163 = vlaneseq
  %v4164 = vshrl.u32 %v4163, 7
  %v4165 = vsub.s32 0, %v4164
  %v4166 = vrot.slane %v4161, %v4165
  %v4167 = vlaneseq
  %v4168 = vshrl.u32 %v4167, 7
  %v4169 = vsub.s32 1, %v4168
  %v4170 = vrot.slane %v4161, %v4169
  %v4171 = vlaneseq
  %v4172 = vshrl.u32 %v4171, 7
  %v4173 = vsub.s32 2, %v4172
  %v4174 = vrot.slane %v4161, %v4173
  %v4175 = vlaneseq
  %v4176 = vshrl.u32 %v4175, 7
  %v4177 = vsub.s32 3, %v4176
  %v4178 = vrot.slane %v4161, %v4177
  %v4439 = vunpack.c.l.b16 %v3905
  %v4440 = vunpack.c.h.b16 %v3905
  %v4441 = vunpack.c.l.b16 %v3906
  %v4442 = vunpack.c.h.b16 %v3906
  %v4443 = vunpack.c.l.b16 %v3907
  %v4444 = vunpack.c.h.b16 %v3907
  %v4445 = vunpack.c.l.b16 %v3908
  %v4446 = vunpack.c.h.b16 %v3908
  %v4447 = vunpack.c.l.b16 %v3909
  %v4448 = vunpack.c.h.b16 %v3909
  %v4449 = vunpack.c.l.b16 %v3910
  %v4450 = vunpack.c.h.b16 %v3910
  %v4451 = vunpack.c.l.b16 %v3911
  %v4452 = vunpack.c.h.b16 %v3911
  %v4453 = vunpack.c.l.b16 %v3912
  %v4454 = vunpack.c.h.b16 %v3912
  %v4455 = vunpack.c.l.b16 %v3913
  %v4456 = vunpack.c.h.b16 %v3913
  %v4457 = vunpack.c.l.b16 %v3914
  %v4458 = vunpack.c.h.b16 %v3914
  %v4459 = vunpack.c.l.b16 %v3915
  %v4460 = vunpack.c.h.b16 %v3915
  %v4461 = vunpack.c.l.b16 %v3916
  %v4462 = vunpack.c.h.b16 %v3916
  %v4463 = vunpack.c.l.b16 %v3917
  %v4464 = vunpack.c.h.b16 %v3917
  %v4465 = vunpack.c.l.b16 %v3918
  %v4466 = vunpack.c.h.b16 %v3918
  %v4467 = vunpack.c.l.b16 %v3919
  %v4468 = vunpack.c.h.b16 %v3919
  %v4469 = vunpack.c.l.b16 %v3920
  %v4470 = vunpack.c.h.b16 %v3920
  %v4471 = vunpack.c.l.b16 %v3921
  %v4472 = vunpack.c.h.b16 %v3921
  %v4473 = vunpack.c.l.b16 %v3922
  %v4474 = vunpack.c.h.b16 %v3922
  %v4475 = vunpack.c.l.b16 %v3923
  %v4476 = vunpack.c.h.b16 %v3923
  %v4477 = vunpack.c.l.b16 %v3924
  %v4478 = vunpack.c.h.b16 %v3924
  %v4479 = vunpack.c.l.b16 %v3925
  %v4480 = vunpack.c.h.b16 %v3925
  %v4481 = vunpack.c.l.b16 %v3926
  %v4482 = vunpack.c.h.b16 %v3926
  %v4483 = vunpack.c.l.b16 %v3927
  %v4484 = vunpack.c.h.b16 %v3927
  %v4485 = vunpack.c.l.b16 %v3928
  %v4486 = vunpack.c.h.b16 %v3928
  %v4487 = vunpack.c.l.b16 %v3929
  %v4488 = vunpack.c.h.b16 %v3929
  %v4489 = vunpack.c.l.b16 %v3930
  %v4490 = vunpack.c.h.b16 %v3930
  %v4491 = vunpack.c.l.b16 %v3931
  %v4492 = vunpack.c.h.b16 %v3931
  %v4493 = vunpack.c.l.b16 %v3932
  %v4494 = vunpack.c.h.b16 %v3932
  %v4495 = vunpack.c.l.b16 %v3933
  %v4496 = vunpack.c.h.b16 %v3933
  %v4497 = vunpack.c.l.b16 %v3934
  %v4498 = vunpack.c.h.b16 %v3934
  %v4499 = vunpack.c.l.b16 %v3935
  %v4500 = vunpack.c.h.b16 %v3935
  %v4501 = vunpack.c.l.b16 %v3936
  %v4502 = vunpack.c.h.b16 %v3936
  %v4503 = vunpack.c.l.b16 %v3937
  %v4504 = vunpack.c.h.b16 %v3937
  %v4505 = vunpack.c.l.b16 %v3938
  %v4506 = vunpack.c.h.b16 %v3938
  %v4507 = vunpack.c.l.b16 %v3939
  %v4508 = vunpack.c.h.b16 %v3939
  %v4509 = vunpack.c.l.b16 %v3940
  %v4510 = vunpack.c.h.b16 %v3940
  %v4511 = vunpack.c.l.b16 %v3941
  %v4512 = vunpack.c.h.b16 %v3941
  %v4513 = vunpack.c.l.b16 %v3942
  %v4514 = vunpack.c.h.b16 %v3942
  %v4515 = vunpack.c.l.b16 %v3943
  %v4516 = vunpack.c.h.b16 %v3943
  %v4517 = vunpack.c.l.b16 %v3944
  %v4518 = vunpack.c.h.b16 %v3944
  %v4519 = vunpack.c.l.b16 %v3945
  %v4520 = vunpack.c.h.b16 %v3945
  %v4521 = vunpack.c.l.b16 %v3946
  %v4522 = vunpack.c.h.b16 %v3946
  %v4523 = vunpack.c.l.b16 %v3947
  %v4524 = vunpack.c.h.b16 %v3947
  %v4525 = vunpack.c.l.b16 %v3948
  %v4526 = vunpack.c.h.b16 %v3948
  %v4527 = vunpack.c.l.b16 %v3949
  %v4528 = vunpack.c.h.b16 %v3949
  %v4529 = vunpack.c.l.b16 %v3950
  %v4530 = vunpack.c.h.b16 %v3950
  %v4531 = vunpack.c.l.b16 %v3951
  %v4532 = vunpack.c.h.b16 %v3951
  %v4533 = vunpack.c.l.b16 %v3952
  %v4534 = vunpack.c.h.b16 %v3952
  %v4535 = vunpack.c.l.b16 %v3953
  %v4536 = vunpack.c.h.b16 %v3953
  %v4537 = vunpack.c.l.b16 %v3954
  %v4538 = vunpack.c.h.b16 %v3954
  %v4539 = vunpack.c.l.b16 %v3955
  %v4540 = vunpack.c.h.b16 %v3955
  %v4541 = vunpack.c.l.b16 %v3956
  %v4542 = vunpack.c.h.b16 %v3956
  %v4543 = vunpack.c.l.b16 %v3957
  %v4544 = vunpack.c.h.b16 %v3957
  %v4545 = vunpack.c.l.b16 %v3958
  %v4546 = vunpack.c.h.b16 %v3958
  %v4547 = vunpack.c.l.b16 %v3959
  %v4548 = vunpack.c.h.b16 %v3959
  %v4549 = vunpack.c.l.b16 %v3960
  %v4550 = vunpack.c.h.b16 %v3960
  %v4551 = vunpack.c.l.b16 %v3961
  %v4552 = vunpack.c.h.b16 %v3961
  %v4553 = vunpack.c.l.b16 %v3962
  %v4554 = vunpack.c.h.b16 %v3962
  %v4555 = vunpack.c.l.b16 %v3963
  %v4556 = vunpack.c.h.b16 %v3963
  %v4557 = vunpack.c.l.b16 %v3964
  %v4558 = vunpack.c.h.b16 %v3964
  %v4559 = vunpack.c.l.b16 %v3965
  %v4560 = vunpack.c.h.b16 %v3965
  %v4561 = vunpack.c.l.b16 %v3966
  %v4562 = vunpack.c.h.b16 %v3966
  %v4563 = vunpack.c.l.b16 %v3967
  %v4564 = vunpack.c.h.b16 %v3967
  %v4565 = vunpack.c.l.b16 %v3968
  %v4566 = vunpack.c.h.b16 %v3968
  %v4567 = vunpack.c.l.b16 %v3969
  %v4568 = vunpack.c.h.b16 %v3969
  %v4569 = vunpack.c.l.b16 %v3970
  %v4570 = vunpack.c.h.b16 %v3970
  %v4571 = vunpack.c.l.b16 %v3971
  %v4572 = vunpack.c.h.b16 %v3971
  %v4573 = vunpack.c.l.b16 %v3972
  %v4574 = vunpack.c.h.b16 %v3972
  %v4575 = vunpack.c.l.b16 %v3973
  %v4576 = vunpack.c.h.b16 %v3973
  %v4577 = vunpack.c.l.b16 %v3974
  %v4578 = vunpack.c.h.b16 %v3974
  %v4579 = vunpack.c.l.b16 %v3975
  %v4580 = vunpack.c.h.b16 %v3975
  %v4581 = vunpack.c.l.b16 %v3976
  %v4582 = vunpack.c.h.b16 %v3976
  %v4583 = vunpack.c.l.b16 %v3977
  %v4584 = vunpack.c.h.b16 %v3977
  %v4585 = vunpack.c.l.b16 %v3978
  %v4586 = vunpack.c.h.b16 %v3978
  %v4587 = vunpack.c.l.b16 %v3979
  %v4588 = vunpack.c.h.b16 %v3979
  %v4589 = vunpack.c.l.b16 %v3980
  %v4590 = vunpack.c.h.b16 %v3980
  %v4591 = vunpack.c.l.b16 %v3981
  %v4592 = vunpack.c.h.b16 %v3981
  %v4593 = vunpack.c.l.b16 %v3982
  %v4594 = vunpack.c.h.b16 %v3982
  %v4595 = vunpack.c.l.b16 %v3983
  %v4596 = vunpack.c.h.b16 %v3983
  %v4597 = vunpack.c.l.b16 %v3984
  %v4598 = vunpack.c.h.b16 %v3984
  %v4599 = vunpack.c.l.b16 %v3985
  %v4600 = vunpack.c.h.b16 %v3985
  %v4601 = vunpack.c.l.b16 %v3986
  %v4602 = vunpack.c.h.b16 %v3986
  %v4603 = vunpack.c.l.b16 %v3987
  %v4604 = vunpack.c.h.b16 %v3987
  %v4605 = vunpack.c.l.b16 %v3988
  %v4606 = vunpack.c.h.b16 %v3988
  %v4607 = vunpack.c.l.b16 %v3989
  %v4608 = vunpack.c.h.b16 %v3989
  %v4609 = vunpack.c.l.b16 %v3990
  %v4610 = vunpack.c.h.b16 %v3990
  %v4611 = vunpack.c.l.b16 %v3991
  %v4612 = vunpack.c.h.b16 %v3991
  %v4613 = vunpack.c.l.b16 %v3992
  %v4614 = vunpack.c.h.b16 %v3992
  %v4615 = vunpack.c.l.b16 %v3993
  %v4616 = vunpack.c.h.b16 %v3993
  %v4617 = vunpack.c.l.b16 %v3994
  %v4618 = vunpack.c.h.b16 %v3994
  %v4619 = vunpack.c.l.b16 %v3995
  %v4620 = vunpack.c.h.b16 %v3995
  %v4621 = vunpack.c.l.b16 %v3996
  %v4622 = vunpack.c.h.b16 %v3996
  %v4623 = vunpack.c.l.b16 %v3997
  %v4624 = vunpack.c.h.b16 %v3997
  %v4625 = vunpack.c.l.b16 %v3998
  %v4626 = vunpack.c.h.b16 %v3998
  %v4627 = vunpack.c.l.b16 %v3999
  %v4628 = vunpack.c.h.b16 %v3999
  %v4629 = vunpack.c.l.b16 %v4000
  %v4630 = vunpack.c.h.b16 %v4000
  %v4631 = vunpack.c.l.b16 %v4001
  %v4632 = vunpack.c.h.b16 %v4001
  %v4633 = vunpack.c.l.b16 %v4002
  %v4634 = vunpack.c.h.b16 %v4002
  %v4635 = vunpack.c.l.b16 %v4003
  %v4636 = vunpack.c.h.b16 %v4003
  %v4637 = vunpack.c.l.b16 %v4004
  %v4638 = vunpack.c.h.b16 %v4004
  %v4639 = vunpack.c.l.b16 %v4005
  %v4640 = vunpack.c.h.b16 %v4005
  %v4641 = vunpack.c.l.b16 %v4006
  %v4642 = vunpack.c.h.b16 %v4006
  %v4643 = vunpack.c.l.b16 %v4007
  %v4644 = vunpack.c.h.b16 %v4007
  %v4645 = vunpack.c.l.b16 %v4008
  %v4646 = vunpack.c.h.b16 %v4008
  %v4647 = vunpack.c.l.b16 %v4009
  %v4648 = vunpack.c.h.b16 %v4009
  %v4649 = vunpack.c.l.b16 %v4010
  %v4650 = vunpack.c.h.b16 %v4010
  %v4651 = vunpack.c.l.b16 %v4011
  %v4652 = vunpack.c.h.b16 %v4011
  %v4653 = vunpack.c.l.b16 %v4012
  %v4654 = vunpack.c.h.b16 %v4012
  %v4655 = vunpack.c.l.b16 %v4013
  %v4656 = vunpack.c.h.b16 %v4013
  %v4657 = vunpack.c.l.b16 %v4014
  %v4658 = vunpack.c.h.b16 %v4014
  %v4659 = vunpack.c.l.b16 %v4015
  %v4660 = vunpack.c.h.b16 %v4015
  %v4661 = vunpack.c.l.b16 %v4016
  %v4662 = vunpack.c.h.b16 %v4016
  %v4663 = vunpack.c.l.b16 %v4017
  %v4664 = vunpack.c.h.b16 %v4017
  %v4665 = vunpack.c.l.b16 %v4018
  %v4666 = vunpack.c.h.b16 %v4018
  %v4667 = vunpack.c.l.b16 %v4019
  %v4668 = vunpack.c.h.b16 %v4019
  %v4669 = vunpack.c.l.b16 %v4020
  %v4670 = vunpack.c.h.b16 %v4020
  %v4671 = vunpack.c.l.b16 %v4021
  %v4672 = vunpack.c.h.b16 %v4021
  %v4673 = vunpack.c.l.b16 %v4022
  %v4674 = vunpack.c.h.b16 %v4022
  %v4675 = vunpack.c.l.b16 %v4023
  %v4676 = vunpack.c.h.b16 %v4023
  %v4677 = vunpack.c.l.b16 %v4024
  %v4678 = vunpack.c.h.b16 %v4024
  %v4679 = vunpack.c.l.b16 %v4025
  %v4680 = vunpack.c.h.b16 %v4025
  %v4681 = vunpack.c.l.b16 %v4026
  %v4682 = vunpack.c.h.b16 %v4026
  %v4683 = vunpack.c.l.b16 %v4027
  %v4684 = vunpack.c.h.b16 %v4027
  %v4685 = vunpack.c.l.b16 %v4028
  %v4686 = vunpack.c.h.b16 %v4028
  %v4687 = vunpack.c.l.b16 %v4029
  %v4688 = vunpack.c.h.b16 %v4029
  %v4689 = vunpack.c.l.b16 %v4030
  %v4690 = vunpack.c.h.b16 %v4030
  %v4691 = vunpack.c.l.b16 %v4031
  %v4692 = vunpack.c.h.b16 %v4031
  %v4693 = vunpack.c.l.b16 %v4032
  %v4694 = vunpack.c.h.b16 %v4032
  %v4695 = vunpack.c.l.b16 %v4033
  %v4696 = vunpack.c.h.b16 %v4033
  %v4697 = vunpack.c.l.b16 %v4034
  %v4698 = vunpack.c.h.b16 %v4034
  %v4699 = vunpack.c.l.b16 %v4035
  %v4700 = vunpack.c.h.b16 %v4035
  %v4701 = vunpack.c.l.b16 %v4036
  %v4702 = vunpack.c.h.b16 %v4036
  %v4703 = vunpack.c.l.b16 %v4037
  %v4704 = vunpack.c.h.b16 %v4037
  %v4705 = vunpack.c.l.b16 %v4038
  %v4706 = vunpack.c.h.b16 %v4038
  %v4707 = vunpack.c.l.b16 %v4039
  %v4708 = vunpack.c.h.b16 %v4039
  %v4709 = vunpack.c.l.b16 %v4040
  %v4710 = vunpack.c.h.b16 %v4040
  %v4711 = vunpack.c.l.b16 %v4041
  %v4712 = vunpack.c.h.b16 %v4041
  %v4713 = vunpack.c.l.b16 %v4042
  %v4714 = vunpack.c.h.b16 %v4042
  %v4715 = vunpack.c.l.b16 %v4043
  %v4716 = vunpack.c.h.b16 %v4043
  %v4717 = vunpack.c.l.b16 %v4044
  %v4718 = vunpack.c.h.b16 %v4044
  %v4719 = vunpack.c.l.b16 %v4045
  %v4720 = vunpack.c.h.b16 %v4045
  %v4721 = vunpack.c.l.b16 %v4046
  %v4722 = vunpack.c.h.b16 %v4046
  %v4723 = vunpack.c.l.b16 %v4047
  %v4724 = vunpack.c.h.b16 %v4047
  %v4725 = vunpack.c.l.b16 %v4048
  %v4726 = vunpack.c.h.b16 %v4048
  %v4727 = vunpack.c.l.b16 %v4049
  %v4728 = vunpack.c.h.b16 %v4049
  %v4729 = vunpack.c.l.b16 %v4050
  %v4730 = vunpack.c.h.b16 %v4050
  %v4731 = vunpack.c.l.b16 %v4051
  %v4732 = vunpack.c.h.b16 %v4051
  %v4733 = vunpack.c.l.b16 %v4052
  %v4734 = vunpack.c.h.b16 %v4052
  %v4735 = vunpack.c.l.b16 %v4053
  %v4736 = vunpack.c.h.b16 %v4053
  %v4737 = vunpack.c.l.b16 %v4054
  %v4738 = vunpack.c.h.b16 %v4054
  %v4739 = vunpack.c.l.b16 %v4055
  %v4740 = vunpack.c.h.b16 %v4055
  %v4741 = vunpack.c.l.b16 %v4056
  %v4742 = vunpack.c.h.b16 %v4056
  %v4743 = vunpack.c.l.b16 %v4057
  %v4744 = vunpack.c.h.b16 %v4057
  %v4745 = vunpack.c.l.b16 %v4058
  %v4746 = vunpack.c.h.b16 %v4058
  %v4747 = vunpack.c.l.b16 %v4059
  %v4748 = vunpack.c.h.b16 %v4059
  %v4749 = vunpack.c.l.b16 %v4060
  %v4750 = vunpack.c.h.b16 %v4060
  %v4751 = vunpack.c.l.b16 %v4061
  %v4752 = vunpack.c.h.b16 %v4061
  %v4753 = vunpack.c.l.b16 %v4062
  %v4754 = vunpack.c.h.b16 %v4062
  %v4755 = vunpack.c.l.b16 %v4063
  %v4756 = vunpack.c.h.b16 %v4063
  %v4757 = vunpack.c.l.b16 %v4064
  %v4758 = vunpack.c.h.b16 %v4064
  %v4759 = vunpack.c.l.b16 %v4065
  %v4760 = vunpack.c.h.b16 %v4065
  %v4761 = vunpack.c.l.b16 %v4066
  %v4762 = vunpack.c.h.b16 %v4066
  %v4763 = vunpack.c.l.b16 %v4067
  %v4764 = vunpack.c.h.b16 %v4067
  %v4765 = vunpack.c.l.b16 %v4068
  %v4766 = vunpack.c.h.b16 %v4068
  %v4767 = vunpack.c.l.b16 %v4069
  %v4768 = vunpack.c.h.b16 %v4069
  %v4769 = vunpack.c.l.b16 %v4070
  %v4770 = vunpack.c.h.b16 %v4070
  %v4771 = vunpack.c.l.b16 %v4071
  %v4772 = vunpack.c.h.b16 %v4071
  %v4773 = vunpack.c.l.b16 %v4072
  %v4774 = vunpack.c.h.b16 %v4072
  %v4775 = vunpack.c.l.b16 %v4073
  %v4776 = vunpack.c.h.b16 %v4073
  %v4777 = vunpack.c.l.b16 %v4074
  %v4778 = vunpack.c.h.b16 %v4074
  %v4779 = vunpack.c.l.b16 %v4075
  %v4780 = vunpack.c.h.b16 %v4075
  %v4781 = vunpack.c.l.b16 %v4076
  %v4782 = vunpack.c.h.b16 %v4076
  %v4783 = vunpack.c.l.b16 %v4077
  %v4784 = vunpack.c.h.b16 %v4077
  %v4785 = vunpack.c.l.b16 %v4078
  %v4786 = vunpack.c.h.b16 %v4078
  %v4787 = vunpack.c.l.b16 %v4079
  %v4788 = vunpack.c.h.b16 %v4079
  %v4789 = vunpack.c.l.b16 %v4080
  %v4790 = vunpack.c.h.b16 %v4080
  %v4791 = vunpack.c.l.b16 %v4081
  %v4792 = vunpack.c.h.b16 %v4081
  %v4793 = vunpack.c.l.b16 %v4082
  %v4794 = vunpack.c.h.b16 %v4082
  %v4795 = vunpack.c.l.b16 %v4083
  %v4796 = vunpack.c.h.b16 %v4083
  %v4797 = vunpack.c.l.b16 %v4084
  %v4798 = vunpack.c.h.b16 %v4084
  %v4799 = vunpack.c.l.b16 %v4085
  %v4800 = vunpack.c.h.b16 %v4085
  %v4801 = vunpack.c.l.b16 %v4086
  %v4802 = vunpack.c.h.b16 %v4086
  %v4803 = vunpack.c.l.b16 %v4087
  %v4804 = vunpack.c.h.b16 %v4087
  %v4805 = vunpack.c.l.b16 %v4088
  %v4806 = vunpack.c.h.b16 %v4088
  %v4807 = vunpack.c.l.b16 %v4089
  %v4808 = vunpack.c.h.b16 %v4089
  %v4809 = vunpack.c.l.b16 %v4090
  %v4810 = vunpack.c.h.b16 %v4090
  %v4811 = vunpack.c.l.b16 %v4091
  %v4812 = vunpack.c.h.b16 %v4091
  %v4813 = vunpack.c.l.b16 %v4092
  %v4814 = vunpack.c.h.b16 %v4092
  %v4815 = vunpack.c.l.b16 %v4093
  %v4816 = vunpack.c.h.b16 %v4093
  %v4817 = vunpack.c.l.b16 %v4094
  %v4818 = vunpack.c.h.b16 %v4094
  %v4819 = vunpack.c.l.b16 %v4095
  %v4820 = vunpack.c.h.b16 %v4095
  %v4821 = vunpack.c.l.b16 %v4096
  %v4822 = vunpack.c.h.b16 %v4096
  %v4823 = vunpack.c.l.b16 %v4097
  %v4824 = vunpack.c.h.b16 %v4097
  %v4825 = vunpack.c.l.b16 %v4098
  %v4826 = vunpack.c.h.b16 %v4098
  %v4827 = vunpack.c.l.b16 %v4099
  %v4828 = vunpack.c.h.b16 %v4099
  %v4829 = vunpack.c.l.b16 %v4100
  %v4830 = vunpack.c.h.b16 %v4100
  %v4831 = vunpack.c.l.b16 %v4101
  %v4832 = vunpack.c.h.b16 %v4101
  %v4833 = vunpack.c.l.b16 %v4102
  %v4834 = vunpack.c.h.b16 %v4102
  %v4835 = vunpack.c.l.b16 %v4103
  %v4836 = vunpack.c.h.b16 %v4103
  %v4837 = vunpack.c.l.b16 %v4104
  %v4838 = vunpack.c.h.b16 %v4104
  %v4839 = vunpack.c.l.b16 %v4105
  %v4840 = vunpack.c.h.b16 %v4105
  %v4841 = vunpack.c.l.b16 %v4106
  %v4842 = vunpack.c.h.b16 %v4106
  %v4843 = vunpack.c.l.b16 %v4107
  %v4844 = vunpack.c.h.b16 %v4107
  %v4845 = vunpack.c.l.b16 %v4108
  %v4846 = vunpack.c.h.b16 %v4108
  %v4847 = vunpack.c.l.b16 %v4109
  %v4848 = vunpack.c.h.b16 %v4109
  %v4849 = vunpack.c.l.b16 %v4110
  %v4850 = vunpack.c.h.b16 %v4110
  %v4851 = vunpack.c.l.b16 %v4111
  %v4852 = vunpack.c.h.b16 %v4111
  %v4853 = vunpack.c.l.b16 %v4112
  %v4854 = vunpack.c.h.b16 %v4112
  %v4855 = vunpack.c.l.b16 %v4113
  %v4856 = vunpack.c.h.b16 %v4113
  %v4857 = vunpack.c.l.b16 %v4114
  %v4858 = vunpack.c.h.b16 %v4114
  %v4859 = vunpack.c.l.b16 %v4115
  %v4860 = vunpack.c.h.b16 %v4115
  %v4861 = vunpack.c.l.b16 %v4116
  %v4862 = vunpack.c.h.b16 %v4116
  %v4863 = vunpack.c.l.b16 %v4117
  %v4864 = vunpack.c.h.b16 %v4117
  %v4865 = vunpack.c.l.b16 %v4118
  %v4866 = vunpack.c.h.b16 %v4118
  %v4867 = vunpack.c.l.b16 %v4119
  %v4868 = vunpack.c.h.b16 %v4119
  %v4869 = vunpack.c.l.b16 %v4120
  %v4870 = vunpack.c.h.b16 %v4120
  %v4871 = vunpack.c.l.b16 %v4121
  %v4872 = vunpack.c.h.b16 %v4121
  %v4873 = vunpack.c.l.b16 %v4122
  %v4874 = vunpack.c.h.b16 %v4122
  %v4875 = vunpack.c.l.b16 %v4123
  %v4876 = vunpack.c.h.b16 %v4123
  %v4877 = vunpack.c.l.b16 %v4124
  %v4878 = vunpack.c.h.b16 %v4124
  %v4879 = vunpack.c.l.b16 %v4125
  %v4880 = vunpack.c.h.b16 %v4125
  %v4881 = vunpack.c.l.b16 %v4126
  %v4882 = vunpack.c.h.b16 %v4126
  %v4883 = vunpack.c.l.b16 %v4127
  %v4884 = vunpack.c.h.b16 %v4127
  %v4885 = vunpack.c.l.b16 %v4128
  %v4886 = vunpack.c.h.b16 %v4128
  %v4887 = vunpack.c.l.b16 %v4129
  %v4888 = vunpack.c.h.b16 %v4129
  %v4889 = vunpack.c.l.b16 %v4130
  %v4890 = vunpack.c.h.b16 %v4130
  %v4891 = vunpack.c.l.b16 %v4131
  %v4892 = vunpack.c.h.b16 %v4131
  %v4893 = vunpack.c.l.b16 %v4132
  %v4894 = vunpack.c.h.b16 %v4132
  %v4895 = vunpack.c.l.b16 %v4133
  %v4896 = vunpack.c.h.b16 %v4133
  %v4897 = vunpack.c.l.b16 %v4134
  %v4898 = vunpack.c.h.b16 %v4134
  %v4899 = vunpack.c.l.b16 %v4135
  %v4900 = vunpack.c.h.b16 %v4135
  %v4901 = vunpack.c.l.b16 %v4136
  %v4902 = vunpack.c.h.b16 %v4136
  %v4903 = vunpack.c.l.b16 %v4137
  %v4904 = vunpack.c.h.b16 %v4137
  %v4905 = vunpack.c.l.b16 %v4138
  %v4906 = vunpack.c.h.b16 %v4138
  %v4907 = vunpack.c.l.b16 %v4139
  %v4908 = vunpack.c.h.b16 %v4139
  %v4909 = vunpack.c.l.b16 %v4140
  %v4910 = vunpack.c.h.b16 %v4140
  %v4911 = vunpack.c.l.b16 %v4141
  %v4912 = vunpack.c.h.b16 %v4141
  %v4913 = vunpack.c.l.b16 %v4142
  %v4914 = vunpack.c.h.b16 %v4142
  %v4915 = vunpack.c.l.b16 %v4143
  %v4916 = vunpack.c.h.b16 %v4143
  %v4917 = vunpack.c.l.b16 %v4144
  %v4918 = vunpack.c.h.b16 %v4144
  %v4919 = vunpack.c.l.b16 %v4145
  %v4920 = vunpack.c.h.b16 %v4145
  %v4921 = vunpack.c.l.b16 %v4146
  %v4922 = vunpack.c.h.b16 %v4146
  %v4923 = vunpack.c.l.b16 %v4147
  %v4924 = vunpack.c.h.b16 %v4147
  %v4925 = vunpack.c.l.b16 %v4148
  %v4926 = vunpack.c.h.b16 %v4148
  %v4927 = vunpack.c.l.b16 %v4149
  %v4928 = vunpack.c.h.b16 %v4149
  %v4929 = vunpack.c.l.b16 %v4150
  %v4930 = vunpack.c.h.b16 %v4150
  %v4931 = vunpack.c.l.b16 %v4151
  %v4932 = vunpack.c.h.b16 %v4151
  %v4933 = vunpack.c.l.b16 %v4152
  %v4934 = vunpack.c.h.b16 %v4152
  %v4935 = vunpack.c.l.b16 %v4153
  %v4936 = vunpack.c.h.b16 %v4153
  %v4937 = vunpack.c.l.b16 %v4154
  %v4938 = vunpack.c.h.b16 %v4154
  %v4939 = vunpack.c.l.b16 %v4155
  %v4940 = vunpack.c.h.b16 %v4155
  %v4941 = vunpack.c.l.b16 %v4156
  %v4942 = vunpack.c.h.b16 %v4156
  %v4943 = vunpack.c.l.b16 %v4157
  %v4944 = vunpack.c.h.b16 %v4157
  %v4945 = vunpack.c.l.b16 %v4158
  %v4946 = vunpack.c.h.b16 %v4158
  %v4947 = vunpack.c.l.b16 %v4159
  %v4948 = vunpack.c.h.b16 %v4159
  %v4949 = vunpack.c.l.b16 %v4160
  %v4950 = vunpack.c.h.b16 %v4160
  %v4951 = vpack.c.b16 %v4443, %v4439
  %v4952 = vpack.c.b16 %v4444, %v4440
  %v4953 = vpack.c.b16 %v4445, %v4441
  %v4954 = vpack.c.b16 %v4446, %v4442
  %v4955 = vpack.c.b16 %v4451, %v4447
  %v4956 = vpack.c.b16 %v4452, %v4448
  %v4957 = vpack.c.b16 %v4453, %v4449
  %v4958 = vpack.c.b16 %v4454, %v4450
  %v4959 = vpack.c.b16 %v4459, %v4455
  %v4960 = vpack.c.b16 %v4460, %v4456
  %v4961 = vpack.c.b16 %v4461, %v4457
  %v4962 = vpack.c.b16 %v4462, %v4458
  %v4963 = vpack.c.b16 %v4467, %v4463
  %v4964 = vpack.c.b16 %v4468, %v4464
  %v4965 = vpack.c.b16 %v4469, %v4465
  %v4966 = vpack.c.b16 %v4470, %v4466
  %v4967 = vpack.c.b16 %v4475, %v4471
  %v4968 = vpack.c.b16 %v4476, %v4472
  %v4969 = vpack.c.b16 %v4477, %v4473
  %v4970 = vpack.c.b16 %v4478, %v4474
  %v4971 = vpack.c.b16 %v4483, %v4479
  %v4972 = vpack.c.b16 %v4484, %v4480
  %v4973 = vpack.c.b16 %v4485, %v4481
  %v4974 = vpack.c.b16 %v4486, %v4482
  %v4975 = vpack.c.b16 %v4491, %v4487
  %v4976 = vpack.c.b16 %v4492, %v4488
  %v4977 = vpack.c.b16 %v4493, %v4489
  %v4978 = vpack.c.b16 %v4494, %v4490
  %v4979 = vpack.c.b16 %v4499, %v4495
  %v4980 = vpack.c.b16 %v4500, %v4496
  %v4981 = vpack.c.b16 %v4501, %v4497
  %v4982 = vpack.c.b16 %v4502, %v4498
  %v4983 = vpack.c.b16 %v4507, %v4503
  %v4984 = vpack.c.b16 %v4508, %v4504
  %v4985 = vpack.c.b16 %v4509, %v4505
  %v4986 = vpack.c.b16 %v4510, %v4506
  %v4987 = vpack.c.b16 %v4515, %v4511
  %v4988 = vpack.c.b16 %v4516, %v4512
  %v4989 = vpack.c.b16 %v4517, %v4513
  %v4990 = vpack.c.b16 %v4518, %v4514
  %v4991 = vpack.c.b16 %v4523, %v4519
  %v4992 = vpack.c.b16 %v4524, %v4520
  %v4993 = vpack.c.b16 %v4525, %v4521
  %v4994 = vpack.c.b16 %v4526, %v4522
  %v4995 = vpack.c.b16 %v4531, %v4527
  %v4996 = vpack.c.b16 %v4532, %v4528
  %v4997 = vpack.c.b16 %v4533, %v4529
  %v4998 = vpack.c.b16 %v4534, %v4530
  %v4999 = vpack.c.b16 %v4539, %v4535
  %v5000 = vpack.c.b16 %v4540, %v4536
  %v5001 = vpack.c.b16 %v4541, %v4537
  %v5002 = vpack.c.b16 %v4542, %v4538
  %v5003 = vpack.c.b16 %v4547, %v4543
  %v5004 = vpack.c.b16 %v4548, %v4544
  %v5005 = vpack.c.b16 %v4549, %v4545
  %v5006 = vpack.c.b16 %v4550, %v4546
  %v5007 = vpack.c.b16 %v4555, %v4551
  %v5008 = vpack.c.b16 %v4556, %v4552
  %v5009 = vpack.c.b16 %v4557, %v4553
  %v5010 = vpack.c.b16 %v4558, %v4554
  %v5011 = vpack.c.b16 %v4563, %v4559
  %v5012 = vpack.c.b16 %v4564, %v4560
  %v5013 = vpack.c.b16 %v4565, %v4561
  %v5014 = vpack.c.b16 %v4566, %v4562
  %v5015 = vpack.c.b16 %v4571, %v4567
  %v5016 = vpack.c.b16 %v4572, %v4568
  %v5017 = vpack.c.b16 %v4573, %v4569
  %v5018 = vpack.c.b16 %v4574, %v4570
  %v5019 = vpack.c.b16 %v4579, %v4575
  %v5020 = vpack.c.b16 %v4580, %v4576
  %v5021 = vpack.c.b16 %v4581, %v4577
  %v5022 = vpack.c.b16 %v4582, %v4578
  %v5023 = vpack.c.b16 %v4587, %v4583
  %v5024 = vpack.c.b16 %v4588, %v4584
  %v5025 = vpack.c.b16 %v4589, %v4585
  %v5026 = vpack.c.b16 %v4590, %v4586
  %v5027 = vpack.c.b16 %v4595, %v4591
  %v5028 = vpack.c.b16 %v4596, %v4592
  %v5029 = vpack.c.b16 %v4597, %v4593
  %v5030 = vpack.c.b16 %v4598, %v4594
  %v5031 = vpack.c.b16 %v4603, %v4599
  %v5032 = vpack.c.b16 %v4604, %v4600
  %v5033 = vpack.c.b16 %v4605, %v4601
  %v5034 = vpack.c.b16 %v4606, %v4602
  %v5035 = vpack.c.b16 %v4611, %v4607
  %v5036 = vpack.c.b16 %v4612, %v4608
  %v5037 = vpack.c.b16 %v4613, %v4609
  %v5038 = vpack.c.b16 %v4614, %v4610
  %v5039 = vpack.c.b16 %v4619, %v4615
  %v5040 = vpack.c.b16 %v4620, %v4616
  %v5041 = vpack.c.b16 %v4621, %v4617
  %v5042 = vpack.c.b16 %v4622, %v4618
  %v5043 = vpack.c.b16 %v4627, %v4623
  %v5044 = vpack.c.b16 %v4628, %v4624
  %v5045 = vpack.c.b16 %v4629, %v4625
  %v5046 = vpack.c.b16 %v4630, %v4626
  %v5047 = vpack.c.b16 %v4635, %v4631
  %v5048 = vpack.c.b16 %v4636, %v4632
  %v5049 = vpack.c.b16 %v4637, %v4633
  %v5050 = vpack.c.b16 %v4638, %v4634
  %v5051 = vpack.c.b16 %v4643, %v4639
  %v5052 = vpack.c.b16 %v4644, %v4640
  %v5053 = vpack.c.b16 %v4645, %v4641
  %v5054 = vpack.c.b16 %v4646, %v4642
  %v5055 = vpack.c.b16 %v4651, %v4647
  %v5056 = vpack.c.b16 %v4652, %v4648
  %v5057 = vpack.c.b16 %v4653, %v4649
  %v5058 = vpack.c.b16 %v4654, %v4650
  %v5059 = vpack.c.b16 %v4659, %v4655
  %v5060 = vpack.c.b16 %v4660, %v4656
  %v5061 = vpack.c.b16 %v4661, %v4657
  %v5062 = vpack.c.b16 %v4662, %v4658
  %v5063 = vpack.c.b16 %v4667, %v4663
  %v5064 = vpack.c.b16 %v4668, %v4664
  %v5065 = vpack.c.b16 %v4669, %v4665
  %v5066 = vpack.c.b16 %v4670, %v4666
  %v5067 = vpack.c.b16 %v4675, %v4671
  %v5068 = vpack.c.b16 %v4676, %v4672
  %v5069 = vpack.c.b16 %v4677, %v4673
  %v5070 = vpack.c.b16 %v4678, %v4674
  %v5071 = vpack.c.b16 %v4683, %v4679
  %v5072 = vpack.c.b16 %v4684, %v4680
  %v5073 = vpack.c.b16 %v4685, %v4681
  %v5074 = vpack.c.b16 %v4686, %v4682
  %v5075 = vpack.c.b16 %v4691, %v4687
  %v5076 = vpack.c.b16 %v4692, %v4688
  %v5077 = vpack.c.b16 %v4693, %v4689
  %v5078 = vpack.c.b16 %v4694, %v4690
  %v5079 = vpack.c.b16 %v4699, %v4695
  %v5080 = vpack.c.b16 %v4700, %v4696
  %v5081 = vpack.c.b16 %v4701, %v4697
  %v5082 = vpack.c.b16 %v4702, %v4698
  %v5083 = vpack.c.b16 %v4707, %v4703
  %v5084 = vpack.c.b16 %v4708, %v4704
  %v5085 = vpack.c.b16 %v4709, %v4705
  %v5086 = vpack.c.b16 %v4710, %v4706
  %v5087 = vpack.c.b16 %v4715, %v4711
  %v5088 = vpack.c.b16 %v4716, %v4712
  %v5089 = vpack.c.b16 %v4717, %v4713
  %v5090 = vpack.c.b16 %v4718, %v4714
  %v5091 = vpack.c.b16 %v4723, %v4719
  %v5092 = vpack.c.b16 %v4724, %v4720
  %v5093 = vpack.c.b16 %v4725, %v4721
  %v5094 = vpack.c.b16 %v4726, %v4722
  %v5095 = vpack.c.b16 %v4731, %v4727
  %v5096 = vpack.c.b16 %v4732, %v4728
  %v5097 = vpack.c.b16 %v4733, %v4729
  %v5098 = vpack.c.b16 %v4734, %v4730
  %v5099 = vpack.c.b16 %v4739, %v4735
  %v5100 = vpack.c.b16 %v4740, %v4736
  %v5101 = vpack.c.b16 %v4741, %v4737
  %v5102 = vpack.c.b16 %v4742, %v4738
  %v5103 = vpack.c.b16 %v4747, %v4743
  %v5104 = vpack.c.b16 %v4748, %v4744
  %v5105 = vpack.c.b16 %v4749, %v4745
  %v5106 = vpack.c.b16 %v4750, %v4746
  %v5107 = vpack.c.b16 %v4755, %v4751
  %v5108 = vpack.c.b16 %v4756, %v4752
  %v5109 = vpack.c.b16 %v4757, %v4753
  %v5110 = vpack.c.b16 %v4758, %v4754
  %v5111 = vpack.c.b16 %v4763, %v4759
  %v5112 = vpack.c.b16 %v4764, %v4760
  %v5113 = vpack.c.b16 %v4765, %v4761
  %v5114 = vpack.c.b16 %v4766, %v4762
  %v5115 = vpack.c.b16 %v4771, %v4767
  %v5116 = vpack.c.b16 %v4772, %v4768
  %v5117 = vpack.c.b16 %v4773, %v4769
  %v5118 = vpack.c.b16 %v4774, %v4770
  %v5119 = vpack.c.b16 %v4779, %v4775
  %v5120 = vpack.c.b16 %v4780, %v4776
  %v5121 = vpack.c.b16 %v4781, %v4777
  %v5122 = vpack.c.b16 %v4782, %v4778
  %v5123 = vpack.c.b16 %v4787, %v4783
  %v5124 = vpack.c.b16 %v4788, %v4784
  %v5125 = vpack.c.b16 %v4789, %v4785
  %v5126 = vpack.c.b16 %v4790, %v4786
  %v5127 = vpack.c.b16 %v4795, %v4791
  %v5128 = vpack.c.b16 %v4796, %v4792
  %v5129 = vpack.c.b16 %v4797, %v4793
  %v5130 = vpack.c.b16 %v4798, %v4794
  %v5131 = vpack.c.b16 %v4803, %v4799
  %v5132 = vpack.c.b16 %v4804, %v4800
  %v5133 = vpack.c.b16 %v4805, %v4801
  %v5134 = vpack.c.b16 %v4806, %v4802
  %v5135 = vpack.c.b16 %v4811, %v4807
  %v5136 = vpack.c.b16 %v4812, %v4808
  %v5137 = vpack.c.b16 %v4813, %v4809
  %v5138 = vpack.c.b16 %v4814, %v4810
  %v5139 = vpack.c.b16 %v4819, %v4815
  %v5140 = vpack.c.b16 %v4820, %v4816
  %v5141 = vpack.c.b16 %v4821, %v4817
  %v5142 = vpack.c.b16 %v4822, %v4818
  %v5143 = vpack.c.b16 %v4827, %v4823
  %v5144 = vpack.c.b16 %v4828, %v4824
  %v5145 = vpack.c.b16 %v4829, %v4825
  %v5146 = vpack.c.b16 %v4830, %v4826
  %v5147 = vpack.c.b16 %v4835, %v4831
  %v5148 = vpack.c.b16 %v4836, %v4832
  %v5149 = vpack.c.b16 %v4837, %v4833
  %v5150 = vpack.c.b16 %v4838, %v4834
  %v5151 = vpack.c.b16 %v4843, %v4839
  %v5152 = vpack.c.b16 %v4844, %v4840
  %v5153 = vpack.c.b16 %v4845, %v4841
  %v5154 = vpack.c.b16 %v4846, %v4842
  %v5155 = vpack.c.b16 %v4851, %v4847
  %v5156 = vpack.c.b16 %v4852, %v4848
  %v5157 = vpack.c.b16 %v4853, %v4849
  %v5158 = vpack.c.b16 %v4854, %v4850
  %v5159 = vpack.c.b16 %v4859, %v4855
  %v5160 = vpack.c.b16 %v4860, %v4856
  %v5161 = vpack.c.b16 %v4861, %v4857
  %v5162 = vpack.c.b16 %v4862, %v4858
  %v5163 = vpack.c.b16 %v4867, %v4863
  %v5164 = vpack.c.b16 %v4868, %v4864
  %v5165 = vpack.c.b16 %v4869, %v4865
  %v5166 = vpack.c.b16 %v4870, %v4866
  %v5167 = vpack.c.b16 %v4875, %v4871
  %v5168 = vpack.c.b16 %v4876, %v4872
  %v5169 = vpack.c.b16 %v4877, %v4873
  %v5170 = vpack.c.b16 %v4878, %v4874
  %v5171 = vpack.c.b16 %v4883, %v4879
  %v5172 = vpack.c.b16 %v4884, %v4880
  %v5173 = vpack.c.b16 %v4885, %v4881
  %v5174 = vpack.c.b16 %v4886, %v4882
  %v5175 = vpack.c.b16 %v4891, %v4887
  %v5176 = vpack.c.b16 %v4892, %v4888
  %v5177 = vpack.c.b16 %v4893, %v4889
  %v5178 = vpack.c.b16 %v4894, %v4890
  %v5179 = vpack.c.b16 %v4899, %v4895
  %v5180 = vpack.c.b16 %v4900, %v4896
  %v5181 = vpack.c.b16 %v4901, %v4897
  %v5182 = vpack.c.b16 %v4902, %v4898
  %v5183 = vpack.c.b16 %v4907, %v4903
  %v5184 = vpack.c.b16 %v4908, %v4904
  %v5185 = vpack.c.b16 %v4909, %v4905
  %v5186 = vpack.c.b16 %v4910, %v4906
  %v5187 = vpack.c.b16 %v4915, %v4911
  %v5188 = vpack.c.b16 %v4916, %v4912
  %v5189 = vpack.c.b16 %v4917, %v4913
  %v5190 = vpack.c.b16 %v4918, %v4914
  %v5191 = vpack.c.b16 %v4923, %v4919
  %v5192 = vpack.c.b16 %v4924, %v4920
  %v5193 = vpack.c.b16 %v4925, %v4921
  %v5194 = vpack.c.b16 %v4926, %v4922
  %v5195 = vpack.c.b16 %v4931, %v4927
  %v5196 = vpack.c.b16 %v4932, %v4928
  %v5197 = vpack.c.b16 %v4933, %v4929
  %v5198 = vpack.c.b16 %v4934, %v4930
  %v5199 = vpack.c.b16 %v4939, %v4935
  %v5200 = vpack.c.b16 %v4940, %v4936
  %v5201 = vpack.c.b16 %v4941, %v4937
  %v5202 = vpack.c.b16 %v4942, %v4938
  %v5203 = vpack.c.b16 %v4947, %v4943
  %v5204 = vpack.c.b16 %v4948, %v4944
  %v5205 = vpack.c.b16 %v4949, %v4945
  %v5206 = vpack.c.b16 %v4950, %v4946
  %5463 = vmatprep.subr.bf16.mxu0 %v4952
  %5464 = vmatpush1.bf16.msra.mxu0 %v4951
  %5465 = vmatprep.subr.bf16.mxu0 %v4956
  %5466 = vmatpush1.bf16.msra.mxu0 %v4955
  %5467 = vmatprep.subr.bf16.mxu0 %v4960
  %5468 = vmatpush1.bf16.msra.mxu0 %v4959
  %5469 = vmatprep.subr.bf16.mxu0 %v4964
  %5470 = vmatpush1.bf16.msra.mxu0 %v4963
  %5471 = vmatprep.subr.bf16.mxu0 %v4968
  %5472 = vmatpush1.bf16.msra.mxu0 %v4967
  %5473 = vmatprep.subr.bf16.mxu0 %v4972
  %5474 = vmatpush1.bf16.msra.mxu0 %v4971
  %5475 = vmatprep.subr.bf16.mxu0 %v4976
  %5476 = vmatpush1.bf16.msra.mxu0 %v4975
  %5477 = vmatprep.subr.bf16.mxu0 %v4980
  %5478 = vmatpush1.bf16.msra.mxu0 %v4979
  %5479 = vmatprep.subr.bf16.mxu0 %v4984
  %5480 = vmatpush1.bf16.msra.mxu0 %v4983
  %5481 = vmatprep.subr.bf16.mxu0 %v4988
  %5482 = vmatpush1.bf16.msra.mxu0 %v4987
  %5483 = vmatprep.subr.bf16.mxu0 %v4992
  %5484 = vmatpush1.bf16.msra.mxu0 %v4991
  %5485 = vmatprep.subr.bf16.mxu0 %v4996
  %5486 = vmatpush1.bf16.msra.mxu0 %v4995
  %5487 = vmatprep.subr.bf16.mxu0 %v5000
  %5488 = vmatpush1.bf16.msra.mxu0 %v4999
  %5489 = vmatprep.subr.bf16.mxu0 %v5004
  %5490 = vmatpush1.bf16.msra.mxu0 %v5003
  %5491 = vmatprep.subr.bf16.mxu0 %v5008
  %5492 = vmatpush1.bf16.msra.mxu0 %v5007
  %5493 = vmatprep.subr.bf16.mxu0 %v5012
  %5494 = vmatpush1.bf16.msra.mxu0 %v5011
  %5495 = vmatprep.mubr.bf16.mxu0 %v3898
  %5496 = vmatmul.mubr.bf16.gmra.mrb[0].mxu0 %v3897
  %v5497 = vpop.f32.mrb[0].mxu0
  %v5498 = vadd.f32 %v4166, %v5497
  %v5499 = vpop.f32.mrb[0].mxu0
  %v5500 = vadd.f32 %v4170, %v5499
  %v5501 = vpop.f32.mrb[0].mxu0
  %v5502 = vpop.f32.mrb[0].mxu0
  %5503 = vdwg.mxu0
  %5504 = vmatprep.subr.bf16.mxu0 %v5016
  %5505 = vmatpush1.bf16.msra.mxu0 %v5015
  %5506 = vmatprep.subr.bf16.mxu0 %v5020
  %5507 = vmatpush1.bf16.msra.mxu0 %v5019
  %5508 = vmatprep.subr.bf16.mxu0 %v5024
  %5509 = vmatpush1.bf16.msra.mxu0 %v5023
  %5510 = vmatprep.subr.bf16.mxu0 %v5028
  %5511 = vmatpush1.bf16.msra.mxu0 %v5027
  %5512 = vmatprep.subr.bf16.mxu0 %v5032
  %5513 = vmatpush1.bf16.msra.mxu0 %v5031
  %5514 = vmatprep.subr.bf16.mxu0 %v5036
  %5515 = vmatpush1.bf16.msra.mxu0 %v5035
  %5516 = vmatprep.subr.bf16.mxu0 %v5040
  %5517 = vmatpush1.bf16.msra.mxu0 %v5039
  %5518 = vmatprep.subr.bf16.mxu0 %v5044
  %5519 = vmatpush1.bf16.msra.mxu0 %v5043
  %5520 = vmatprep.subr.bf16.mxu0 %v5048
  %5521 = vmatpush1.bf16.msra.mxu0 %v5047
  %5522 = vmatprep.subr.bf16.mxu0 %v5052
  %5523 = vmatpush1.bf16.msra.mxu0 %v5051
  %5524 = vmatprep.subr.bf16.mxu0 %v5056
  %5525 = vmatpush1.bf16.msra.mxu0 %v5055
  %5526 = vmatprep.subr.bf16.mxu0 %v5060
  %5527 = vmatpush1.bf16.msra.mxu0 %v5059
  %5528 = vmatprep.subr.bf16.mxu0 %v5064
  %5529 = vmatpush1.bf16.msra.mxu0 %v5063
  %5530 = vmatprep.subr.bf16.mxu0 %v5068
  %5531 = vmatpush1.bf16.msra.mxu0 %v5067
  %5532 = vmatprep.subr.bf16.mxu0 %v5072
  %5533 = vmatpush1.bf16.msra.mxu0 %v5071
  %5534 = vmatprep.subr.bf16.mxu0 %v5076
  %5535 = vmatpush1.bf16.msra.mxu0 %v5075
  %5536 = vmatprep.mubr.bf16.mxu0 %v3900
  %5537 = vmatmul.mubr.bf16.gmra.mrb[0].mxu0 %v3899
  %v5538 = vpop.f32.mrb[0].mxu0
  %v5539 = vadd.f32 %v5498, %v5538
  %v5540 = vpop.f32.mrb[0].mxu0
  %v5541 = vadd.f32 %v5500, %v5540
  %v5542 = vpop.f32.mrb[0].mxu0
  %v5543 = vpop.f32.mrb[0].mxu0
  %5544 = vdwg.mxu0
  %5545 = vmatprep.subr.bf16.mxu0 %v5080
  %5546 = vmatpush1.bf16.msra.mxu0 %v5079
  %5547 = vmatprep.subr.bf16.mxu0 %v5084
  %5548 = vmatpush1.bf16.msra.mxu0 %v5083
  %5549 = vmatprep.subr.bf16.mxu0 %v5088
  %5550 = vmatpush1.bf16.msra.mxu0 %v5087
  %5551 = vmatprep.subr.bf16.mxu0 %v5092
  %5552 = vmatpush1.bf16.msra.mxu0 %v5091
  %5553 = vmatprep.subr.bf16.mxu0 %v5096
  %5554 = vmatpush1.bf16.msra.mxu0 %v5095
  %5555 = vmatprep.subr.bf16.mxu0 %v5100
  %5556 = vmatpush1.bf16.msra.mxu0 %v5099
  %5557 = vmatprep.subr.bf16.mxu0 %v5104
  %5558 = vmatpush1.bf16.msra.mxu0 %v5103
  %5559 = vmatprep.subr.bf16.mxu0 %v5108
  %5560 = vmatpush1.bf16.msra.mxu0 %v5107
  %5561 = vmatprep.subr.bf16.mxu0 %v5112
  %5562 = vmatpush1.bf16.msra.mxu0 %v5111
  %5563 = vmatprep.subr.bf16.mxu0 %v5116
  %5564 = vmatpush1.bf16.msra.mxu0 %v5115
  %5565 = vmatprep.subr.bf16.mxu0 %v5120
  %5566 = vmatpush1.bf16.msra.mxu0 %v5119
  %5567 = vmatprep.subr.bf16.mxu0 %v5124
  %5568 = vmatpush1.bf16.msra.mxu0 %v5123
  %5569 = vmatprep.subr.bf16.mxu0 %v5128
  %5570 = vmatpush1.bf16.msra.mxu0 %v5127
  %5571 = vmatprep.subr.bf16.mxu0 %v5132
  %5572 = vmatpush1.bf16.msra.mxu0 %v5131
  %5573 = vmatprep.subr.bf16.mxu0 %v5136
  %5574 = vmatpush1.bf16.msra.mxu0 %v5135
  %5575 = vmatprep.subr.bf16.mxu0 %v5140
  %5576 = vmatpush1.bf16.msra.mxu0 %v5139
  %5577 = vmatprep.mubr.bf16.mxu0 %v3902
  %5578 = vmatmul.mubr.bf16.gmra.mrb[0].mxu0 %v3901
  %v5579 = vpop.f32.mrb[0].mxu0
  %v5580 = vadd.f32 %v5539, %v5579
  %v5581 = vpop.f32.mrb[0].mxu0
  %v5582 = vadd.f32 %v5541, %v5581
  %v5583 = vpop.f32.mrb[0].mxu0
  %v5584 = vpop.f32.mrb[0].mxu0
  %5585 = vdwg.mxu0
  %5586 = vmatprep.subr.bf16.mxu0 %v5144
  %5587 = vmatpush1.bf16.msra.mxu0 %v5143
  %5588 = vmatprep.subr.bf16.mxu0 %v5148
  %5589 = vmatpush1.bf16.msra.mxu0 %v5147
  %5590 = vmatprep.subr.bf16.mxu0 %v5152
  %5591 = vmatpush1.bf16.msra.mxu0 %v5151
  %5592 = vmatprep.subr.bf16.mxu0 %v5156
  %5593 = vmatpush1.bf16.msra.mxu0 %v5155
  %5594 = vmatprep.subr.bf16.mxu0 %v5160
  %5595 = vmatpush1.bf16.msra.mxu0 %v5159
  %5596 = vmatprep.subr.bf16.mxu0 %v5164
  %5597 = vmatpush1.bf16.msra.mxu0 %v5163
  %5598 = vmatprep.subr.bf16.mxu0 %v5168
  %5599 = vmatpush1.bf16.msra.mxu0 %v5167
  %5600 = vmatprep.subr.bf16.mxu0 %v5172
  %5601 = vmatpush1.bf16.msra.mxu0 %v5171
  %5602 = vmatprep.subr.bf16.mxu0 %v5176
  %5603 = vmatpush1.bf16.msra.mxu0 %v5175
  %5604 = vmatprep.subr.bf16.mxu0 %v5180
  %5605 = vmatpush1.bf16.msra.mxu0 %v5179
  %5606 = vmatprep.subr.bf16.mxu0 %v5184
  %5607 = vmatpush1.bf16.msra.mxu0 %v5183
  %5608 = vmatprep.subr.bf16.mxu0 %v5188
  %5609 = vmatpush1.bf16.msra.mxu0 %v5187
  %5610 = vmatprep.subr.bf16.mxu0 %v5192
  %5611 = vmatpush1.bf16.msra.mxu0 %v5191
  %5612 = vmatprep.subr.bf16.mxu0 %v5196
  %5613 = vmatpush1.bf16.msra.mxu0 %v5195
  %5614 = vmatprep.subr.bf16.mxu0 %v5200
  %5615 = vmatpush1.bf16.msra.mxu0 %v5199
  %5616 = vmatprep.subr.bf16.mxu0 %v5204
  %5617 = vmatpush1.bf16.msra.mxu0 %v5203
  %5618 = vmatprep.mubr.bf16.mxu0 %v3904
  %5619 = vmatmul.mubr.bf16.gmra.mrb[0].mxu0 %v3903
  %v5620 = vpop.f32.mrb[0].mxu0
  %v5621 = vadd.f32 %v5580, %v5620
  %v5622 = vpop.f32.mrb[0].mxu0
  %v5623 = vadd.f32 %v5582, %v5622
  %v5624 = vpop.f32.mrb[0].mxu0
  %v5625 = vpop.f32.mrb[0].mxu0
  %5626 = vdwg.mxu0
  %5627 = vmatprep.subr.bf16.mxu0 %v4954
  %5628 = vmatpush1.bf16.msra.mxu0 %v4953
  %5629 = vmatprep.subr.bf16.mxu0 %v4958
  %5630 = vmatpush1.bf16.msra.mxu0 %v4957
  %5631 = vmatprep.subr.bf16.mxu0 %v4962
  %5632 = vmatpush1.bf16.msra.mxu0 %v4961
  %5633 = vmatprep.subr.bf16.mxu0 %v4966
  %5634 = vmatpush1.bf16.msra.mxu0 %v4965
  %5635 = vmatprep.subr.bf16.mxu0 %v4970
  %5636 = vmatpush1.bf16.msra.mxu0 %v4969
  %5637 = vmatprep.subr.bf16.mxu0 %v4974
  %5638 = vmatpush1.bf16.msra.mxu0 %v4973
  %5639 = vmatprep.subr.bf16.mxu0 %v4978
  %5640 = vmatpush1.bf16.msra.mxu0 %v4977
  %5641 = vmatprep.subr.bf16.mxu0 %v4982
  %5642 = vmatpush1.bf16.msra.mxu0 %v4981
  %5643 = vmatprep.subr.bf16.mxu0 %v4986
  %5644 = vmatpush1.bf16.msra.mxu0 %v4985
  %5645 = vmatprep.subr.bf16.mxu0 %v4990
  %5646 = vmatpush1.bf16.msra.mxu0 %v4989
  %5647 = vmatprep.subr.bf16.mxu0 %v4994
  %5648 = vmatpush1.bf16.msra.mxu0 %v4993
  %5649 = vmatprep.subr.bf16.mxu0 %v4998
  %5650 = vmatpush1.bf16.msra.mxu0 %v4997
  %5651 = vmatprep.subr.bf16.mxu0 %v5002
  %5652 = vmatpush1.bf16.msra.mxu0 %v5001
  %5653 = vmatprep.subr.bf16.mxu0 %v5006
  %5654 = vmatpush1.bf16.msra.mxu0 %v5005
  %5655 = vmatprep.subr.bf16.mxu0 %v5010
  %5656 = vmatpush1.bf16.msra.mxu0 %v5009
  %5657 = vmatprep.subr.bf16.mxu0 %v5014
  %5658 = vmatpush1.bf16.msra.mxu0 %v5013
  %5659 = vmatprep.mubr.bf16.mxu0 %v3898
  %5660 = vmatmul.mubr.bf16.gmra.mrb[0].mxu0 %v3897
  %v5661 = vpop.f32.mrb[0].mxu0
  %v5662 = vadd.f32 %v4174, %v5661
  %v5663 = vpop.f32.mrb[0].mxu0
  %v5664 = vadd.f32 %v4178, %v5663
  %v5665 = vpop.f32.mrb[0].mxu0
  %v5666 = vpop.f32.mrb[0].mxu0
  %5667 = vdwg.mxu0
  %5668 = vmatprep.subr.bf16.mxu0 %v5018
  %5669 = vmatpush1.bf16.msra.mxu0 %v5017
  %5670 = vmatprep.subr.bf16.mxu0 %v5022
  %5671 = vmatpush1.bf16.msra.mxu0 %v5021
  %5672 = vmatprep.subr.bf16.mxu0 %v5026
  %5673 = vmatpush1.bf16.msra.mxu0 %v5025
  %5674 = vmatprep.subr.bf16.mxu0 %v5030
  %5675 = vmatpush1.bf16.msra.mxu0 %v5029
  %5676 = vmatprep.subr.bf16.mxu0 %v5034
  %5677 = vmatpush1.bf16.msra.mxu0 %v5033
  %5678 = vmatprep.subr.bf16.mxu0 %v5038
  %5679 = vmatpush1.bf16.msra.mxu0 %v5037
  %5680 = vmatprep.subr.bf16.mxu0 %v5042
  %5681 = vmatpush1.bf16.msra.mxu0 %v5041
  %5682 = vmatprep.subr.bf16.mxu0 %v5046
  %5683 = vmatpush1.bf16.msra.mxu0 %v5045
  %5684 = vmatprep.subr.bf16.mxu0 %v5050
  %5685 = vmatpush1.bf16.msra.mxu0 %v5049
  %5686 = vmatprep.subr.bf16.mxu0 %v5054
  %5687 = vmatpush1.bf16.msra.mxu0 %v5053
  %5688 = vmatprep.subr.bf16.mxu0 %v5058
  %5689 = vmatpush1.bf16.msra.mxu0 %v5057
  %5690 = vmatprep.subr.bf16.mxu0 %v5062
  %5691 = vmatpush1.bf16.msra.mxu0 %v5061
  %5692 = vmatprep.subr.bf16.mxu0 %v5066
  %5693 = vmatpush1.bf16.msra.mxu0 %v5065
  %5694 = vmatprep.subr.bf16.mxu0 %v5070
  %5695 = vmatpush1.bf16.msra.mxu0 %v5069
  %5696 = vmatprep.subr.bf16.mxu0 %v5074
  %5697 = vmatpush1.bf16.msra.mxu0 %v5073
  %5698 = vmatprep.subr.bf16.mxu0 %v5078
  %5699 = vmatpush1.bf16.msra.mxu0 %v5077
  %5700 = vmatprep.mubr.bf16.mxu0 %v3900
  %5701 = vmatmul.mubr.bf16.gmra.mrb[0].mxu0 %v3899
  %v5702 = vpop.f32.mrb[0].mxu0
  %v5703 = vadd.f32 %v5662, %v5702
  %v5704 = vpop.f32.mrb[0].mxu0
  %v5705 = vadd.f32 %v5664, %v5704
  %v5706 = vpop.f32.mrb[0].mxu0
  %v5707 = vpop.f32.mrb[0].mxu0
  %5708 = vdwg.mxu0
  %5709 = vmatprep.subr.bf16.mxu0 %v5082
  %5710 = vmatpush1.bf16.msra.mxu0 %v5081
  %5711 = vmatprep.subr.bf16.mxu0 %v5086
  %5712 = vmatpush1.bf16.msra.mxu0 %v5085
  %5713 = vmatprep.subr.bf16.mxu0 %v5090
  %5714 = vmatpush1.bf16.msra.mxu0 %v5089
  %5715 = vmatprep.subr.bf16.mxu0 %v5094
  %5716 = vmatpush1.bf16.msra.mxu0 %v5093
  %5717 = vmatprep.subr.bf16.mxu0 %v5098
  %5718 = vmatpush1.bf16.msra.mxu0 %v5097
  %5719 = vmatprep.subr.bf16.mxu0 %v5102
  %5720 = vmatpush1.bf16.msra.mxu0 %v5101
  %5721 = vmatprep.subr.bf16.mxu0 %v5106
  %5722 = vmatpush1.bf16.msra.mxu0 %v5105
  %5723 = vmatprep.subr.bf16.mxu0 %v5110
  %5724 = vmatpush1.bf16.msra.mxu0 %v5109
  %5725 = vmatprep.subr.bf16.mxu0 %v5114
  %5726 = vmatpush1.bf16.msra.mxu0 %v5113
  %5727 = vmatprep.subr.bf16.mxu0 %v5118
  %5728 = vmatpush1.bf16.msra.mxu0 %v5117
  %5729 = vmatprep.subr.bf16.mxu0 %v5122
  %5730 = vmatpush1.bf16.msra.mxu0 %v5121
  %5731 = vmatprep.subr.bf16.mxu0 %v5126
  %5732 = vmatpush1.bf16.msra.mxu0 %v5125
  %5733 = vmatprep.subr.bf16.mxu0 %v5130
  %5734 = vmatpush1.bf16.msra.mxu0 %v5129
  %5735 = vmatprep.subr.bf16.mxu0 %v5134
  %5736 = vmatpush1.bf16.msra.mxu0 %v5133
  %5737 = vmatprep.subr.bf16.mxu0 %v5138
  %5738 = vmatpush1.bf16.msra.mxu0 %v5137
  %5739 = vmatprep.subr.bf16.mxu0 %v5142
  %5740 = vmatpush1.bf16.msra.mxu0 %v5141
  %5741 = vmatprep.mubr.bf16.mxu0 %v3902
  %5742 = vmatmul.mubr.bf16.gmra.mrb[0].mxu0 %v3901
  %v5743 = vpop.f32.mrb[0].mxu0
  %v5744 = vadd.f32 %v5703, %v5743
  %v5745 = vpop.f32.mrb[0].mxu0
  %v5746 = vadd.f32 %v5705, %v5745
  %v5747 = vpop.f32.mrb[0].mxu0
  %v5748 = vpop.f32.mrb[0].mxu0
  %5749 = vdwg.mxu0
  %5750 = vmatprep.subr.bf16.mxu0 %v5146
  %5751 = vmatpush1.bf16.msra.mxu0 %v5145
  %5752 = vmatprep.subr.bf16.mxu0 %v5150
  %5753 = vmatpush1.bf16.msra.mxu0 %v5149
  %5754 = vmatprep.subr.bf16.mxu0 %v5154
  %5755 = vmatpush1.bf16.msra.mxu0 %v5153
  %5756 = vmatprep.subr.bf16.mxu0 %v5158
  %5757 = vmatpush1.bf16.msra.mxu0 %v5157
  %5758 = vmatprep.subr.bf16.mxu0 %v5162
  %5759 = vmatpush1.bf16.msra.mxu0 %v5161
  %5760 = vmatprep.subr.bf16.mxu0 %v5166
  %5761 = vmatpush1.bf16.msra.mxu0 %v5165
  %5762 = vmatprep.subr.bf16.mxu0 %v5170
  %5763 = vmatpush1.bf16.msra.mxu0 %v5169
  %5764 = vmatprep.subr.bf16.mxu0 %v5174
  %5765 = vmatpush1.bf16.msra.mxu0 %v5173
  %5766 = vmatprep.subr.bf16.mxu0 %v5178
  %5767 = vmatpush1.bf16.msra.mxu0 %v5177
  %5768 = vmatprep.subr.bf16.mxu0 %v5182
  %5769 = vmatpush1.bf16.msra.mxu0 %v5181
  %5770 = vmatprep.subr.bf16.mxu0 %v5186
  %5771 = vmatpush1.bf16.msra.mxu0 %v5185
  %5772 = vmatprep.subr.bf16.mxu0 %v5190
  %5773 = vmatpush1.bf16.msra.mxu0 %v5189
  %5774 = vmatprep.subr.bf16.mxu0 %v5194
  %5775 = vmatpush1.bf16.msra.mxu0 %v5193
  %5776 = vmatprep.subr.bf16.mxu0 %v5198
  %5777 = vmatpush1.bf16.msra.mxu0 %v5197
  %5778 = vmatprep.subr.bf16.mxu0 %v5202
  %5779 = vmatpush1.bf16.msra.mxu0 %v5201
  %5780 = vmatprep.subr.bf16.mxu0 %v5206
  %5781 = vmatpush1.bf16.msra.mxu0 %v5205
  %5782 = vmatprep.mubr.bf16.mxu0 %v3904
  %5783 = vmatmul.mubr.bf16.gmra.mrb[0].mxu0 %v3903
  %v5784 = vpop.f32.mrb[0].mxu0
  %v5785 = vadd.f32 %v5744, %v5784
  %v5786 = vpop.f32.mrb[0].mxu0
  %v5787 = vadd.f32 %v5746, %v5786
  %v5788 = vpop.f32.mrb[0].mxu0
  %v5789 = vpop.f32.mrb[0].mxu0
  %5790 = vdwg.mxu0
  %v5791 = vmax.f32 %v5621, 0.0
  %v5792 = vmax.f32 %v5623, 0.0
  %v5793 = vmax.f32 %v5785, 0.0
  %v5794 = vmax.f32 %v5787, 0.0
  %v5795 = vpack.c.bf16 %v5791, %v5791
  %v5796 = vpack.c.bf16 %v5792, %v5792
  %v5797 = vpack.c.bf16 %v5793, %v5793
  %v5798 = vpack.c.bf16 %v5794, %v5794
  %v5799 = vld [vmem:[%s5] sm:$0xff]
  %v5800 = vld [vmem:[%s5 + $0x8] sm:$0xff]
  %v5801 = vld [vmem:[%s5 + $0x10] sm:$0xff]
  %v5802 = vld [vmem:[%s5 + $0x18] sm:$0xff]
  %v5803 = vld [vmem:[%s5 + $0x20] sm:$0xff]
  %v5804 = vld [vmem:[%s5 + $0x28] sm:$0xff]
  %v5805 = vld [vmem:[%s5 + $0x30] sm:$0xff]
  %v5806 = vld [vmem:[%s5 + $0x38] sm:$0xff]
  %v5807 = vld [vmem:[%s5 + $0x40] sm:$0xff]
  %v5808 = vld [vmem:[%s5 + $0x48] sm:$0xff]
  %v5809 = vld [vmem:[%s5 + $0x50] sm:$0xff]
  %v5810 = vld [vmem:[%s5 + $0x58] sm:$0xff]
  %v5811 = vld [vmem:[%s5 + $0x60] sm:$0xff]
  %v5812 = vld [vmem:[%s5 + $0x68] sm:$0xff]
  %v5813 = vld [vmem:[%s5 + $0x70] sm:$0xff]
  %v5814 = vld [vmem:[%s5 + $0x78] sm:$0xff]
  %v5815 = vld [vmem:[%s5 + $0x80] sm:$0xff]
  %v5816 = vld [vmem:[%s5 + $0x88] sm:$0xff]
  %v5817 = vld [vmem:[%s5 + $0x90] sm:$0xff]
  %v5818 = vld [vmem:[%s5 + $0x98] sm:$0xff]
  %v5819 = vld [vmem:[%s5 + $0xa0] sm:$0xff]
  %v5820 = vld [vmem:[%s5 + $0xa8] sm:$0xff]
  %v5821 = vld [vmem:[%s5 + $0xb0] sm:$0xff]
  %v5822 = vld [vmem:[%s5 + $0xb8] sm:$0xff]
  %v5823 = vld [vmem:[%s5 + $0xc0] sm:$0xff]
  %v5824 = vld [vmem:[%s5 + $0xc8] sm:$0xff]
  %v5825 = vld [vmem:[%s5 + $0xd0] sm:$0xff]
  %v5826 = vld [vmem:[%s5 + $0xd8] sm:$0xff]
  %v5827 = vld [vmem:[%s5 + $0xe0] sm:$0xff]
  %v5828 = vld [vmem:[%s5 + $0xe8] sm:$0xff]
  %v5829 = vld [vmem:[%s5 + $0xf0] sm:$0xff]
  %v5830 = vld [vmem:[%s5 + $0xf8] sm:$0xff]
  %v5831 = vld [vmem:[%s5 + $0x100] sm:$0xff]
  %v5832 = vld [vmem:[%s5 + $0x108] sm:$0xff]
  %v5833 = vld [vmem:[%s5 + $0x110] sm:$0xff]
  %v5834 = vld [vmem:[%s5 + $0x118] sm:$0xff]
  %v5835 = vld [vmem:[%s5 + $0x120] sm:$0xff]
  %v5836 = vld [vmem:[%s5 + $0x128] sm:$0xff]
  %v5837 = vld [vmem:[%s5 + $0x130] sm:$0xff]
  %v5838 = vld [vmem:[%s5 + $0x138] sm:$0xff]
  %v5839 = vld [vmem:[%s5 + $0x140] sm:$0xff]
  %v5840 = vld [vmem:[%s5 + $0x148] sm:$0xff]
  %v5841 = vld [vmem:[%s5 + $0x150] sm:$0xff]
  %v5842 = vld [vmem:[%s5 + $0x158] sm:$0xff]
  %v5843 = vld [vmem:[%s5 + $0x160] sm:$0xff]
  %v5844 = vld [vmem:[%s5 + $0x168] sm:$0xff]
  %v5845 = vld [vmem:[%s5 + $0x170] sm:$0xff]
  %v5846 = vld [vmem:[%s5 + $0x178] sm:$0xff]
  %v5847 = vld [vmem:[%s5 + $0x180] sm:$0xff]
  %v5848 = vld [vmem:[%s5 + $0x188] sm:$0xff]
  %v5849 = vld [vmem:[%s5 + $0x190] sm:$0xff]
  %v5850 = vld [vmem:[%s5 + $0x198] sm:$0xff]
  %v5851 = vld [vmem:[%s5 + $0x1a0] sm:$0xff]
  %v5852 = vld [vmem:[%s5 + $0x1a8] sm:$0xff]
  %v5853 = vld [vmem:[%s5 + $0x1b0] sm:$0xff]
  %v5854 = vld [vmem:[%s5 + $0x1b8] sm:$0xff]
  %v5855 = vld [vmem:[%s5 + $0x1c0] sm:$0xff]
  %v5856 = vld [vmem:[%s5 + $0x1c8] sm:$0xff]
  %v5857 = vld [vmem:[%s5 + $0x1d0] sm:$0xff]
  %v5858 = vld [vmem:[%s5 + $0x1d8] sm:$0xff]
  %v5859 = vld [vmem:[%s5 + $0x1e0] sm:$0xff]
  %v5860 = vld [vmem:[%s5 + $0x1e8] sm:$0xff]
  %v5861 = vld [vmem:[%s5 + $0x1f0] sm:$0xff]
  %v5862 = vld [vmem:[%s5 + $0x1f8] sm:$0xff]
  %v5863 = vld [vmem:[%s6] sm:$0x3]
  %v5865 = vlaneseq
  %v5866 = vshrl.u32 %v5865, 7
  %v5867 = vsub.s32 0, %v5866
  %v5868 = vrot.slane %v5863, %v5867
  %v5869 = vlaneseq
  %v5870 = vshrl.u32 %v5869, 7
  %v5871 = vsub.s32 1, %v5870
  %v5872 = vrot.slane %v5863, %v5871
  %v5939 = vunpack.c.l.b16 %v5799
  %v5940 = vunpack.c.h.b16 %v5799
  %v5941 = vunpack.c.l.b16 %v5800
  %v5942 = vunpack.c.h.b16 %v5800
  %v5943 = vunpack.c.l.b16 %v5801
  %v5944 = vunpack.c.h.b16 %v5801
  %v5945 = vunpack.c.l.b16 %v5802
  %v5946 = vunpack.c.h.b16 %v5802
  %v5947 = vunpack.c.l.b16 %v5803
  %v5948 = vunpack.c.h.b16 %v5803
  %v5949 = vunpack.c.l.b16 %v5804
  %v5950 = vunpack.c.h.b16 %v5804
  %v5951 = vunpack.c.l.b16 %v5805
  %v5952 = vunpack.c.h.b16 %v5805
  %v5953 = vunpack.c.l.b16 %v5806
  %v5954 = vunpack.c.h.b16 %v5806
  %v5955 = vunpack.c.l.b16 %v5807
  %v5956 = vunpack.c.h.b16 %v5807
  %v5957 = vunpack.c.l.b16 %v5808
  %v5958 = vunpack.c.h.b16 %v5808
  %v5959 = vunpack.c.l.b16 %v5809
  %v5960 = vunpack.c.h.b16 %v5809
  %v5961 = vunpack.c.l.b16 %v5810
  %v5962 = vunpack.c.h.b16 %v5810
  %v5963 = vunpack.c.l.b16 %v5811
  %v5964 = vunpack.c.h.b16 %v5811
  %v5965 = vunpack.c.l.b16 %v5812
  %v5966 = vunpack.c.h.b16 %v5812
  %v5967 = vunpack.c.l.b16 %v5813
  %v5968 = vunpack.c.h.b16 %v5813
  %v5969 = vunpack.c.l.b16 %v5814
  %v5970 = vunpack.c.h.b16 %v5814
  %v5971 = vunpack.c.l.b16 %v5815
  %v5972 = vunpack.c.h.b16 %v5815
  %v5973 = vunpack.c.l.b16 %v5816
  %v5974 = vunpack.c.h.b16 %v5816
  %v5975 = vunpack.c.l.b16 %v5817
  %v5976 = vunpack.c.h.b16 %v5817
  %v5977 = vunpack.c.l.b16 %v5818
  %v5978 = vunpack.c.h.b16 %v5818
  %v5979 = vunpack.c.l.b16 %v5819
  %v5980 = vunpack.c.h.b16 %v5819
  %v5981 = vunpack.c.l.b16 %v5820
  %v5982 = vunpack.c.h.b16 %v5820
  %v5983 = vunpack.c.l.b16 %v5821
  %v5984 = vunpack.c.h.b16 %v5821
  %v5985 = vunpack.c.l.b16 %v5822
  %v5986 = vunpack.c.h.b16 %v5822
  %v5987 = vunpack.c.l.b16 %v5823
  %v5988 = vunpack.c.h.b16 %v5823
  %v5989 = vunpack.c.l.b16 %v5824
  %v5990 = vunpack.c.h.b16 %v5824
  %v5991 = vunpack.c.l.b16 %v5825
  %v5992 = vunpack.c.h.b16 %v5825
  %v5993 = vunpack.c.l.b16 %v5826
  %v5994 = vunpack.c.h.b16 %v5826
  %v5995 = vunpack.c.l.b16 %v5827
  %v5996 = vunpack.c.h.b16 %v5827
  %v5997 = vunpack.c.l.b16 %v5828
  %v5998 = vunpack.c.h.b16 %v5828
  %v5999 = vunpack.c.l.b16 %v5829
  %v6000 = vunpack.c.h.b16 %v5829
  %v6001 = vunpack.c.l.b16 %v5830
  %v6002 = vunpack.c.h.b16 %v5830
  %v6003 = vunpack.c.l.b16 %v5831
  %v6004 = vunpack.c.h.b16 %v5831
  %v6005 = vunpack.c.l.b16 %v5832
  %v6006 = vunpack.c.h.b16 %v5832
  %v6007 = vunpack.c.l.b16 %v5833
  %v6008 = vunpack.c.h.b16 %v5833
  %v6009 = vunpack.c.l.b16 %v5834
  %v6010 = vunpack.c.h.b16 %v5834
  %v6011 = vunpack.c.l.b16 %v5835
  %v6012 = vunpack.c.h.b16 %v5835
  %v6013 = vunpack.c.l.b16 %v5836
  %v6014 = vunpack.c.h.b16 %v5836
  %v6015 = vunpack.c.l.b16 %v5837
  %v6016 = vunpack.c.h.b16 %v5837
  %v6017 = vunpack.c.l.b16 %v5838
  %v6018 = vunpack.c.h.b16 %v5838
  %v6019 = vunpack.c.l.b16 %v5839
  %v6020 = vunpack.c.h.b16 %v5839
  %v6021 = vunpack.c.l.b16 %v5840
  %v6022 = vunpack.c.h.b16 %v5840
  %v6023 = vunpack.c.l.b16 %v5841
  %v6024 = vunpack.c.h.b16 %v5841
  %v6025 = vunpack.c.l.b16 %v5842
  %v6026 = vunpack.c.h.b16 %v5842
  %v6027 = vunpack.c.l.b16 %v5843
  %v6028 = vunpack.c.h.b16 %v5843
  %v6029 = vunpack.c.l.b16 %v5844
  %v6030 = vunpack.c.h.b16 %v5844
  %v6031 = vunpack.c.l.b16 %v5845
  %v6032 = vunpack.c.h.b16 %v5845
  %v6033 = vunpack.c.l.b16 %v5846
  %v6034 = vunpack.c.h.b16 %v5846
  %v6035 = vunpack.c.l.b16 %v5847
  %v6036 = vunpack.c.h.b16 %v5847
  %v6037 = vunpack.c.l.b16 %v5848
  %v6038 = vunpack.c.h.b16 %v5848
  %v6039 = vunpack.c.l.b16 %v5849
  %v6040 = vunpack.c.h.b16 %v5849
  %v6041 = vunpack.c.l.b16 %v5850
  %v6042 = vunpack.c.h.b16 %v5850
  %v6043 = vunpack.c.l.b16 %v5851
  %v6044 = vunpack.c.h.b16 %v5851
  %v6045 = vunpack.c.l.b16 %v5852
  %v6046 = vunpack.c.h.b16 %v5852
  %v6047 = vunpack.c.l.b16 %v5853
  %v6048 = vunpack.c.h.b16 %v5853
  %v6049 = vunpack.c.l.b16 %v5854
  %v6050 = vunpack.c.h.b16 %v5854
  %v6051 = vunpack.c.l.b16 %v5855
  %v6052 = vunpack.c.h.b16 %v5855
  %v6053 = vunpack.c.l.b16 %v5856
  %v6054 = vunpack.c.h.b16 %v5856
  %v6055 = vunpack.c.l.b16 %v5857
  %v6056 = vunpack.c.h.b16 %v5857
  %v6057 = vunpack.c.l.b16 %v5858
  %v6058 = vunpack.c.h.b16 %v5858
  %v6059 = vunpack.c.l.b16 %v5859
  %v6060 = vunpack.c.h.b16 %v5859
  %v6061 = vunpack.c.l.b16 %v5860
  %v6062 = vunpack.c.h.b16 %v5860
  %v6063 = vunpack.c.l.b16 %v5861
  %v6064 = vunpack.c.h.b16 %v5861
  %v6065 = vunpack.c.l.b16 %v5862
  %v6066 = vunpack.c.h.b16 %v5862
  %v6067 = vpack.c.b16 %v5941, %v5939
  %v6068 = vpack.c.b16 %v5942, %v5940
  %v6069 = vpack.c.b16 %v5945, %v5943
  %v6070 = vpack.c.b16 %v5946, %v5944
  %v6071 = vpack.c.b16 %v5949, %v5947
  %v6072 = vpack.c.b16 %v5950, %v5948
  %v6073 = vpack.c.b16 %v5953, %v5951
  %v6074 = vpack.c.b16 %v5954, %v5952
  %v6075 = vpack.c.b16 %v5957, %v5955
  %v6076 = vpack.c.b16 %v5958, %v5956
  %v6077 = vpack.c.b16 %v5961, %v5959
  %v6078 = vpack.c.b16 %v5962, %v5960
  %v6079 = vpack.c.b16 %v5965, %v5963
  %v6080 = vpack.c.b16 %v5966, %v5964
  %v6081 = vpack.c.b16 %v5969, %v5967
  %v6082 = vpack.c.b16 %v5970, %v5968
  %v6083 = vpack.c.b16 %v5973, %v5971
  %v6084 = vpack.c.b16 %v5974, %v5972
  %v6085 = vpack.c.b16 %v5977, %v5975
  %v6086 = vpack.c.b16 %v5978, %v5976
  %v6087 = vpack.c.b16 %v5981, %v5979
  %v6088 = vpack.c.b16 %v5982, %v5980
  %v6089 = vpack.c.b16 %v5985, %v5983
  %v6090 = vpack.c.b16 %v5986, %v5984
  %v6091 = vpack.c.b16 %v5989, %v5987
  %v6092 = vpack.c.b16 %v5990, %v5988
  %v6093 = vpack.c.b16 %v5993, %v5991
  %v6094 = vpack.c.b16 %v5994, %v5992
  %v6095 = vpack.c.b16 %v5997, %v5995
  %v6096 = vpack.c.b16 %v5998, %v5996
  %v6097 = vpack.c.b16 %v6001, %v5999
  %v6098 = vpack.c.b16 %v6002, %v6000
  %v6099 = vpack.c.b16 %v6005, %v6003
  %v6100 = vpack.c.b16 %v6006, %v6004
  %v6101 = vpack.c.b16 %v6009, %v6007
  %v6102 = vpack.c.b16 %v6010, %v6008
  %v6103 = vpack.c.b16 %v6013, %v6011
  %v6104 = vpack.c.b16 %v6014, %v6012
  %v6105 = vpack.c.b16 %v6017, %v6015
  %v6106 = vpack.c.b16 %v6018, %v6016
  %v6107 = vpack.c.b16 %v6021, %v6019
  %v6108 = vpack.c.b16 %v6022, %v6020
  %v6109 = vpack.c.b16 %v6025, %v6023
  %v6110 = vpack.c.b16 %v6026, %v6024
  %v6111 = vpack.c.b16 %v6029, %v6027
  %v6112 = vpack.c.b16 %v6030, %v6028
  %v6113 = vpack.c.b16 %v6033, %v6031
  %v6114 = vpack.c.b16 %v6034, %v6032
  %v6115 = vpack.c.b16 %v6037, %v6035
  %v6116 = vpack.c.b16 %v6038, %v6036
  %v6117 = vpack.c.b16 %v6041, %v6039
  %v6118 = vpack.c.b16 %v6042, %v6040
  %v6119 = vpack.c.b16 %v6045, %v6043
  %v6120 = vpack.c.b16 %v6046, %v6044
  %v6121 = vpack.c.b16 %v6049, %v6047
  %v6122 = vpack.c.b16 %v6050, %v6048
  %v6123 = vpack.c.b16 %v6053, %v6051
  %v6124 = vpack.c.b16 %v6054, %v6052
  %v6125 = vpack.c.b16 %v6057, %v6055
  %v6126 = vpack.c.b16 %v6058, %v6056
  %v6127 = vpack.c.b16 %v6061, %v6059
  %v6128 = vpack.c.b16 %v6062, %v6060
  %v6129 = vpack.c.b16 %v6065, %v6063
  %v6130 = vpack.c.b16 %v6066, %v6064
  %6195 = vmatprep.subr.bf16.mxu0 %v6068
  %6196 = vmatpush1.bf16.msra.mxu0 %v6067
  %6197 = vmatprep.subr.bf16.mxu0 %v6070
  %6198 = vmatpush1.bf16.msra.mxu0 %v6069
  %6199 = vmatprep.subr.bf16.mxu0 %v6072
  %6200 = vmatpush1.bf16.msra.mxu0 %v6071
  %6201 = vmatprep.subr.bf16.mxu0 %v6074
  %6202 = vmatpush1.bf16.msra.mxu0 %v6073
  %6203 = vmatprep.subr.bf16.mxu0 %v6076
  %6204 = vmatpush1.bf16.msra.mxu0 %v6075
  %6205 = vmatprep.subr.bf16.mxu0 %v6078
  %6206 = vmatpush1.bf16.msra.mxu0 %v6077
  %6207 = vmatprep.subr.bf16.mxu0 %v6080
  %6208 = vmatpush1.bf16.msra.mxu0 %v6079
  %6209 = vmatprep.subr.bf16.mxu0 %v6082
  %6210 = vmatpush1.bf16.msra.mxu0 %v6081
  %6211 = vmatprep.subr.bf16.mxu0 %v6084
  %6212 = vmatpush1.bf16.msra.mxu0 %v6083
  %6213 = vmatprep.subr.bf16.mxu0 %v6086
  %6214 = vmatpush1.bf16.msra.mxu0 %v6085
  %6215 = vmatprep.subr.bf16.mxu0 %v6088
  %6216 = vmatpush1.bf16.msra.mxu0 %v6087
  %6217 = vmatprep.subr.bf16.mxu0 %v6090
  %6218 = vmatpush1.bf16.msra.mxu0 %v6089
  %6219 = vmatprep.subr.bf16.mxu0 %v6092
  %6220 = vmatpush1.bf16.msra.mxu0 %v6091
  %6221 = vmatprep.subr.bf16.mxu0 %v6094
  %6222 = vmatpush1.bf16.msra.mxu0 %v6093
  %6223 = vmatprep.subr.bf16.mxu0 %v6096
  %6224 = vmatpush1.bf16.msra.mxu0 %v6095
  %6225 = vmatprep.subr.bf16.mxu0 %v6098
  %6226 = vmatpush1.bf16.msra.mxu0 %v6097
  %6227 = vmatprep.mubr.bf16.mxu0 %v5796
  %6228 = vmatmul.mubr.bf16.gmra.mrb[0].mxu0 %v5795
  %v6229 = vpop.f32.mrb[0].mxu0
  %v6230 = vadd.f32 %v5868, %v6229
  %v6231 = vpop.f32.mrb[0].mxu0
  %v6232 = vadd.f32 %v5872, %v6231
  %v6233 = vpop.f32.mrb[0].mxu0
  %v6234 = vpop.f32.mrb[0].mxu0
  %6235 = vdwg.mxu0
  %6236 = vmatprep.subr.bf16.mxu0 %v6100
  %6237 = vmatpush1.bf16.msra.mxu0 %v6099
  %6238 = vmatprep.subr.bf16.mxu0 %v6102
  %6239 = vmatpush1.bf16.msra.mxu0 %v6101
  %6240 = vmatprep.subr.bf16.mxu0 %v6104
  %6241 = vmatpush1.bf16.msra.mxu0 %v6103
  %6242 = vmatprep.subr.bf16.mxu0 %v6106
  %6243 = vmatpush1.bf16.msra.mxu0 %v6105
  %6244 = vmatprep.subr.bf16.mxu0 %v6108
  %6245 = vmatpush1.bf16.msra.mxu0 %v6107
  %6246 = vmatprep.subr.bf16.mxu0 %v6110
  %6247 = vmatpush1.bf16.msra.mxu0 %v6109
  %6248 = vmatprep.subr.bf16.mxu0 %v6112
  %6249 = vmatpush1.bf16.msra.mxu0 %v6111
  %6250 = vmatprep.subr.bf16.mxu0 %v6114
  %6251 = vmatpush1.bf16.msra.mxu0 %v6113
  %6252 = vmatprep.subr.bf16.mxu0 %v6116
  %6253 = vmatpush1.bf16.msra.mxu0 %v6115
  %6254 = vmatprep.subr.bf16.mxu0 %v6118
  %6255 = vmatpush1.bf16.msra.mxu0 %v6117
  %6256 = vmatprep.subr.bf16.mxu0 %v6120
  %6257 = vmatpush1.bf16.msra.mxu0 %v6119
  %6258 = vmatprep.subr.bf16.mxu0 %v6122
  %6259 = vmatpush1.bf16.msra.mxu0 %v6121
  %6260 = vmatprep.subr.bf16.mxu0 %v6124
  %6261 = vmatpush1.bf16.msra.mxu0 %v6123
  %6262 = vmatprep.subr.bf16.mxu0 %v6126
  %6263 = vmatpush1.bf16.msra.mxu0 %v6125
  %6264 = vmatprep.subr.bf16.mxu0 %v6128
  %6265 = vmatpush1.bf16.msra.mxu0 %v6127
  %6266 = vmatprep.subr.bf16.mxu0 %v6130
  %6267 = vmatpush1.bf16.msra.mxu0 %v6129
  %6268 = vmatprep.mubr.bf16.mxu0 %v5798
  %6269 = vmatmul.mubr.bf16.gmra.mrb[0].mxu0 %v5797
  %v6270 = vpop.f32.mrb[0].mxu0
  %v6271 = vadd.f32 %v6230, %v6270
  %v6272 = vpop.f32.mrb[0].mxu0
  %v6273 = vadd.f32 %v6232, %v6272
  %v6274 = vpop.f32.mrb[0].mxu0
  %v6275 = vpop.f32.mrb[0].mxu0
  %6276 = vdwg.mxu0
  %v6277 = vmax.f32 %v6271, 0.0
  %v6278 = vmax.f32 %v6273, 0.0
  %v6279 = vpack.c.bf16 %v6277, %v6277
  %v6280 = vpack.c.bf16 %v6278, %v6278
  %v6281 = vld [vmem:[%s7] sm:$0xf]
  %v6282 = vld [vmem:[%s7 + $0x4] sm:$0xf]
  %v6283 = vld [vmem:[%s7 + $0x8] sm:$0xf]
  %v6284 = vld [vmem:[%s7 + $0xc] sm:$0xf]
  %v6285 = vld [vmem:[%s7 + $0x10] sm:$0xf]
  %v6286 = vld [vmem:[%s7 + $0x14] sm:$0xf]
  %v6287 = vld [vmem:[%s7 + $0x18] sm:$0xf]
  %v6288 = vld [vmem:[%s7 + $0x1c] sm:$0xf]
  %v6289 = vld [vmem:[%s7 + $0x20] sm:$0xf]
  %v6290 = vld [vmem:[%s7 + $0x24] sm:$0xf]
  %v6291 = vld [vmem:[%s7 + $0x28] sm:$0xf]
  %v6292 = vld [vmem:[%s7 + $0x2c] sm:$0xf]
  %v6293 = vld [vmem:[%s7 + $0x30] sm:$0xf]
  %v6294 = vld [vmem:[%s7 + $0x34] sm:$0xf]
  %v6295 = vld [vmem:[%s7 + $0x38] sm:$0xf]
  %v6296 = vld [vmem:[%s7 + $0x3c] sm:$0xf]
  %v6297 = vld [vmem:[%s7 + $0x40] sm:$0xf]
  %v6298 = vld [vmem:[%s7 + $0x44] sm:$0xf]
  %v6299 = vld [vmem:[%s7 + $0x48] sm:$0xf]
  %v6300 = vld [vmem:[%s7 + $0x4c] sm:$0xf]
  %v6301 = vld [vmem:[%s7 + $0x50] sm:$0xf]
  %v6302 = vld [vmem:[%s7 + $0x54] sm:$0xf]
  %v6303 = vld [vmem:[%s7 + $0x58] sm:$0xf]
  %v6304 = vld [vmem:[%s7 + $0x5c] sm:$0xf]
  %v6305 = vld [vmem:[%s7 + $0x60] sm:$0xf]
  %v6306 = vld [vmem:[%s7 + $0x64] sm:$0xf]
  %v6307 = vld [vmem:[%s7 + $0x68] sm:$0xf]
  %v6308 = vld [vmem:[%s7 + $0x6c] sm:$0xf]
  %v6309 = vld [vmem:[%s7 + $0x70] sm:$0xf]
  %v6310 = vld [vmem:[%s7 + $0x74] sm:$0xf]
  %v6311 = vld [vmem:[%s7 + $0x78] sm:$0xf]
  %v6312 = vld [vmem:[%s7 + $0x7c] sm:$0xf]
  %v6345 = vunpack.c.l.b16 %v6281
  %v6346 = vunpack.c.l.b16 %v6282
  %v6347 = vunpack.c.l.b16 %v6283
  %v6348 = vunpack.c.l.b16 %v6284
  %v6349 = vunpack.c.l.b16 %v6285
  %v6350 = vunpack.c.l.b16 %v6286
  %v6351 = vunpack.c.l.b16 %v6287
  %v6352 = vunpack.c.l.b16 %v6288
  %v6353 = vunpack.c.l.b16 %v6289
  %v6354 = vunpack.c.l.b16 %v6290
  %v6355 = vunpack.c.l.b16 %v6291
  %v6356 = vunpack.c.l.b16 %v6292
  %v6357 = vunpack.c.l.b16 %v6293
  %v6358 = vunpack.c.l.b16 %v6294
  %v6359 = vunpack.c.l.b16 %v6295
  %v6360 = vunpack.c.l.b16 %v6296
  %v6361 = vunpack.c.l.b16 %v6297
  %v6362 = vunpack.c.l.b16 %v6298
  %v6363 = vunpack.c.l.b16 %v6299
  %v6364 = vunpack.c.l.b16 %v6300
  %v6365 = vunpack.c.l.b16 %v6301
  %v6366 = vunpack.c.l.b16 %v6302
  %v6367 = vunpack.c.l.b16 %v6303
  %v6368 = vunpack.c.l.b16 %v6304
  %v6369 = vunpack.c.l.b16 %v6305
  %v6370 = vunpack.c.l.b16 %v6306
  %v6371 = vunpack.c.l.b16 %v6307
  %v6372 = vunpack.c.l.b16 %v6308
  %v6373 = vunpack.c.l.b16 %v6309
  %v6374 = vunpack.c.l.b16 %v6310
  %v6375 = vunpack.c.l.b16 %v6311
  %v6376 = vunpack.c.l.b16 %v6312
  %v6377 = vpack.c.b16 %v6346, %v6345
  %v6378 = vpack.c.b16 %v6348, %v6347
  %v6379 = vpack.c.b16 %v6350, %v6349
  %v6380 = vpack.c.b16 %v6352, %v6351
  %v6381 = vpack.c.b16 %v6354, %v6353
  %v6382 = vpack.c.b16 %v6356, %v6355
  %v6383 = vpack.c.b16 %v6358, %v6357
  %v6384 = vpack.c.b16 %v6360, %v6359
  %v6385 = vpack.c.b16 %v6362, %v6361
  %v6386 = vpack.c.b16 %v6364, %v6363
  %v6387 = vpack.c.b16 %v6366, %v6365
  %v6388 = vpack.c.b16 %v6368, %v6367
  %v6389 = vpack.c.b16 %v6370, %v6369
  %v6390 = vpack.c.b16 %v6372, %v6371
  %v6391 = vpack.c.b16 %v6374, %v6373
  %v6392 = vpack.c.b16 %v6376, %v6375
  %6409 = vmatprep.subr.bf16.mxu0 0
  %6410 = vmatpush1.bf16.msra.mxu0 %v6377
  %6411 = vmatprep.subr.bf16.mxu0 0
  %6412 = vmatpush1.bf16.msra.mxu0 %v6378
  %6413 = vmatprep.subr.bf16.mxu0 0
  %6414 = vmatpush1.bf16.msra.mxu0 %v6379
  %6415 = vmatprep.subr.bf16.mxu0 0
  %6416 = vmatpush1.bf16.msra.mxu0 %v6380
  %6417 = vmatprep.subr.bf16.mxu0 0
  %6418 = vmatpush1.bf16.msra.mxu0 %v6381
  %6419 = vmatprep.subr.bf16.mxu0 0
  %6420 = vmatpush1.bf16.msra.mxu0 %v6382
  %6421 = vmatprep.subr.bf16.mxu0 0
  %6422 = vmatpush1.bf16.msra.mxu0 %v6383
  %6423 = vmatprep.subr.bf16.mxu0 0
  %6424 = vmatpush1.bf16.msra.mxu0 %v6384
  %6425 = vmatprep.subr.bf16.mxu0 0
  %6426 = vmatpush1.bf16.msra.mxu0 %v6385
  %6427 = vmatprep.subr.bf16.mxu0 0
  %6428 = vmatpush1.bf16.msra.mxu0 %v6386
  %6429 = vmatprep.subr.bf16.mxu0 0
  %6430 = vmatpush1.bf16.msra.mxu0 %v6387
  %6431 = vmatprep.subr.bf16.mxu0 0
  %6432 = vmatpush1.bf16.msra.mxu0 %v6388
  %6433 = vmatprep.subr.bf16.mxu0 0
  %6434 = vmatpush1.bf16.msra.mxu0 %v6389
  %6435 = vmatprep.subr.bf16.mxu0 0
  %6436 = vmatpush1.bf16.msra.mxu0 %v6390
  %6437 = vmatprep.subr.bf16.mxu0 0
  %6438 = vmatpush1.bf16.msra.mxu0 %v6391
  %6439 = vmatprep.subr.bf16.mxu0 0
  %6440 = vmatpush1.bf16.msra.mxu0 %v6392
  %6441 = vmatprep.mubr.bf16.mxu0 %v6280
  %6442 = vmatmul.mubr.bf16.gmra.mrb[0].mxu0 %v6279
  %v6443 = vpop.f32.mrb[0].mxu0
  %v6444 = vadd.f32 0.0, %v6443
  %v6445 = vpop.f32.mrb[0].mxu0
  %v6446 = vpop.f32.mrb[0].mxu0
  %v6447 = vpop.f32.mrb[0].mxu0
  %6448 = vdwg.mxu0
  %6449 = vst [vmem:[%s8] sm:$0xff] %v6444
  // Predicated region
  $region34: #{simple_dqn_forward.1} parent=0 // pred_check
    _
  $region35: #{simple_dqn_forward.1} parent=0 // pred_check_branch
    %6451 = sbr.rel (0) target = $region37
  $region36: #{simple_dqn_forward.1} parent=0 // pred_region
    _
  $region37: #{simple_dqn_forward.1} parent=0 // pred_fallthru
    _
  // Predicated region
  $region38: #{simple_dqn_forward.1} parent=0 // pred_check
    _
  $region39: #{simple_dqn_forward.1} parent=0 // pred_check_branch
    %6453 = sbr.rel (0) target = $region41
  $region40: #{simple_dqn_forward.1} parent=0 // pred_region
    _
  $region41: #{simple_dqn_forward.1} parent=0 // pred_fallthru
    _

</llo_original>
